<compile_context>
chip_gen: v7x
topology: tpu7x:2x2x1
jax: 0.10.0
libtpu: 0.0.40
codegen_flags: <defaults>
</compile_context>

<pallas_src>
import functools
import math

import jax
import jax.numpy as jnp
from jax import lax
from jax.experimental import pallas as pl
from jax.experimental.pallas import tpu as pltpu

# ---------------- model config (small, consistent with the module) -----------
VOCAB = 32        # shared src/tgt dictionary size
D     = 32        # decoder_embed_dim
HEADS = 2
DH    = D // HEADS
FFN   = 64
PAD   = 1         # fairseq pad index (inputs below never use it)
HEAD_OUT_W = 128  # lane-dense padded width of the fused QE-head output slab

# ---------------- packed-slab layouts (all offsets static Python ints) -------
# Weight slab: row-stacked matrices, every row offset a multiple of 32 so both
# the f32 (8) and bf16 (16) sublane tilings stay aligned.
_W_ENTRIES = [
    ("embed",    2 * VOCAB, D),        # stacked enc|dec embedding tables
    ("e_wqkv",   D, 3 * D),
    ("e_wo",     D, D),
    ("e_fc1",    D, FFN),
    ("e_fc2",    FFN, D),
    ("d_wqkv",   D, 3 * D),
    ("d_wo",     D, D),
    ("d_cwq",    D, D),
    ("d_cwkv",   D, 2 * D),
    ("d_cwo",    D, D),
    ("d_fc1",    D, FFN),
    ("d_fc2",    FFN, D),
    ("h_densew", D, 2 * D),
    ("h_outw",   2 * D, HEAD_OUT_W),
]

def _build_w_layout(entries):
    off, out = 0, {}
    for name, rows, cols in entries:
        out[name] = (off, rows, cols)
        off += rows
    return out, off

_W_OFF, _W_ROWS = _build_w_layout(_W_ENTRIES)
_W_ROWS_PAD = ((_W_ROWS + 15) // 16) * 16          # bf16 sublane packing

# Vector slab: one row per bias / LN vector, f32, 128-lane padded.
_V_ENTRIES = [
    ("e_bqkv", 3 * D), ("e_bo", D), ("e_ln1g", D), ("e_ln1b", D),
    ("e_fc1b", FFN), ("e_fc2b", D), ("e_ln2g", D), ("e_ln2b", D),
    ("d_bqkv", 3 * D), ("d_bo", D), ("d_ln1g", D), ("d_ln1b", D),
    ("d_cbq", D), ("d_cbkv", 2 * D), ("d_cbo", D),
    ("d_ln2g", D), ("d_ln2b", D),
    ("d_fc1b", FFN), ("d_fc2b", D), ("d_ln3g", D), ("d_ln3b", D),
    ("h_denseb", 2 * D), ("h_outb", HEAD_OUT_W),
]
_V_OFF = {name: (i, cols) for i, (name, cols) in enumerate(_V_ENTRIES)}
_V_ROWS_PAD = ((len(_V_ENTRIES) + 7) // 8) * 8


# ============================ the fused kernel ================================

def _qe_detector_kernel(onehot_ref, pos_ref, w_ref, v_ref, out_ref,
                        *, B, T_src, T_mt):
    Ms, Mm = B * T_src, B * T_mt

    def W(name):                       # bf16 weight matrix (static ref slice)
        r0, rows, cols = _W_OFF[name]
        return w_ref[r0:r0 + rows, 0:cols]

    def V(name):                       # f32 [1, cols] row vector
        r, cols = _V_OFF[name]
        return v_ref[r:r + 1, 0:cols]

    def dot_bf16(x, w):                # bf16 MXU operands, f32 accumulation
        return jnp.dot(x.astype(jnp.bfloat16), w,
                       preferred_element_type=jnp.float32)

    def layer_norm(x, gname, bname):   # f32 elementwise math
        mean = jnp.mean(x, axis=-1, keepdims=True)
        var = jnp.mean((x - mean) ** 2, axis=-1, keepdims=True)
        return (x - mean) * lax.rsqrt(var + 1e-5) * V(gname) + V(bname)

    def softmax(s):
        s = s - jnp.max(s, axis=-1, keepdims=True)
        p = jnp.exp(s)
        inv = pl.reciprocal(jnp.sum(p, axis=-1, keepdims=True), approx=True)
        return p * inv

    def mha(q, k, v, Tq, Tk):
        # q: [B*Tq, D], k/v: [B*Tk, D].  Batched over B with einsum; heads are
        # contiguous 16-lane column blocks (static slices, no 4-D transpose).
        scale = DH ** -0.5
        q3 = (q * scale).reshape(B, Tq, D).astype(jnp.bfloat16)
        k3 = k.reshape(B, Tk, D).astype(jnp.bfloat16)
        v3 = v.reshape(B, Tk, D).astype(jnp.bfloat16)
        outs = []
        for h in range(HEADS):         # HEADS = 2, static unroll
            c0 = h * DH
            qh = q3[:, :, c0:c0 + DH]
            kh = k3[:, :, c0:c0 + DH]
            vh = v3[:, :, c0:c0 + DH]
            s = jnp.einsum('bqd,bkd->bqk', qh, kh,
                           preferred_element_type=jnp.float32)
            p = softmax(s)
            outs.append(jnp.einsum('bqk,bkd->bqd', p.astype(jnp.bfloat16), vh,
                                   preferred_element_type=jnp.float32))
        return jnp.concatenate(outs, axis=-1).reshape(B * Tq, D)

    def self_attn(x, T, wqkv, bqkv, wo, bo):
        qkv = dot_bf16(x, W(wqkv)) + V(bqkv)
        q, k, v = qkv[:, :D], qkv[:, D:2 * D], qkv[:, 2 * D:]
        o = mha(q, k, v, T, T)
        return dot_bf16(o, W(wo)) + V(bo)

    def cross_attn(x, enc):
        q = dot_bf16(x, W("d_cwq")) + V("d_cbq")
        kv = dot_bf16(enc, W("d_cwkv")) + V("d_cbkv")
        k, v = kv[:, :D], kv[:, D:]
        o = mha(q, k, v, T_mt, T_src)
        return dot_bf16(o, W("d_cwo")) + V("d_cbo")

    def ffn(x, w1, b1, w2, b2):
        h = jnp.maximum(dot_bf16(x, W(w1)) + V(b1), 0.0)
        return dot_bf16(h, W(w2)) + V(b2)

    # -------- fused src+mt embedding gather (one MXU matmul), *sqrt(D), +pos --
    emb = jnp.dot(onehot_ref[...], W("embed"),
                  preferred_element_type=jnp.float32) * math.sqrt(D) + pos_ref[...]
    enc_x, dec_x = emb[:Ms, :], emb[Ms:, :]

    # ---------------- encoder layer (post-norm, normalize_before=False) ------
    h = self_attn(enc_x, T_src, "e_wqkv", "e_bqkv", "e_wo", "e_bo")
    enc_x = layer_norm(enc_x + h, "e_ln1g", "e_ln1b")
    h = ffn(enc_x, "e_fc1", "e_fc1b", "e_fc2", "e_fc2b")
    enc_x = layer_norm(enc_x + h, "e_ln2g", "e_ln2b")

    # ------- decoder layer (features_only, full_context_alignment => no mask) -
    h = self_attn(dec_x, T_mt, "d_wqkv", "d_bqkv", "d_wo", "d_bo")
    dec_x = layer_norm(dec_x + h, "d_ln1g", "d_ln1b")
    h = cross_attn(dec_x, enc_x)
    dec_x = layer_norm(dec_x + h, "d_ln2g", "d_ln2b")
    h = ffn(dec_x, "d_fc1", "d_fc1b", "d_fc2", "d_fc2b")
    dec_x = layer_norm(dec_x + h, "d_ln3g", "d_ln3b")

    # ---------------- QE head: dense -> tanh -> (dropout=id) -> out_proj -----
    # h_cat cols 0:D = tanh(dec_x @ dense_w_tag), cols D:2D = tanh(... score)
    h_cat = jnp.tanh(dot_bf16(dec_x, W("h_densew")) + V("h_denseb"))
    # lane-dense [Mm, 128] slab: cols 0:2 = mt_tag OK/BAD logits, col 2 = score
    head = dot_bf16(h_cat, W("h_outw")) + V("h_outb")
    out_ref[...] = head.astype(out_ref.dtype)


# ============================ host-side packing ===============================

def sinusoidal_pos(T, dim):
    pos = jnp.arange(T, dtype=jnp.float32)[:, None]
    half = dim // 2
    inv = jnp.exp(-math.log(10000.0) * jnp.arange(half, dtype=jnp.float32)
                  / max(half - 1, 1))
    ang = pos * inv[None, :]
    return jnp.concatenate([jnp.sin(ang), jnp.cos(ang)], axis=-1)   # [T, dim]


def pack_params(params, B, T_src, T_mt):
    """One-time preprocessing: fuse & pack every weight into two slabs + pos."""
    enc, dec = params["enc_layer"], params["dec_layer"]
    tag, sc = params["qe_mt_tag"], params["qe_score"]

    def qkv_cat(p):
        return (jnp.concatenate([p["wq"], p["wk"], p["wv"]], axis=1),       # [D,3D]
                jnp.concatenate([p["bq"], p["bk"], p["bv"]], axis=0))       # [3D]

    e_wqkv, e_bqkv = qkv_cat(enc["self_attn"])
    d_wqkv, d_bqkv = qkv_cat(dec["self_attn"])
    cr = dec["cross_attn"]
    d_cwkv = jnp.concatenate([cr["wk"], cr["wv"]], axis=1)                  # [D,2D]
    d_cbkv = jnp.concatenate([cr["bk"], cr["bv"]], axis=0)

    # Fused QE head: both dense layers side-by-side; both out-projections into
    # one zero-padded, lane-dense [2D, 128] weight.
    h_densew = jnp.concatenate([tag["dense_w"], sc["dense_w"]], axis=1)     # [D,2D]
    h_denseb = jnp.concatenate([tag["dense_b"], sc["dense_b"]], axis=0)
    h_outw = jnp.zeros((2 * D, HEAD_OUT_W), jnp.float32)
    h_outw = h_outw.at[:D, 0:2].set(tag["out_w"]).at[D:, 2:3].set(sc["out_w"])
    h_outb = jnp.zeros((HEAD_OUT_W,), jnp.float32)
    h_outb = h_outb.at[0:2].set(tag["out_b"]).at[2].set(sc["out_b"][0])

    embed = jnp.concatenate([params["enc_embed"], params["dec_embed"]], axis=0)

    wmats = dict(
        embed=embed,
        e_wqkv=e_wqkv, e_wo=enc["self_attn"]["wo"],
        e_fc1=enc["fc1_w"], e_fc2=enc["fc2_w"],
        d_wqkv=d_wqkv, d_wo=dec["self_attn"]["wo"],
        d_cwq=cr["wq"], d_cwkv=d_cwkv, d_cwo=cr["wo"],
        d_fc1=dec["fc1_w"], d_fc2=dec["fc2_w"],
        h_densew=h_densew, h_outw=h_outw)
    w_slab = jnp.zeros((_W_ROWS_PAD, 128), jnp.bfloat16)
    for name, (r0, rows, cols) in _W_OFF.items():
        w_slab = w_slab.at[r0:r0 + rows, 0:cols].set(wmats[name].astype(jnp.bfloat16))

    vvecs = dict(
        e_bqkv=e_bqkv, e_bo=enc["self_attn"]["bo"],
        e_ln1g=enc["ln1_g"], e_ln1b=enc["ln1_b"],
        e_fc1b=enc["fc1_b"], e_fc2b=enc["fc2_b"],
        e_ln2g=enc["ln2_g"], e_ln2b=enc["ln2_b"],
        d_bqkv=d_bqkv, d_bo=dec["self_attn"]["bo"],
        d_ln1g=dec["ln1_g"], d_ln1b=dec["ln1_b"],
        d_cbq=cr["bq"], d_cbkv=d_cbkv, d_cbo=cr["bo"],
        d_ln2g=dec["ln2_g"], d_ln2b=dec["ln2_b"],
        d_fc1b=dec["fc1_b"], d_fc2b=dec["fc2_b"],
        d_ln3g=dec["ln3_g"], d_ln3b=dec["ln3_b"],
        h_denseb=h_denseb, h_outb=h_outb)
    v_slab = jnp.zeros((_V_ROWS_PAD, 128), jnp.float32)
    for name, (r, cols) in _V_OFF.items():
        v_slab = v_slab.at[r, 0:cols].set(vvecs[name])

    pos = jnp.concatenate([jnp.tile(sinusoidal_pos(T_src, D), (B, 1)),
                           jnp.tile(sinusoidal_pos(T_mt, D), (B, 1))], axis=0)

    return dict(w_slab=w_slab, v_slab=v_slab, pos=pos)


# ============================ per-call forward ================================

def qe_detector_forward(packed, src_tokens, mt_tokens):
    """QEDetector.forward with predict_target=True, predict_score=True (eval)."""
    B, T_src = src_tokens.shape
    _, T_mt = mt_tokens.shape
    Ms, Mm = B * T_src, B * T_mt

    # Only per-call, token-dependent work in the jitted graph: fused one-hot
    # (mt token ids offset by VOCAB to index the stacked embedding table).
    tok = jnp.concatenate([src_tokens.reshape(Ms).astype(jnp.int32),
                           mt_tokens.reshape(Mm).astype(jnp.int32) + VOCAB])
    onehot = (tok[:, None] == jnp.arange(2 * VOCAB, dtype=jnp.int32)[None, :]
              ).astype(jnp.bfloat16)                                       # [Ms+Mm, 2V]

    vmem = pl.BlockSpec(memory_space=pltpu.MemorySpace.VMEM)
    out = pl.pallas_call(
        functools.partial(_qe_detector_kernel, B=B, T_src=T_src, T_mt=T_mt),
        out_shape=jax.ShapeDtypeStruct((Mm, HEAD_OUT_W), jnp.float32),
        in_specs=[vmem, vmem, vmem, vmem],
        out_specs=vmem,
    )(onehot, packed["pos"], packed["w_slab"], packed["v_slab"])

    mt_tag = out[:, 0:2].reshape(B, T_mt, 2)          # predict_target logits
    score = out[:, 2].reshape(B, T_mt)[:, 1]          # predict_score: position-1 feats
    return {"mt_tag": mt_tag, "score": score}


# ============================ parameter init ==================================

def init_params(key):
    keys = iter(jax.random.split(key, 96))

    def w(shape, s=0.02):
        return s * jax.random.normal(next(keys), shape, dtype=jnp.float32)

    def attn_p():
        return dict(wq=w((D, D)), bq=jnp.zeros((D,), jnp.float32),
                    wk=w((D, D)), bk=jnp.zeros((D,), jnp.float32),
                    wv=w((D, D)), bv=jnp.zeros((D,), jnp.float32),
                    wo=w((D, D)), bo=jnp.zeros((D,), jnp.float32))

    def ln_p():
        return jnp.ones((D,), jnp.float32), jnp.zeros((D,), jnp.float32)

    enc_ln1g, enc_ln1b = ln_p()
    enc_ln2g, enc_ln2b = ln_p()
    dec_ln1g, dec_ln1b = ln_p()
    dec_ln2g, dec_ln2b = ln_p()
    dec_ln3g, dec_ln3b = ln_p()

    return dict(
        enc_embed=w((VOCAB, D), 0.1),
        dec_embed=w((VOCAB, D), 0.1),
        enc_layer=dict(self_attn=attn_p(),
                       ln1_g=enc_ln1g, ln1_b=enc_ln1b,
                       fc1_w=w((D, FFN)), fc1_b=jnp.zeros((FFN,), jnp.float32),
                       fc2_w=w((FFN, D)), fc2_b=jnp.zeros((D,), jnp.float32),
                       ln2_g=enc_ln2g, ln2_b=enc_ln2b),
        dec_layer=dict(self_attn=attn_p(),
                       ln1_g=dec_ln1g, ln1_b=dec_ln1b,
                       cross_attn=attn_p(),
                       ln2_g=dec_ln2g, ln2_b=dec_ln2b,
                       fc1_w=w((D, FFN)), fc1_b=jnp.zeros((FFN,), jnp.float32),
                       fc2_w=w((FFN, D)), fc2_b=jnp.zeros((D,), jnp.float32),
                       ln3_g=dec_ln3g, ln3_b=dec_ln3b),
        qe_mt_tag=dict(dense_w=w((D, D)), dense_b=jnp.zeros((D,), jnp.float32),
                       out_w=w((D, 2)), out_b=jnp.zeros((2,), jnp.float32)),
        qe_score=dict(dense_w=w((D, D)), dense_b=jnp.zeros((D,), jnp.float32),
                      out_w=w((D, 1)), out_b=jnp.zeros((1,), jnp.float32)),
    )


# ================================= main =======================================

if __name__ == "__main__":
    key = jax.random.PRNGKey(0)
    pkey, skey, mkey = jax.random.split(key, 3)
    params = init_params(pkey)

    B, T_SRC, T_MT = 2, 8, 8
    # tokens in [4, VOCAB): avoid special indices (pad=1) so no padding mask needed
    src_tokens = jax.random.randint(skey, (B, T_SRC), 4, VOCAB, dtype=jnp.int32)
    mt_tokens = jax.random.randint(mkey, (B, T_MT), 4, VOCAB, dtype=jnp.int32)

    # One-time weight fusion / slab packing (outside the per-call jit graph).
    packed = pack_params(params, B, T_SRC, T_MT)

    fwd = jax.jit(functools.partial(qe_detector_forward, packed))
    out = fwd(src_tokens, mt_tokens)
    out = jax.tree_util.tree_map(jax.block_until_ready, out)

    assert out["mt_tag"].shape == (B, T_MT, 2)
    assert out["score"].shape == (B,)
    assert jnp.all(jnp.isfinite(out["mt_tag"])) and jnp.all(jnp.isfinite(out["score"]))
    print("KERNEL_OK")
</pallas_src>

<mosaic_0001>
module attributes {stable_mosaic.version = 11 : i64} {
  func.func @_qe_detector_kernel(%arg0: memref<32x64xbf16, #tpu.memory_space<vmem>>, %arg1: memref<32x32xf32, #tpu.memory_space<vmem>>, %arg2: memref<576x128xbf16, #tpu.memory_space<vmem>>, %arg3: memref<24x128xf32, #tpu.memory_space<vmem>>, %arg4: memref<16x128xf32, #tpu.memory_space<vmem>>) attributes {dimension_semantics = [], scalar_prefetch = 0 : i64, scratch_operands = 0 : i64, tpu.core_type = #tpu.core_type<tc>} {
    %c0 = arith.constant 0 : index
    %c0_0 = arith.constant 0 : index
    %0 = vector.load %arg0[%c0, %c0_0] : memref<32x64xbf16, #tpu.memory_space<vmem>>, vector<32x64xbf16>
    %c0_1 = arith.constant 0 : index
    %c0_2 = arith.constant 0 : index
    %1 = vector.load %arg2[%c0_1, %c0_2] : memref<576x128xbf16, #tpu.memory_space<vmem>>, vector<64x32xbf16>
    %cst = arith.constant dense<0.000000e+00> : vector<32x32xf32>
    %2 = tpu.matmul %0, %1, %cst {dimension_numbers = #tpu.dot_dimension_numbers<[1], [0], [0], [1], [0, 0, 1, 1], [], []>} : vector<32x64xbf16>, vector<64x32xbf16>, vector<32x32xf32> -> vector<32x32xf32>
    %cst_3 = arith.constant 5.65685415 : f32
    %3 = vector.broadcast %cst_3 : f32 to vector<32x32xf32>
    %4 = arith.mulf %2, %3 : vector<32x32xf32>
    %c0_4 = arith.constant 0 : index
    %c0_5 = arith.constant 0 : index
    %5 = vector.load %arg1[%c0_4, %c0_5] : memref<32x32xf32, #tpu.memory_space<vmem>>, vector<32x32xf32>
    %6 = arith.addf %4, %5 : vector<32x32xf32>
    %7 = vector.extract_strided_slice %6 {offsets = [0, 0], sizes = [16, 32], strides = [1, 1]} : vector<32x32xf32> to vector<16x32xf32>
    %8 = vector.extract_strided_slice %6 {offsets = [16, 0], sizes = [16, 32], strides = [1, 1]} : vector<32x32xf32> to vector<16x32xf32>
    %c64 = arith.constant 64 : index
    %c0_6 = arith.constant 0 : index
    %9 = vector.load %arg2[%c64, %c0_6] : memref<576x128xbf16, #tpu.memory_space<vmem>>, vector<32x96xbf16>
    %10 = arith.truncf %7 : vector<16x32xf32> to vector<16x32xbf16>
    %cst_7 = arith.constant dense<0.000000e+00> : vector<16x96xf32>
    %11 = tpu.matmul %10, %9, %cst_7 {dimension_numbers = #tpu.dot_dimension_numbers<[1], [0], [0], [1], [0, 0, 1, 1], [], []>} : vector<16x32xbf16>, vector<32x96xbf16>, vector<16x96xf32> -> vector<16x96xf32>
    %c0_8 = arith.constant 0 : index
    %c0_9 = arith.constant 0 : index
    %12 = vector.load %arg3[%c0_8, %c0_9] : memref<24x128xf32, #tpu.memory_space<vmem>>, vector<1x96xf32>
    %13 = vector.broadcast %12 : vector<1x96xf32> to vector<16x96xf32>
    %14 = arith.addf %11, %13 : vector<16x96xf32>
    %15 = vector.extract_strided_slice %14 {offsets = [0, 0], sizes = [16, 32], strides = [1, 1]} : vector<16x96xf32> to vector<16x32xf32>
    %16 = vector.extract_strided_slice %14 {offsets = [0, 32], sizes = [16, 32], strides = [1, 1]} : vector<16x96xf32> to vector<16x32xf32>
    %17 = vector.extract_strided_slice %14 {offsets = [0, 64], sizes = [16, 32], strides = [1, 1]} : vector<16x96xf32> to vector<16x32xf32>
    %cst_10 = arith.constant 2.500000e-01 : f32
    %18 = vector.broadcast %cst_10 : f32 to vector<16x32xf32>
    %19 = arith.mulf %15, %18 : vector<16x32xf32>
    %20 = vector.shape_cast %19 : vector<16x32xf32> to vector<2x8x32xf32>
    %21 = arith.truncf %20 : vector<2x8x32xf32> to vector<2x8x32xbf16>
    %22 = vector.shape_cast %16 : vector<16x32xf32> to vector<2x8x32xf32>
    %23 = arith.truncf %22 : vector<2x8x32xf32> to vector<2x8x32xbf16>
    %24 = vector.shape_cast %17 : vector<16x32xf32> to vector<2x8x32xf32>
    %25 = arith.truncf %24 : vector<2x8x32xf32> to vector<2x8x32xbf16>
    %26 = vector.extract_strided_slice %21 {offsets = [0, 0, 0], sizes = [2, 8, 16], strides = [1, 1, 1]} : vector<2x8x32xbf16> to vector<2x8x16xbf16>
    %27 = vector.extract_strided_slice %23 {offsets = [0, 0, 0], sizes = [2, 8, 16], strides = [1, 1, 1]} : vector<2x8x32xbf16> to vector<2x8x16xbf16>
    %28 = vector.extract_strided_slice %25 {offsets = [0, 0, 0], sizes = [2, 8, 16], strides = [1, 1, 1]} : vector<2x8x32xbf16> to vector<2x8x16xbf16>
    "tpu.trace_start"() <{level = 10 : i32, message = "bqd,bkd->bqk"}> : () -> ()
    %cst_11 = arith.constant dense<0.000000e+00> : vector<2x8x8xf32>
    %29 = tpu.matmul %26, %27, %cst_11 {dimension_numbers = #tpu.dot_dimension_numbers<[2], [2], [1], [1], [0, 0, 0, 1, 1, 1], [0], [0]>} : vector<2x8x16xbf16>, vector<2x8x16xbf16>, vector<2x8x8xf32> -> vector<2x8x8xf32>
    "tpu.trace_stop"() : () -> ()
    %cst_12 = arith.constant dense<0xFF800000> : vector<2x8xf32>
    %30 = vector.multi_reduction <maximumf>, %29, %cst_12 [2] : vector<2x8x8xf32> to vector<2x8xf32>
    %31 = vector.shape_cast %30 : vector<2x8xf32> to vector<2x8x1xf32>
    %32 = vector.broadcast %31 : vector<2x8x1xf32> to vector<2x8x8xf32>
    %33 = arith.subf %29, %32 : vector<2x8x8xf32>
    %34 = math.exp %33 : vector<2x8x8xf32>
    %cst_13 = arith.constant dense<0.000000e+00> : vector<2x8xf32>
    %35 = vector.multi_reduction <add>, %34, %cst_13 [2] : vector<2x8x8xf32> to vector<2x8xf32>
    %36 = vector.shape_cast %35 : vector<2x8xf32> to vector<2x8x1xf32>
    %37 = tpu.reciprocal %36 {approx = true} : vector<2x8x1xf32> -> vector<2x8x1xf32>
    %38 = vector.broadcast %37 : vector<2x8x1xf32> to vector<2x8x8xf32>
    %39 = arith.mulf %34, %38 : vector<2x8x8xf32>
    %40 = arith.truncf %39 : vector<2x8x8xf32> to vector<2x8x8xbf16>
    "tpu.trace_start"() <{level = 10 : i32, message = "bqk,bkd->bqd"}> : () -> ()
    %cst_14 = arith.constant dense<0.000000e+00> : vector<2x8x16xf32>
    %41 = tpu.matmul %40, %28, %cst_14 {dimension_numbers = #tpu.dot_dimension_numbers<[2], [1], [1], [2], [0, 0, 0, 1, 1, 2], [0], [0]>} : vector<2x8x8xbf16>, vector<2x8x16xbf16>, vector<2x8x16xf32> -> vector<2x8x16xf32>
    "tpu.trace_stop"() : () -> ()
    %42 = vector.extract_strided_slice %21 {offsets = [0, 0, 16], sizes = [2, 8, 16], strides = [1, 1, 1]} : vector<2x8x32xbf16> to vector<2x8x16xbf16>
    %43 = vector.extract_strided_slice %23 {offsets = [0, 0, 16], sizes = [2, 8, 16], strides = [1, 1, 1]} : vector<2x8x32xbf16> to vector<2x8x16xbf16>
    %44 = vector.extract_strided_slice %25 {offsets = [0, 0, 16], sizes = [2, 8, 16], strides = [1, 1, 1]} : vector<2x8x32xbf16> to vector<2x8x16xbf16>
    "tpu.trace_start"() <{level = 10 : i32, message = "bqd,bkd->bqk"}> : () -> ()
    %cst_15 = arith.constant dense<0.000000e+00> : vector<2x8x8xf32>
    %45 = tpu.matmul %42, %43, %cst_15 {dimension_numbers = #tpu.dot_dimension_numbers<[2], [2], [1], [1], [0, 0, 0, 1, 1, 1], [0], [0]>} : vector<2x8x16xbf16>, vector<2x8x16xbf16>, vector<2x8x8xf32> -> vector<2x8x8xf32>
    "tpu.trace_stop"() : () -> ()
    %cst_16 = arith.constant dense<0xFF800000> : vector<2x8xf32>
    %46 = vector.multi_reduction <maximumf>, %45, %cst_16 [2] : vector<2x8x8xf32> to vector<2x8xf32>
    %47 = vector.shape_cast %46 : vector<2x8xf32> to vector<2x8x1xf32>
    %48 = vector.broadcast %47 : vector<2x8x1xf32> to vector<2x8x8xf32>
    %49 = arith.subf %45, %48 : vector<2x8x8xf32>
    %50 = math.exp %49 : vector<2x8x8xf32>
    %cst_17 = arith.constant dense<0.000000e+00> : vector<2x8xf32>
    %51 = vector.multi_reduction <add>, %50, %cst_17 [2] : vector<2x8x8xf32> to vector<2x8xf32>
    %52 = vector.shape_cast %51 : vector<2x8xf32> to vector<2x8x1xf32>
    %53 = tpu.reciprocal %52 {approx = true} : vector<2x8x1xf32> -> vector<2x8x1xf32>
    %54 = vector.broadcast %53 : vector<2x8x1xf32> to vector<2x8x8xf32>
    %55 = arith.mulf %50, %54 : vector<2x8x8xf32>
    %56 = arith.truncf %55 : vector<2x8x8xf32> to vector<2x8x8xbf16>
    "tpu.trace_start"() <{level = 10 : i32, message = "bqk,bkd->bqd"}> : () -> ()
    %cst_18 = arith.constant dense<0.000000e+00> : vector<2x8x16xf32>
    %57 = tpu.matmul %56, %44, %cst_18 {dimension_numbers = #tpu.dot_dimension_numbers<[2], [1], [1], [2], [0, 0, 0, 1, 1, 2], [0], [0]>} : vector<2x8x8xbf16>, vector<2x8x16xbf16>, vector<2x8x16xf32> -> vector<2x8x16xf32>
    "tpu.trace_stop"() : () -> ()
    %58 = tpu.concatenate %41, %57 in 2 : vector<2x8x16xf32>, vector<2x8x16xf32> -> vector<2x8x32xf32>
    %59 = vector.shape_cast %58 : vector<2x8x32xf32> to vector<16x32xf32>
    %c96 = arith.constant 96 : index
    %c0_19 = arith.constant 0 : index
    %60 = vector.load %arg2[%c96, %c0_19] : memref<576x128xbf16, #tpu.memory_space<vmem>>, vector<32x32xbf16>
    %61 = arith.truncf %59 : vector<16x32xf32> to vector<16x32xbf16>
    %cst_20 = arith.constant dense<0.000000e+00> : vector<16x32xf32>
    %62 = tpu.matmul %61, %60, %cst_20 {dimension_numbers = #tpu.dot_dimension_numbers<[1], [0], [0], [1], [0, 0, 1, 1], [], []>} : vector<16x32xbf16>, vector<32x32xbf16>, vector<16x32xf32> -> vector<16x32xf32>
    %c1 = arith.constant 1 : index
    %c0_21 = arith.constant 0 : index
    %63 = vector.load %arg3[%c1, %c0_21] : memref<24x128xf32, #tpu.memory_space<vmem>>, vector<1x32xf32>
    %64 = vector.broadcast %63 : vector<1x32xf32> to vector<16x32xf32>
    %65 = arith.addf %62, %64 : vector<16x32xf32>
    %66 = arith.addf %7, %65 : vector<16x32xf32>
    %cst_22 = arith.constant dense<0.000000e+00> : vector<16xf32>
    %67 = vector.multi_reduction <add>, %66, %cst_22 [1] : vector<16x32xf32> to vector<16xf32>
    %68 = vector.shape_cast %67 : vector<16xf32> to vector<16x1xf32>
    %cst_23 = arith.constant 3.200000e+01 : f32
    %69 = vector.broadcast %cst_23 : f32 to vector<16x1xf32>
    %70 = arith.divf %68, %69 : vector<16x1xf32>
    %71 = vector.broadcast %70 : vector<16x1xf32> to vector<16x32xf32>
    %72 = arith.subf %66, %71 : vector<16x32xf32>
    %73 = arith.mulf %72, %72 : vector<16x32xf32>
    %cst_24 = arith.constant dense<0.000000e+00> : vector<16xf32>
    %74 = vector.multi_reduction <add>, %73, %cst_24 [1] : vector<16x32xf32> to vector<16xf32>
    %75 = vector.shape_cast %74 : vector<16xf32> to vector<16x1xf32>
    %cst_25 = arith.constant 3.200000e+01 : f32
    %76 = vector.broadcast %cst_25 : f32 to vector<16x1xf32>
    %77 = arith.divf %75, %76 : vector<16x1xf32>
    %78 = vector.broadcast %70 : vector<16x1xf32> to vector<16x32xf32>
    %79 = arith.subf %66, %78 : vector<16x32xf32>
    %cst_26 = arith.constant 9.99999974E-6 : f32
    %80 = vector.broadcast %cst_26 : f32 to vector<16x1xf32>
    %81 = arith.addf %77, %80 : vector<16x1xf32>
    %82 = math.rsqrt %81 : vector<16x1xf32>
    %83 = vector.broadcast %82 : vector<16x1xf32> to vector<16x32xf32>
    %84 = arith.mulf %79, %83 : vector<16x32xf32>
    %c2 = arith.constant 2 : index
    %c0_27 = arith.constant 0 : index
    %85 = vector.load %arg3[%c2, %c0_27] : memref<24x128xf32, #tpu.memory_space<vmem>>, vector<1x32xf32>
    %86 = vector.broadcast %85 : vector<1x32xf32> to vector<16x32xf32>
    %87 = arith.mulf %84, %86 : vector<16x32xf32>
    %c3 = arith.constant 3 : index
    %c0_28 = arith.constant 0 : index
    %88 = vector.load %arg3[%c3, %c0_28] : memref<24x128xf32, #tpu.memory_space<vmem>>, vector<1x32xf32>
    %89 = vector.broadcast %88 : vector<1x32xf32> to vector<16x32xf32>
    %90 = arith.addf %87, %89 : vector<16x32xf32>
    %c128 = arith.constant 128 : index
    %c0_29 = arith.constant 0 : index
    %91 = vector.load %arg2[%c128, %c0_29] : memref<576x128xbf16, #tpu.memory_space<vmem>>, vector<32x64xbf16>
    %92 = arith.truncf %90 : vector<16x32xf32> to vector<16x32xbf16>
    %cst_30 = arith.constant dense<0.000000e+00> : vector<16x64xf32>
    %93 = tpu.matmul %92, %91, %cst_30 {dimension_numbers = #tpu.dot_dimension_numbers<[1], [0], [0], [1], [0, 0, 1, 1], [], []>} : vector<16x32xbf16>, vector<32x64xbf16>, vector<16x64xf32> -> vector<16x64xf32>
    %c4 = arith.constant 4 : index
    %c0_31 = arith.constant 0 : index
    %94 = vector.load %arg3[%c4, %c0_31] : memref<24x128xf32, #tpu.memory_space<vmem>>, vector<1x64xf32>
    %95 = vector.broadcast %94 : vector<1x64xf32> to vector<16x64xf32>
    %96 = arith.addf %93, %95 : vector<16x64xf32>
    %cst_32 = arith.constant 0.000000e+00 : f32
    %97 = vector.broadcast %cst_32 : f32 to vector<16x64xf32>
    %98 = arith.maximumf %96, %97 : vector<16x64xf32>
    %c160 = arith.constant 160 : index
    %c0_33 = arith.constant 0 : index
    %99 = vector.load %arg2[%c160, %c0_33] : memref<576x128xbf16, #tpu.memory_space<vmem>>, vector<64x32xbf16>
    %100 = arith.truncf %98 : vector<16x64xf32> to vector<16x64xbf16>
    %cst_34 = arith.constant dense<0.000000e+00> : vector<16x32xf32>
    %101 = tpu.matmul %100, %99, %cst_34 {dimension_numbers = #tpu.dot_dimension_numbers<[1], [0], [0], [1], [0, 0, 1, 1], [], []>} : vector<16x64xbf16>, vector<64x32xbf16>, vector<16x32xf32> -> vector<16x32xf32>
    %c5 = arith.constant 5 : index
    %c0_35 = arith.constant 0 : index
    %102 = vector.load %arg3[%c5, %c0_35] : memref<24x128xf32, #tpu.memory_space<vmem>>, vector<1x32xf32>
    %103 = vector.broadcast %102 : vector<1x32xf32> to vector<16x32xf32>
    %104 = arith.addf %101, %103 : vector<16x32xf32>
    %105 = arith.addf %90, %104 : vector<16x32xf32>
    %cst_36 = arith.constant dense<0.000000e+00> : vector<16xf32>
    %106 = vector.multi_reduction <add>, %105, %cst_36 [1] : vector<16x32xf32> to vector<16xf32>
    %107 = vector.shape_cast %106 : vector<16xf32> to vector<16x1xf32>
    %cst_37 = arith.constant 3.200000e+01 : f32
    %108 = vector.broadcast %cst_37 : f32 to vector<16x1xf32>
    %109 = arith.divf %107, %108 : vector<16x1xf32>
    %110 = vector.broadcast %109 : vector<16x1xf32> to vector<16x32xf32>
    %111 = arith.subf %105, %110 : vector<16x32xf32>
    %112 = arith.mulf %111, %111 : vector<16x32xf32>
    %cst_38 = arith.constant dense<0.000000e+00> : vector<16xf32>
    %113 = vector.multi_reduction <add>, %112, %cst_38 [1] : vector<16x32xf32> to vector<16xf32>
    %114 = vector.shape_cast %113 : vector<16xf32> to vector<16x1xf32>
    %cst_39 = arith.constant 3.200000e+01 : f32
    %115 = vector.broadcast %cst_39 : f32 to vector<16x1xf32>
    %116 = arith.divf %114, %115 : vector<16x1xf32>
    %117 = vector.broadcast %109 : vector<16x1xf32> to vector<16x32xf32>
    %118 = arith.subf %105, %117 : vector<16x32xf32>
    %cst_40 = arith.constant 9.99999974E-6 : f32
    %119 = vector.broadcast %cst_40 : f32 to vector<16x1xf32>
    %120 = arith.addf %116, %119 : vector<16x1xf32>
    %121 = math.rsqrt %120 : vector<16x1xf32>
    %122 = vector.broadcast %121 : vector<16x1xf32> to vector<16x32xf32>
    %123 = arith.mulf %118, %122 : vector<16x32xf32>
    %c6 = arith.constant 6 : index
    %c0_41 = arith.constant 0 : index
    %124 = vector.load %arg3[%c6, %c0_41] : memref<24x128xf32, #tpu.memory_space<vmem>>, vector<1x32xf32>
    %125 = vector.broadcast %124 : vector<1x32xf32> to vector<16x32xf32>
    %126 = arith.mulf %123, %125 : vector<16x32xf32>
    %c7 = arith.constant 7 : index
    %c0_42 = arith.constant 0 : index
    %127 = vector.load %arg3[%c7, %c0_42] : memref<24x128xf32, #tpu.memory_space<vmem>>, vector<1x32xf32>
    %128 = vector.broadcast %127 : vector<1x32xf32> to vector<16x32xf32>
    %129 = arith.addf %126, %128 : vector<16x32xf32>
    %c224 = arith.constant 224 : index
    %c0_43 = arith.constant 0 : index
    %130 = vector.load %arg2[%c224, %c0_43] : memref<576x128xbf16, #tpu.memory_space<vmem>>, vector<32x96xbf16>
    %131 = arith.truncf %8 : vector<16x32xf32> to vector<16x32xbf16>
    %cst_44 = arith.constant dense<0.000000e+00> : vector<16x96xf32>
    %132 = tpu.matmul %131, %130, %cst_44 {dimension_numbers = #tpu.dot_dimension_numbers<[1], [0], [0], [1], [0, 0, 1, 1], [], []>} : vector<16x32xbf16>, vector<32x96xbf16>, vector<16x96xf32> -> vector<16x96xf32>
    %c8 = arith.constant 8 : index
    %c0_45 = arith.constant 0 : index
    %133 = vector.load %arg3[%c8, %c0_45] : memref<24x128xf32, #tpu.memory_space<vmem>>, vector<1x96xf32>
    %134 = vector.broadcast %133 : vector<1x96xf32> to vector<16x96xf32>
    %135 = arith.addf %132, %134 : vector<16x96xf32>
    %136 = vector.extract_strided_slice %135 {offsets = [0, 0], sizes = [16, 32], strides = [1, 1]} : vector<16x96xf32> to vector<16x32xf32>
    %137 = vector.extract_strided_slice %135 {offsets = [0, 32], sizes = [16, 32], strides = [1, 1]} : vector<16x96xf32> to vector<16x32xf32>
    %138 = vector.extract_strided_slice %135 {offsets = [0, 64], sizes = [16, 32], strides = [1, 1]} : vector<16x96xf32> to vector<16x32xf32>
    %cst_46 = arith.constant 2.500000e-01 : f32
    %139 = vector.broadcast %cst_46 : f32 to vector<16x32xf32>
    %140 = arith.mulf %136, %139 : vector<16x32xf32>
    %141 = vector.shape_cast %140 : vector<16x32xf32> to vector<2x8x32xf32>
    %142 = arith.truncf %141 : vector<2x8x32xf32> to vector<2x8x32xbf16>
    %143 = vector.shape_cast %137 : vector<16x32xf32> to vector<2x8x32xf32>
    %144 = arith.truncf %143 : vector<2x8x32xf32> to vector<2x8x32xbf16>
    %145 = vector.shape_cast %138 : vector<16x32xf32> to vector<2x8x32xf32>
    %146 = arith.truncf %145 : vector<2x8x32xf32> to vector<2x8x32xbf16>
    %147 = vector.extract_strided_slice %142 {offsets = [0, 0, 0], sizes = [2, 8, 16], strides = [1, 1, 1]} : vector<2x8x32xbf16> to vector<2x8x16xbf16>
    %148 = vector.extract_strided_slice %144 {offsets = [0, 0, 0], sizes = [2, 8, 16], strides = [1, 1, 1]} : vector<2x8x32xbf16> to vector<2x8x16xbf16>
    %149 = vector.extract_strided_slice %146 {offsets = [0, 0, 0], sizes = [2, 8, 16], strides = [1, 1, 1]} : vector<2x8x32xbf16> to vector<2x8x16xbf16>
    "tpu.trace_start"() <{level = 10 : i32, message = "bqd,bkd->bqk"}> : () -> ()
    %cst_47 = arith.constant dense<0.000000e+00> : vector<2x8x8xf32>
    %150 = tpu.matmul %147, %148, %cst_47 {dimension_numbers = #tpu.dot_dimension_numbers<[2], [2], [1], [1], [0, 0, 0, 1, 1, 1], [0], [0]>} : vector<2x8x16xbf16>, vector<2x8x16xbf16>, vector<2x8x8xf32> -> vector<2x8x8xf32>
    "tpu.trace_stop"() : () -> ()
    %cst_48 = arith.constant dense<0xFF800000> : vector<2x8xf32>
    %151 = vector.multi_reduction <maximumf>, %150, %cst_48 [2] : vector<2x8x8xf32> to vector<2x8xf32>
    %152 = vector.shape_cast %151 : vector<2x8xf32> to vector<2x8x1xf32>
    %153 = vector.broadcast %152 : vector<2x8x1xf32> to vector<2x8x8xf32>
    %154 = arith.subf %150, %153 : vector<2x8x8xf32>
    %155 = math.exp %154 : vector<2x8x8xf32>
    %cst_49 = arith.constant dense<0.000000e+00> : vector<2x8xf32>
    %156 = vector.multi_reduction <add>, %155, %cst_49 [2] : vector<2x8x8xf32> to vector<2x8xf32>
    %157 = vector.shape_cast %156 : vector<2x8xf32> to vector<2x8x1xf32>
    %158 = tpu.reciprocal %157 {approx = true} : vector<2x8x1xf32> -> vector<2x8x1xf32>
    %159 = vector.broadcast %158 : vector<2x8x1xf32> to vector<2x8x8xf32>
    %160 = arith.mulf %155, %159 : vector<2x8x8xf32>
    %161 = arith.truncf %160 : vector<2x8x8xf32> to vector<2x8x8xbf16>
    "tpu.trace_start"() <{level = 10 : i32, message = "bqk,bkd->bqd"}> : () -> ()
    %cst_50 = arith.constant dense<0.000000e+00> : vector<2x8x16xf32>
    %162 = tpu.matmul %161, %149, %cst_50 {dimension_numbers = #tpu.dot_dimension_numbers<[2], [1], [1], [2], [0, 0, 0, 1, 1, 2], [0], [0]>} : vector<2x8x8xbf16>, vector<2x8x16xbf16>, vector<2x8x16xf32> -> vector<2x8x16xf32>
    "tpu.trace_stop"() : () -> ()
    %163 = vector.extract_strided_slice %142 {offsets = [0, 0, 16], sizes = [2, 8, 16], strides = [1, 1, 1]} : vector<2x8x32xbf16> to vector<2x8x16xbf16>
    %164 = vector.extract_strided_slice %144 {offsets = [0, 0, 16], sizes = [2, 8, 16], strides = [1, 1, 1]} : vector<2x8x32xbf16> to vector<2x8x16xbf16>
    %165 = vector.extract_strided_slice %146 {offsets = [0, 0, 16], sizes = [2, 8, 16], strides = [1, 1, 1]} : vector<2x8x32xbf16> to vector<2x8x16xbf16>
    "tpu.trace_start"() <{level = 10 : i32, message = "bqd,bkd->bqk"}> : () -> ()
    %cst_51 = arith.constant dense<0.000000e+00> : vector<2x8x8xf32>
    %166 = tpu.matmul %163, %164, %cst_51 {dimension_numbers = #tpu.dot_dimension_numbers<[2], [2], [1], [1], [0, 0, 0, 1, 1, 1], [0], [0]>} : vector<2x8x16xbf16>, vector<2x8x16xbf16>, vector<2x8x8xf32> -> vector<2x8x8xf32>
    "tpu.trace_stop"() : () -> ()
    %cst_52 = arith.constant dense<0xFF800000> : vector<2x8xf32>
    %167 = vector.multi_reduction <maximumf>, %166, %cst_52 [2] : vector<2x8x8xf32> to vector<2x8xf32>
    %168 = vector.shape_cast %167 : vector<2x8xf32> to vector<2x8x1xf32>
    %169 = vector.broadcast %168 : vector<2x8x1xf32> to vector<2x8x8xf32>
    %170 = arith.subf %166, %169 : vector<2x8x8xf32>
    %171 = math.exp %170 : vector<2x8x8xf32>
    %cst_53 = arith.constant dense<0.000000e+00> : vector<2x8xf32>
    %172 = vector.multi_reduction <add>, %171, %cst_53 [2] : vector<2x8x8xf32> to vector<2x8xf32>
    %173 = vector.shape_cast %172 : vector<2x8xf32> to vector<2x8x1xf32>
    %174 = tpu.reciprocal %173 {approx = true} : vector<2x8x1xf32> -> vector<2x8x1xf32>
    %175 = vector.broadcast %174 : vector<2x8x1xf32> to vector<2x8x8xf32>
    %176 = arith.mulf %171, %175 : vector<2x8x8xf32>
    %177 = arith.truncf %176 : vector<2x8x8xf32> to vector<2x8x8xbf16>
    "tpu.trace_start"() <{level = 10 : i32, message = "bqk,bkd->bqd"}> : () -> ()
    %cst_54 = arith.constant dense<0.000000e+00> : vector<2x8x16xf32>
    %178 = tpu.matmul %177, %165, %cst_54 {dimension_numbers = #tpu.dot_dimension_numbers<[2], [1], [1], [2], [0, 0, 0, 1, 1, 2], [0], [0]>} : vector<2x8x8xbf16>, vector<2x8x16xbf16>, vector<2x8x16xf32> -> vector<2x8x16xf32>
    "tpu.trace_stop"() : () -> ()
    %179 = tpu.concatenate %162, %178 in 2 : vector<2x8x16xf32>, vector<2x8x16xf32> -> vector<2x8x32xf32>
    %180 = vector.shape_cast %179 : vector<2x8x32xf32> to vector<16x32xf32>
    %c256 = arith.constant 256 : index
    %c0_55 = arith.constant 0 : index
    %181 = vector.load %arg2[%c256, %c0_55] : memref<576x128xbf16, #tpu.memory_space<vmem>>, vector<32x32xbf16>
    %182 = arith.truncf %180 : vector<16x32xf32> to vector<16x32xbf16>
    %cst_56 = arith.constant dense<0.000000e+00> : vector<16x32xf32>
    %183 = tpu.matmul %182, %181, %cst_56 {dimension_numbers = #tpu.dot_dimension_numbers<[1], [0], [0], [1], [0, 0, 1, 1], [], []>} : vector<16x32xbf16>, vector<32x32xbf16>, vector<16x32xf32> -> vector<16x32xf32>
    %c9 = arith.constant 9 : index
    %c0_57 = arith.constant 0 : index
    %184 = vector.load %arg3[%c9, %c0_57] : memref<24x128xf32, #tpu.memory_space<vmem>>, vector<1x32xf32>
    %185 = vector.broadcast %184 : vector<1x32xf32> to vector<16x32xf32>
    %186 = arith.addf %183, %185 : vector<16x32xf32>
    %187 = arith.addf %8, %186 : vector<16x32xf32>
    %cst_58 = arith.constant dense<0.000000e+00> : vector<16xf32>
    %188 = vector.multi_reduction <add>, %187, %cst_58 [1] : vector<16x32xf32> to vector<16xf32>
    %189 = vector.shape_cast %188 : vector<16xf32> to vector<16x1xf32>
    %cst_59 = arith.constant 3.200000e+01 : f32
    %190 = vector.broadcast %cst_59 : f32 to vector<16x1xf32>
    %191 = arith.divf %189, %190 : vector<16x1xf32>
    %192 = vector.broadcast %191 : vector<16x1xf32> to vector<16x32xf32>
    %193 = arith.subf %187, %192 : vector<16x32xf32>
    %194 = arith.mulf %193, %193 : vector<16x32xf32>
    %cst_60 = arith.constant dense<0.000000e+00> : vector<16xf32>
    %195 = vector.multi_reduction <add>, %194, %cst_60 [1] : vector<16x32xf32> to vector<16xf32>
    %196 = vector.shape_cast %195 : vector<16xf32> to vector<16x1xf32>
    %cst_61 = arith.constant 3.200000e+01 : f32
    %197 = vector.broadcast %cst_61 : f32 to vector<16x1xf32>
    %198 = arith.divf %196, %197 : vector<16x1xf32>
    %199 = vector.broadcast %191 : vector<16x1xf32> to vector<16x32xf32>
    %200 = arith.subf %187, %199 : vector<16x32xf32>
    %cst_62 = arith.constant 9.99999974E-6 : f32
    %201 = vector.broadcast %cst_62 : f32 to vector<16x1xf32>
    %202 = arith.addf %198, %201 : vector<16x1xf32>
    %203 = math.rsqrt %202 : vector<16x1xf32>
    %204 = vector.broadcast %203 : vector<16x1xf32> to vector<16x32xf32>
    %205 = arith.mulf %200, %204 : vector<16x32xf32>
    %c10 = arith.constant 10 : index
    %c0_63 = arith.constant 0 : index
    %206 = vector.load %arg3[%c10, %c0_63] : memref<24x128xf32, #tpu.memory_space<vmem>>, vector<1x32xf32>
    %207 = vector.broadcast %206 : vector<1x32xf32> to vector<16x32xf32>
    %208 = arith.mulf %205, %207 : vector<16x32xf32>
    %c11 = arith.constant 11 : index
    %c0_64 = arith.constant 0 : index
    %209 = vector.load %arg3[%c11, %c0_64] : memref<24x128xf32, #tpu.memory_space<vmem>>, vector<1x32xf32>
    %210 = vector.broadcast %209 : vector<1x32xf32> to vector<16x32xf32>
    %211 = arith.addf %208, %210 : vector<16x32xf32>
    %c288 = arith.constant 288 : index
    %c0_65 = arith.constant 0 : index
    %212 = vector.load %arg2[%c288, %c0_65] : memref<576x128xbf16, #tpu.memory_space<vmem>>, vector<32x32xbf16>
    %213 = arith.truncf %211 : vector<16x32xf32> to vector<16x32xbf16>
    %cst_66 = arith.constant dense<0.000000e+00> : vector<16x32xf32>
    %214 = tpu.matmul %213, %212, %cst_66 {dimension_numbers = #tpu.dot_dimension_numbers<[1], [0], [0], [1], [0, 0, 1, 1], [], []>} : vector<16x32xbf16>, vector<32x32xbf16>, vector<16x32xf32> -> vector<16x32xf32>
    %c12 = arith.constant 12 : index
    %c0_67 = arith.constant 0 : index
    %215 = vector.load %arg3[%c12, %c0_67] : memref<24x128xf32, #tpu.memory_space<vmem>>, vector<1x32xf32>
    %216 = vector.broadcast %215 : vector<1x32xf32> to vector<16x32xf32>
    %217 = arith.addf %214, %216 : vector<16x32xf32>
    %c320 = arith.constant 320 : index
    %c0_68 = arith.constant 0 : index
    %218 = vector.load %arg2[%c320, %c0_68] : memref<576x128xbf16, #tpu.memory_space<vmem>>, vector<32x64xbf16>
    %219 = arith.truncf %129 : vector<16x32xf32> to vector<16x32xbf16>
    %cst_69 = arith.constant dense<0.000000e+00> : vector<16x64xf32>
    %220 = tpu.matmul %219, %218, %cst_69 {dimension_numbers = #tpu.dot_dimension_numbers<[1], [0], [0], [1], [0, 0, 1, 1], [], []>} : vector<16x32xbf16>, vector<32x64xbf16>, vector<16x64xf32> -> vector<16x64xf32>
    %c13 = arith.constant 13 : index
    %c0_70 = arith.constant 0 : index
    %221 = vector.load %arg3[%c13, %c0_70] : memref<24x128xf32, #tpu.memory_space<vmem>>, vector<1x64xf32>
    %222 = vector.broadcast %221 : vector<1x64xf32> to vector<16x64xf32>
    %223 = arith.addf %220, %222 : vector<16x64xf32>
    %224 = vector.extract_strided_slice %223 {offsets = [0, 0], sizes = [16, 32], strides = [1, 1]} : vector<16x64xf32> to vector<16x32xf32>
    %225 = vector.extract_strided_slice %223 {offsets = [0, 32], sizes = [16, 32], strides = [1, 1]} : vector<16x64xf32> to vector<16x32xf32>
    %cst_71 = arith.constant 2.500000e-01 : f32
    %226 = vector.broadcast %cst_71 : f32 to vector<16x32xf32>
    %227 = arith.mulf %217, %226 : vector<16x32xf32>
    %228 = vector.shape_cast %227 : vector<16x32xf32> to vector<2x8x32xf32>
    %229 = arith.truncf %228 : vector<2x8x32xf32> to vector<2x8x32xbf16>
    %230 = vector.shape_cast %224 : vector<16x32xf32> to vector<2x8x32xf32>
    %231 = arith.truncf %230 : vector<2x8x32xf32> to vector<2x8x32xbf16>
    %232 = vector.shape_cast %225 : vector<16x32xf32> to vector<2x8x32xf32>
    %233 = arith.truncf %232 : vector<2x8x32xf32> to vector<2x8x32xbf16>
    %234 = vector.extract_strided_slice %229 {offsets = [0, 0, 0], sizes = [2, 8, 16], strides = [1, 1, 1]} : vector<2x8x32xbf16> to vector<2x8x16xbf16>
    %235 = vector.extract_strided_slice %231 {offsets = [0, 0, 0], sizes = [2, 8, 16], strides = [1, 1, 1]} : vector<2x8x32xbf16> to vector<2x8x16xbf16>
    %236 = vector.extract_strided_slice %233 {offsets = [0, 0, 0], sizes = [2, 8, 16], strides = [1, 1, 1]} : vector<2x8x32xbf16> to vector<2x8x16xbf16>
    "tpu.trace_start"() <{level = 10 : i32, message = "bqd,bkd->bqk"}> : () -> ()
    %cst_72 = arith.constant dense<0.000000e+00> : vector<2x8x8xf32>
    %237 = tpu.matmul %234, %235, %cst_72 {dimension_numbers = #tpu.dot_dimension_numbers<[2], [2], [1], [1], [0, 0, 0, 1, 1, 1], [0], [0]>} : vector<2x8x16xbf16>, vector<2x8x16xbf16>, vector<2x8x8xf32> -> vector<2x8x8xf32>
    "tpu.trace_stop"() : () -> ()
    %cst_73 = arith.constant dense<0xFF800000> : vector<2x8xf32>
    %238 = vector.multi_reduction <maximumf>, %237, %cst_73 [2] : vector<2x8x8xf32> to vector<2x8xf32>
    %239 = vector.shape_cast %238 : vector<2x8xf32> to vector<2x8x1xf32>
    %240 = vector.broadcast %239 : vector<2x8x1xf32> to vector<2x8x8xf32>
    %241 = arith.subf %237, %240 : vector<2x8x8xf32>
    %242 = math.exp %241 : vector<2x8x8xf32>
    %cst_74 = arith.constant dense<0.000000e+00> : vector<2x8xf32>
    %243 = vector.multi_reduction <add>, %242, %cst_74 [2] : vector<2x8x8xf32> to vector<2x8xf32>
    %244 = vector.shape_cast %243 : vector<2x8xf32> to vector<2x8x1xf32>
    %245 = tpu.reciprocal %244 {approx = true} : vector<2x8x1xf32> -> vector<2x8x1xf32>
    %246 = vector.broadcast %245 : vector<2x8x1xf32> to vector<2x8x8xf32>
    %247 = arith.mulf %242, %246 : vector<2x8x8xf32>
    %248 = arith.truncf %247 : vector<2x8x8xf32> to vector<2x8x8xbf16>
    "tpu.trace_start"() <{level = 10 : i32, message = "bqk,bkd->bqd"}> : () -> ()
    %cst_75 = arith.constant dense<0.000000e+00> : vector<2x8x16xf32>
    %249 = tpu.matmul %248, %236, %cst_75 {dimension_numbers = #tpu.dot_dimension_numbers<[2], [1], [1], [2], [0, 0, 0, 1, 1, 2], [0], [0]>} : vector<2x8x8xbf16>, vector<2x8x16xbf16>, vector<2x8x16xf32> -> vector<2x8x16xf32>
    "tpu.trace_stop"() : () -> ()
    %250 = vector.extract_strided_slice %229 {offsets = [0, 0, 16], sizes = [2, 8, 16], strides = [1, 1, 1]} : vector<2x8x32xbf16> to vector<2x8x16xbf16>
    %251 = vector.extract_strided_slice %231 {offsets = [0, 0, 16], sizes = [2, 8, 16], strides = [1, 1, 1]} : vector<2x8x32xbf16> to vector<2x8x16xbf16>
    %252 = vector.extract_strided_slice %233 {offsets = [0, 0, 16], sizes = [2, 8, 16], strides = [1, 1, 1]} : vector<2x8x32xbf16> to vector<2x8x16xbf16>
    "tpu.trace_start"() <{level = 10 : i32, message = "bqd,bkd->bqk"}> : () -> ()
    %cst_76 = arith.constant dense<0.000000e+00> : vector<2x8x8xf32>
    %253 = tpu.matmul %250, %251, %cst_76 {dimension_numbers = #tpu.dot_dimension_numbers<[2], [2], [1], [1], [0, 0, 0, 1, 1, 1], [0], [0]>} : vector<2x8x16xbf16>, vector<2x8x16xbf16>, vector<2x8x8xf32> -> vector<2x8x8xf32>
    "tpu.trace_stop"() : () -> ()
    %cst_77 = arith.constant dense<0xFF800000> : vector<2x8xf32>
    %254 = vector.multi_reduction <maximumf>, %253, %cst_77 [2] : vector<2x8x8xf32> to vector<2x8xf32>
    %255 = vector.shape_cast %254 : vector<2x8xf32> to vector<2x8x1xf32>
    %256 = vector.broadcast %255 : vector<2x8x1xf32> to vector<2x8x8xf32>
    %257 = arith.subf %253, %256 : vector<2x8x8xf32>
    %258 = math.exp %257 : vector<2x8x8xf32>
    %cst_78 = arith.constant dense<0.000000e+00> : vector<2x8xf32>
    %259 = vector.multi_reduction <add>, %258, %cst_78 [2] : vector<2x8x8xf32> to vector<2x8xf32>
    %260 = vector.shape_cast %259 : vector<2x8xf32> to vector<2x8x1xf32>
    %261 = tpu.reciprocal %260 {approx = true} : vector<2x8x1xf32> -> vector<2x8x1xf32>
    %262 = vector.broadcast %261 : vector<2x8x1xf32> to vector<2x8x8xf32>
    %263 = arith.mulf %258, %262 : vector<2x8x8xf32>
    %264 = arith.truncf %263 : vector<2x8x8xf32> to vector<2x8x8xbf16>
    "tpu.trace_start"() <{level = 10 : i32, message = "bqk,bkd->bqd"}> : () -> ()
    %cst_79 = arith.constant dense<0.000000e+00> : vector<2x8x16xf32>
    %265 = tpu.matmul %264, %252, %cst_79 {dimension_numbers = #tpu.dot_dimension_numbers<[2], [1], [1], [2], [0, 0, 0, 1, 1, 2], [0], [0]>} : vector<2x8x8xbf16>, vector<2x8x16xbf16>, vector<2x8x16xf32> -> vector<2x8x16xf32>
    "tpu.trace_stop"() : () -> ()
    %266 = tpu.concatenate %249, %265 in 2 : vector<2x8x16xf32>, vector<2x8x16xf32> -> vector<2x8x32xf32>
    %267 = vector.shape_cast %266 : vector<2x8x32xf32> to vector<16x32xf32>
    %c352 = arith.constant 352 : index
    %c0_80 = arith.constant 0 : index
    %268 = vector.load %arg2[%c352, %c0_80] : memref<576x128xbf16, #tpu.memory_space<vmem>>, vector<32x32xbf16>
    %269 = arith.truncf %267 : vector<16x32xf32> to vector<16x32xbf16>
    %cst_81 = arith.constant dense<0.000000e+00> : vector<16x32xf32>
    %270 = tpu.matmul %269, %268, %cst_81 {dimension_numbers = #tpu.dot_dimension_numbers<[1], [0], [0], [1], [0, 0, 1, 1], [], []>} : vector<16x32xbf16>, vector<32x32xbf16>, vector<16x32xf32> -> vector<16x32xf32>
    %c14 = arith.constant 14 : index
    %c0_82 = arith.constant 0 : index
    %271 = vector.load %arg3[%c14, %c0_82] : memref<24x128xf32, #tpu.memory_space<vmem>>, vector<1x32xf32>
    %272 = vector.broadcast %271 : vector<1x32xf32> to vector<16x32xf32>
    %273 = arith.addf %270, %272 : vector<16x32xf32>
    %274 = arith.addf %211, %273 : vector<16x32xf32>
    %cst_83 = arith.constant dense<0.000000e+00> : vector<16xf32>
    %275 = vector.multi_reduction <add>, %274, %cst_83 [1] : vector<16x32xf32> to vector<16xf32>
    %276 = vector.shape_cast %275 : vector<16xf32> to vector<16x1xf32>
    %cst_84 = arith.constant 3.200000e+01 : f32
    %277 = vector.broadcast %cst_84 : f32 to vector<16x1xf32>
    %278 = arith.divf %276, %277 : vector<16x1xf32>
    %279 = vector.broadcast %278 : vector<16x1xf32> to vector<16x32xf32>
    %280 = arith.subf %274, %279 : vector<16x32xf32>
    %281 = arith.mulf %280, %280 : vector<16x32xf32>
    %cst_85 = arith.constant dense<0.000000e+00> : vector<16xf32>
    %282 = vector.multi_reduction <add>, %281, %cst_85 [1] : vector<16x32xf32> to vector<16xf32>
    %283 = vector.shape_cast %282 : vector<16xf32> to vector<16x1xf32>
    %cst_86 = arith.constant 3.200000e+01 : f32
    %284 = vector.broadcast %cst_86 : f32 to vector<16x1xf32>
    %285 = arith.divf %283, %284 : vector<16x1xf32>
    %286 = vector.broadcast %278 : vector<16x1xf32> to vector<16x32xf32>
    %287 = arith.subf %274, %286 : vector<16x32xf32>
    %cst_87 = arith.constant 9.99999974E-6 : f32
    %288 = vector.broadcast %cst_87 : f32 to vector<16x1xf32>
    %289 = arith.addf %285, %288 : vector<16x1xf32>
    %290 = math.rsqrt %289 : vector<16x1xf32>
    %291 = vector.broadcast %290 : vector<16x1xf32> to vector<16x32xf32>
    %292 = arith.mulf %287, %291 : vector<16x32xf32>
    %c15 = arith.constant 15 : index
    %c0_88 = arith.constant 0 : index
    %293 = vector.load %arg3[%c15, %c0_88] : memref<24x128xf32, #tpu.memory_space<vmem>>, vector<1x32xf32>
    %294 = vector.broadcast %293 : vector<1x32xf32> to vector<16x32xf32>
    %295 = arith.mulf %292, %294 : vector<16x32xf32>
    %c16 = arith.constant 16 : index
    %c0_89 = arith.constant 0 : index
    %296 = vector.load %arg3[%c16, %c0_89] : memref<24x128xf32, #tpu.memory_space<vmem>>, vector<1x32xf32>
    %297 = vector.broadcast %296 : vector<1x32xf32> to vector<16x32xf32>
    %298 = arith.addf %295, %297 : vector<16x32xf32>
    %c384 = arith.constant 384 : index
    %c0_90 = arith.constant 0 : index
    %299 = vector.load %arg2[%c384, %c0_90] : memref<576x128xbf16, #tpu.memory_space<vmem>>, vector<32x64xbf16>
    %300 = arith.truncf %298 : vector<16x32xf32> to vector<16x32xbf16>
    %cst_91 = arith.constant dense<0.000000e+00> : vector<16x64xf32>
    %301 = tpu.matmul %300, %299, %cst_91 {dimension_numbers = #tpu.dot_dimension_numbers<[1], [0], [0], [1], [0, 0, 1, 1], [], []>} : vector<16x32xbf16>, vector<32x64xbf16>, vector<16x64xf32> -> vector<16x64xf32>
    %c17 = arith.constant 17 : index
    %c0_92 = arith.constant 0 : index
    %302 = vector.load %arg3[%c17, %c0_92] : memref<24x128xf32, #tpu.memory_space<vmem>>, vector<1x64xf32>
    %303 = vector.broadcast %302 : vector<1x64xf32> to vector<16x64xf32>
    %304 = arith.addf %301, %303 : vector<16x64xf32>
    %cst_93 = arith.constant 0.000000e+00 : f32
    %305 = vector.broadcast %cst_93 : f32 to vector<16x64xf32>
    %306 = arith.maximumf %304, %305 : vector<16x64xf32>
    %c416 = arith.constant 416 : index
    %c0_94 = arith.constant 0 : index
    %307 = vector.load %arg2[%c416, %c0_94] : memref<576x128xbf16, #tpu.memory_space<vmem>>, vector<64x32xbf16>
    %308 = arith.truncf %306 : vector<16x64xf32> to vector<16x64xbf16>
    %cst_95 = arith.constant dense<0.000000e+00> : vector<16x32xf32>
    %309 = tpu.matmul %308, %307, %cst_95 {dimension_numbers = #tpu.dot_dimension_numbers<[1], [0], [0], [1], [0, 0, 1, 1], [], []>} : vector<16x64xbf16>, vector<64x32xbf16>, vector<16x32xf32> -> vector<16x32xf32>
    %c18 = arith.constant 18 : index
    %c0_96 = arith.constant 0 : index
    %310 = vector.load %arg3[%c18, %c0_96] : memref<24x128xf32, #tpu.memory_space<vmem>>, vector<1x32xf32>
    %311 = vector.broadcast %310 : vector<1x32xf32> to vector<16x32xf32>
    %312 = arith.addf %309, %311 : vector<16x32xf32>
    %313 = arith.addf %298, %312 : vector<16x32xf32>
    %cst_97 = arith.constant dense<0.000000e+00> : vector<16xf32>
    %314 = vector.multi_reduction <add>, %313, %cst_97 [1] : vector<16x32xf32> to vector<16xf32>
    %315 = vector.shape_cast %314 : vector<16xf32> to vector<16x1xf32>
    %cst_98 = arith.constant 3.200000e+01 : f32
    %316 = vector.broadcast %cst_98 : f32 to vector<16x1xf32>
    %317 = arith.divf %315, %316 : vector<16x1xf32>
    %318 = vector.broadcast %317 : vector<16x1xf32> to vector<16x32xf32>
    %319 = arith.subf %313, %318 : vector<16x32xf32>
    %320 = arith.mulf %319, %319 : vector<16x32xf32>
    %cst_99 = arith.constant dense<0.000000e+00> : vector<16xf32>
    %321 = vector.multi_reduction <add>, %320, %cst_99 [1] : vector<16x32xf32> to vector<16xf32>
    %322 = vector.shape_cast %321 : vector<16xf32> to vector<16x1xf32>
    %cst_100 = arith.constant 3.200000e+01 : f32
    %323 = vector.broadcast %cst_100 : f32 to vector<16x1xf32>
    %324 = arith.divf %322, %323 : vector<16x1xf32>
    %325 = vector.broadcast %317 : vector<16x1xf32> to vector<16x32xf32>
    %326 = arith.subf %313, %325 : vector<16x32xf32>
    %cst_101 = arith.constant 9.99999974E-6 : f32
    %327 = vector.broadcast %cst_101 : f32 to vector<16x1xf32>
    %328 = arith.addf %324, %327 : vector<16x1xf32>
    %329 = math.rsqrt %328 : vector<16x1xf32>
    %330 = vector.broadcast %329 : vector<16x1xf32> to vector<16x32xf32>
    %331 = arith.mulf %326, %330 : vector<16x32xf32>
    %c19 = arith.constant 19 : index
    %c0_102 = arith.constant 0 : index
    %332 = vector.load %arg3[%c19, %c0_102] : memref<24x128xf32, #tpu.memory_space<vmem>>, vector<1x32xf32>
    %333 = vector.broadcast %332 : vector<1x32xf32> to vector<16x32xf32>
    %334 = arith.mulf %331, %333 : vector<16x32xf32>
    %c20 = arith.constant 20 : index
    %c0_103 = arith.constant 0 : index
    %335 = vector.load %arg3[%c20, %c0_103] : memref<24x128xf32, #tpu.memory_space<vmem>>, vector<1x32xf32>
    %336 = vector.broadcast %335 : vector<1x32xf32> to vector<16x32xf32>
    %337 = arith.addf %334, %336 : vector<16x32xf32>
    %c480 = arith.constant 480 : index
    %c0_104 = arith.constant 0 : index
    %338 = vector.load %arg2[%c480, %c0_104] : memref<576x128xbf16, #tpu.memory_space<vmem>>, vector<32x64xbf16>
    %339 = arith.truncf %337 : vector<16x32xf32> to vector<16x32xbf16>
    %cst_105 = arith.constant dense<0.000000e+00> : vector<16x64xf32>
    %340 = tpu.matmul %339, %338, %cst_105 {dimension_numbers = #tpu.dot_dimension_numbers<[1], [0], [0], [1], [0, 0, 1, 1], [], []>} : vector<16x32xbf16>, vector<32x64xbf16>, vector<16x64xf32> -> vector<16x64xf32>
    %c21 = arith.constant 21 : index
    %c0_106 = arith.constant 0 : index
    %341 = vector.load %arg3[%c21, %c0_106] : memref<24x128xf32, #tpu.memory_space<vmem>>, vector<1x64xf32>
    %342 = vector.broadcast %341 : vector<1x64xf32> to vector<16x64xf32>
    %343 = arith.addf %340, %342 : vector<16x64xf32>
    %344 = math.tanh %343 : vector<16x64xf32>
    %c512 = arith.constant 512 : index
    %c0_107 = arith.constant 0 : index
    %345 = vector.load %arg2[%c512, %c0_107] : memref<576x128xbf16, #tpu.memory_space<vmem>>, vector<64x128xbf16>
    %346 = arith.truncf %344 : vector<16x64xf32> to vector<16x64xbf16>
    %cst_108 = arith.constant dense<0.000000e+00> : vector<16x128xf32>
    %347 = tpu.matmul %346, %345, %cst_108 {dimension_numbers = #tpu.dot_dimension_numbers<[1], [0], [0], [1], [0, 0, 1, 1], [], []>} : vector<16x64xbf16>, vector<64x128xbf16>, vector<16x128xf32> -> vector<16x128xf32>
    %c22 = arith.constant 22 : index
    %c0_109 = arith.constant 0 : index
    %348 = vector.load %arg3[%c22, %c0_109] : memref<24x128xf32, #tpu.memory_space<vmem>>, vector<1x128xf32>
    %349 = vector.broadcast %348 : vector<1x128xf32> to vector<16x128xf32>
    %350 = arith.addf %347, %349 : vector<16x128xf32>
    %c0_110 = arith.constant 0 : index
    %c0_111 = arith.constant 0 : index
    %351 = vector.load %arg4[%c0_110, %c0_111] : memref<16x128xf32, #tpu.memory_space<vmem>>, vector<16x128xf32>
    tpu.vector_store %arg4[%c0_110, %c0_111], %350 {strides = array<i32>} : memref<16x128xf32, #tpu.memory_space<vmem>>, vector<16x128xf32>,
    return
  }
}

</mosaic_0001>

<llo_original>
// kernel: squeeze.2
$region0: #{squeeze.2}
  %s0 = inlined_call_operand.vmem [shape: f32[16], index: 0, kind: input, shape index: {}]
  %s1 = inlined_call_operand.vmem [shape: f32[2,8], index: 1, kind: output, shape index: {}]
  $region1: #{squeeze.2} parent=0
    #allocation0 [shape = 'u8[4096]{0}', space=vmem, size = 0x1000, scoped, tag = 'scoped mem for output reshape']
    #allocation1 [shape = 'u8[4096]{0}', space=vmem, size = 0x1000, scoped, tag = 'scoped mem for input reshape']
    %s3 = sshllo.u32 0, 1
    %v4 = vld [vmem:[%s0] sm:%s3]
    %5 = vst [vmem:[#allocation1] sm:%s3] %v4
    %v6 = vld [vmem:[#allocation1] sm:$0x1]
    %vm7 = vcmask 64512
    %8 = vst.msk [vmem:[#allocation0] sm:$0x1] %vm7, %v6
    %v9 = vld [vmem:[#allocation1] sm:$0x1]
    %10 = vrot.lane.b32.xlu0 %v9, 120
    %v11 = vpop.permute.xlu0 %10
    %vm12 = vcmask 64512
    %s13 = scalar_lea.vmem [#allocation0], 1
    %14 = vst.msk [vmem:[%s13] sm:$0x1] %vm12, %v11
    %s16 = sshllo.u32 0, 2
    %v18 = vld [vmem:[#allocation0] sm:%s16]
    %s19 = sshllo.u32 0, 2
    %20 = vst [vmem:[%s1] sm:%s19] %v18

// kernel: qe_detector_forward.1
$region0: #{qe_detector_forward.1}
  #allocation0 [shape = 'u32[]', space=smem, size = 0x4, offset = 0x4, fixed_abs, tag = 'smem constant byte address 0x4 - core index']
  #allocation1 [shape = 'u32[144,128]{1,0:T(1,128)}', space=vmem, size = 0x12000, scoped, tag = 'internal scratch']
  %s0 = inlined_call_operand.vmem [shape: bf16[32,64], index: 0, kind: input, shape index: {}]
  %s1 = inlined_call_operand.vmem [shape: f32[32,32], index: 1, kind: input, shape index: {}]
  %s2 = inlined_call_operand.hbm [shape: bf16[576,128], index: 2, kind: input, shape index: {}]
  %s3 = inlined_call_operand.hbm [shape: f32[24,128], index: 3, kind: input, shape index: {}]
  %s4 = inlined_call_operand.vmem [shape: f32[16,128], index: 4, kind: output, shape index: {}]
  %s5 = sld [smem:[#allocation0]]
  $region34: #{qe_detector_forward.1} parent=0
    _
  %s7 = ssub.s32 1, %s5
  %s8 = scalar_select 0, %s7, %s5
  $region1: #{qe_detector_forward.1} parent=0
    #allocation2 [shape = 'u8[147456]{0}', space=vmem, size = 0x24000, scoped, tag = 'input window, operand 2, single buffered']
    #allocation3 [shape = 's32[1]{0}', space=sflag, size = 0x4, scoped, tag = 'scoped memory for qe_detector_forward.1']
    #allocation4 [shape = 'u8[12288]{0}', space=vmem, size = 0x3000, scoped, tag = 'input window, operand 3, single buffered']
    #allocation5 [shape = 's32[1]{0}', space=sflag, size = 0x4, scoped, tag = 'scoped memory for qe_detector_forward.1']
    %9 = vsyncpa [#allocation3], 0
    %10 = vsyncpa [#allocation5], 0
    // Predicated region
    $region2: #{qe_detector_forward.1} parent=1 // pred_check
      _
    $region3: #{qe_detector_forward.1} parent=1 // pred_check_branch
      %12 = sbr.rel (0) target = $region5
    $region4: #{qe_detector_forward.1} parent=1 // pred_region
      _
    $region5: #{qe_detector_forward.1} parent=1 // pred_fallthru
      _
    // Predicated region
    $region6: #{qe_detector_forward.1} parent=1 // pred_check
      _
    $region7: #{qe_detector_forward.1} parent=1 // pred_check_branch
      %14 = sbr.rel (0) target = $region9
    $region8: #{qe_detector_forward.1} parent=1 // pred_region
      _
    $region9: #{qe_detector_forward.1} parent=1 // pred_fallthru
      _
    // Predicated region
    $region10: #{qe_detector_forward.1} parent=1 // pred_check
      _
    $region11: #{qe_detector_forward.1} parent=1 // pred_check_branch
      %16 = sbr.rel (0) target = $region13
    $region12: #{qe_detector_forward.1} parent=1 // pred_region
      %s18 = ssub.s32 4608, 4608
      %19 = vsyncadd [#allocation3], %s18
      %s20 = sshll.u32 [#allocation2], 4
      %s21 = int_to_ptr.vmem [resolvable:$true] %s20
      %26 = dma.hbm_to_vmem [thread:$0]  %s2, 4608, %s21, [#allocation3], 64, 64, 4
    $region13: #{qe_detector_forward.1} parent=1 // pred_fallthru
      _
    // Predicated region
    $region14: #{qe_detector_forward.1} parent=1 // pred_check
      _
    $region15: #{qe_detector_forward.1} parent=1 // pred_check_branch
      %28 = sbr.rel (0) target = $region17
    $region16: #{qe_detector_forward.1} parent=1 // pred_region
      %s30 = ssub.s32 384, 384
      %31 = vsyncadd [#allocation5], %s30
      %s32 = sshll.u32 [#allocation4], 4
      %s33 = int_to_ptr.vmem [resolvable:$true] %s32
      %38 = dma.hbm_to_vmem [thread:$0]  %s3, 384, %s33, [#allocation5], 128, 128, 8
    $region17: #{qe_detector_forward.1} parent=1 // pred_fallthru
      _
    // Predicated region
    $region18: #{qe_detector_forward.1} parent=1 // pred_check
      _
    $region19: #{qe_detector_forward.1} parent=1 // pred_check_branch
      %40 = sbr.rel (0) target = $region21
    $region20: #{qe_detector_forward.1} parent=1 // pred_region
      %41 = dma.done [#allocation3], 4608
    $region21: #{qe_detector_forward.1} parent=1 // pred_fallthru
      _
    // Predicated region
    $region22: #{qe_detector_forward.1} parent=1 // pred_check
      _
    $region23: #{qe_detector_forward.1} parent=1 // pred_check_branch
      %43 = sbr.rel (0) target = $region25
    $region24: #{qe_detector_forward.1} parent=1 // pred_region
      %44 = dma.done [#allocation5], 384
    $region25: #{qe_detector_forward.1} parent=1 // pred_fallthru
      _
    %v46 = vld [vmem:[%s0] sm:$0xf]
    %v47 = vld [vmem:[%s0 + $0x4] sm:$0xf]
    %v48 = vld [vmem:[%s0 + $0x8] sm:$0xf]
    %v49 = vld [vmem:[%s0 + $0xc] sm:$0xf]
    %v50 = vld [vmem:[#allocation2] sm:$0xf]
    %v51 = vld [vmem:[#allocation2 + $0x4] sm:$0xf]
    %v52 = vld [vmem:[#allocation2 + $0x8] sm:$0xf]
    %v53 = vld [vmem:[#allocation2 + $0xc] sm:$0xf]
    %v54 = vld [vmem:[#allocation2 + $0x10] sm:$0xf]
    %v55 = vld [vmem:[#allocation2 + $0x14] sm:$0xf]
    %v56 = vld [vmem:[#allocation2 + $0x18] sm:$0xf]
    %v57 = vld [vmem:[#allocation2 + $0x1c] sm:$0xf]
    %v62 = vunpack.c.l.b16 %v46
    %v63 = vunpack.c.l.b16 %v47
    %v64 = vunpack.c.l.b16 %v48
    %v65 = vunpack.c.l.b16 %v49
    %v66 = vpack.c.b16 %v63, %v62
    %v67 = vpack.c.b16 %v65, %v64
    %v76 = vunpack.c.l.b16 %v50
    %v77 = vunpack.c.l.b16 %v51
    %v78 = vunpack.c.l.b16 %v52
    %v79 = vunpack.c.l.b16 %v53
    %v80 = vunpack.c.l.b16 %v54
    %v81 = vunpack.c.l.b16 %v55
    %v82 = vunpack.c.l.b16 %v56
    %v83 = vunpack.c.l.b16 %v57
    %v84 = vpack.c.b16 %v77, %v76
    %v85 = vpack.c.b16 %v79, %v78
    %v86 = vpack.c.b16 %v81, %v80
    %v87 = vpack.c.b16 %v83, %v82
    %vm92 = vcmask 523264
    %v94 = vsel %vm92, %v66, 0
    %v97 = vsel %vm92, %v67, 0
    %99 = vmatprep.subr.bf16.mxu0 0
    %100 = vmatpush1.bf16.msra.mxu0 %v84
    %101 = vmatprep.subr.bf16.mxu0 0
    %102 = vmatpush1.bf16.msra.mxu0 %v85
    %103 = vmatprep.subr.bf16.mxu0 0
    %104 = vmatpush1.bf16.msra.mxu0 %v86
    %105 = vmatprep.subr.bf16.mxu0 0
    %106 = vmatpush1.bf16.msra.mxu0 %v87
    %107 = vmatprep.subr.bf16.mxu0 0
    %108 = vmatpush1.bf16.msra.mxu0 0
    %109 = vmatprep.subr.bf16.mxu0 0
    %110 = vmatpush1.bf16.msra.mxu0 0
    %111 = vmatprep.subr.bf16.mxu0 0
    %112 = vmatpush1.bf16.msra.mxu0 0
    %113 = vmatprep.subr.bf16.mxu0 0
    %114 = vmatpush1.bf16.msra.mxu0 0
    %115 = vmatprep.subr.bf16.mxu0 0
    %116 = vmatpush1.bf16.msra.mxu0 0
    %117 = vmatprep.subr.bf16.mxu0 0
    %118 = vmatpush1.bf16.msra.mxu0 0
    %119 = vmatprep.subr.bf16.mxu0 0
    %120 = vmatpush1.bf16.msra.mxu0 0
    %121 = vmatprep.subr.bf16.mxu0 0
    %122 = vmatpush1.bf16.msra.mxu0 0
    %123 = vmatprep.subr.bf16.mxu0 0
    %124 = vmatpush1.bf16.msra.mxu0 0
    %125 = vmatprep.subr.bf16.mxu0 0
    %126 = vmatpush1.bf16.msra.mxu0 0
    %127 = vmatprep.subr.bf16.mxu0 0
    %128 = vmatpush1.bf16.msra.mxu0 0
    %129 = vmatprep.subr.bf16.mxu0 0
    %130 = vmatpush1.bf16.msra.mxu0 0
    %131 = vmatprep.mubr.bf16.mxu0 0
    %132 = vmatmul.mubr.bf16.gmra.mrb[0].mxu0 %v94
    %v133 = vpop.f32.mrb[0].mxu0
    %v134 = vadd.f32 0.0, %v133
    %v135 = vpop.f32.mrb[0].mxu0
    %v136 = vpop.f32.mrb[0].mxu0
    %v137 = vadd.f32 0.0, %v136
    %v138 = vpop.f32.mrb[0].mxu0
    %139 = vmatprep.mubr.bf16.mxu0 0
    %140 = vmatmul.mubr.bf16.gmra.mrb[0].mxu0 %v97
    %v141 = vpop.f32.mrb[0].mxu0
    %v142 = vadd.f32 0.0, %v141
    %v143 = vpop.f32.mrb[0].mxu0
    %v144 = vpop.f32.mrb[0].mxu0
    %v145 = vadd.f32 0.0, %v144
    %v146 = vpop.f32.mrb[0].mxu0
    %147 = vdwg.mxu0
    %v148 = vmul.f32 %v134, 5.656854
    %v149 = vmul.f32 %v137, 5.656854
    %v150 = vmul.f32 %v142, 5.656854
    %v151 = vmul.f32 %v145, 5.656854
    %v152 = vld [vmem:[%s1] sm:$0xff]
    %v153 = vld [vmem:[%s1 + $0x8] sm:$0xff]
    %v154 = vld [vmem:[%s1 + $0x10] sm:$0xff]
    %v155 = vld [vmem:[%s1 + $0x18] sm:$0xff]
    %v156 = vadd.f32 %v148, %v152
    %v157 = vadd.f32 %v149, %v153
    %v158 = vadd.f32 %v150, %v154
    %v159 = vadd.f32 %v151, %v155
    %v160 = vld [vmem:[#allocation2 + $0x20] sm:$0xf]
    %v161 = vld [vmem:[#allocation2 + $0x24] sm:$0xf]
    %v162 = vld [vmem:[#allocation2 + $0x28] sm:$0xf]
    %v163 = vld [vmem:[#allocation2 + $0x2c] sm:$0xf]
    %v164 = vpack.c.bf16 %v157, %v156
    %v165 = vld [vmem:[#allocation4] sm:$0x1]
    %v166 = vlaneseq
    %v167 = vshrl.u32 %v166, 7
    %v168 = vsub.s32 0, %v167
    %v169 = vrot.slane %v165, %v168
    %v174 = vunpack.c.l.b16 %v160
    %v175 = vunpack.c.l.b16 %v161
    %v176 = vunpack.c.l.b16 %v162
    %v177 = vunpack.c.l.b16 %v163
    %v178 = vpack.c.b16 %v175, %v174
    %v179 = vpack.c.b16 %v177, %v176
    %vm182 = vcmask 261120
    %v184 = vsel %vm182, %v164, 0
    %186 = vmatprep.subr.bf16.mxu0 0
    %187 = vmatpush1.bf16.msra.mxu0 %v178
    %188 = vmatprep.subr.bf16.mxu0 0
    %189 = vmatpush1.bf16.msra.mxu0 %v179
    %190 = vmatprep.subr.bf16.mxu0 0
    %191 = vmatpush1.bf16.msra.mxu0 0
    %192 = vmatprep.subr.bf16.mxu0 0
    %193 = vmatpush1.bf16.msra.mxu0 0
    %194 = vmatprep.subr.bf16.mxu0 0
    %195 = vmatpush1.bf16.msra.mxu0 0
    %196 = vmatprep.subr.bf16.mxu0 0
    %197 = vmatpush1.bf16.msra.mxu0 0
    %198 = vmatprep.subr.bf16.mxu0 0
    %199 = vmatpush1.bf16.msra.mxu0 0
    %200 = vmatprep.subr.bf16.mxu0 0
    %201 = vmatpush1.bf16.msra.mxu0 0
    %202 = vmatprep.subr.bf16.mxu0 0
    %203 = vmatpush1.bf16.msra.mxu0 0
    %204 = vmatprep.subr.bf16.mxu0 0
    %205 = vmatpush1.bf16.msra.mxu0 0
    %206 = vmatprep.subr.bf16.mxu0 0
    %207 = vmatpush1.bf16.msra.mxu0 0
    %208 = vmatprep.subr.bf16.mxu0 0
    %209 = vmatpush1.bf16.msra.mxu0 0
    %210 = vmatprep.subr.bf16.mxu0 0
    %211 = vmatpush1.bf16.msra.mxu0 0
    %212 = vmatprep.subr.bf16.mxu0 0
    %213 = vmatpush1.bf16.msra.mxu0 0
    %214 = vmatprep.subr.bf16.mxu0 0
    %215 = vmatpush1.bf16.msra.mxu0 0
    %216 = vmatprep.subr.bf16.mxu0 0
    %217 = vmatpush1.bf16.msra.mxu0 0
    %218 = vmatprep.mubr.bf16.mxu0 0
    %219 = vmatmul.mubr.bf16.gmra.mrb[0].mxu0 %v184
    %v220 = vpop.f32.mrb[0].mxu0
    %v221 = vadd.f32 %v169, %v220
    %v222 = vpop.f32.mrb[0].mxu0
    %v223 = vpop.f32.mrb[0].mxu0
    %v224 = vadd.f32 %v169, %v223
    %v225 = vpop.f32.mrb[0].mxu0
    %226 = vdwg.mxu0
    %v227 = vmul.f32 %v221, 0.25
    %v228 = vmul.f32 %v224, 0.25
    %v229 = vpack.c.bf16 %v227, %v227
    %v230 = vpack.c.bf16 %v228, %v228
    %v231 = vpack.c.bf16 %v221, %v221
    %v232 = vpack.c.bf16 %v224, %v224
    %234 = vrot.lane.b32.xlu0 %v231, 96
    %v235 = vpop.permute.xlu0 %234
    %vm236 = vcmask 130048
    %v238 = vsel %vm236, %v229, 0
    %v241 = vsel %vm236, %v235, 0
    %243 = vmatprep.subr.bf16.mxu0 0
    %244 = vmatpush1.bf16.xpose.msra.mxu0 %v241
    %245 = vmatprep.subr.bf16.mxu0 0
    %246 = vmatpush1.bf16.xpose.msra.mxu0 0
    %247 = vmatprep.subr.bf16.mxu0 0
    %248 = vmatpush1.bf16.xpose.msra.mxu0 0
    %249 = vmatprep.subr.bf16.mxu0 0
    %250 = vmatpush1.bf16.xpose.msra.mxu0 0
    %251 = vmatprep.subr.bf16.mxu0 0
    %252 = vmatpush1.bf16.xpose.msra.mxu0 0
    %253 = vmatprep.subr.bf16.mxu0 0
    %254 = vmatpush1.bf16.xpose.msra.mxu0 0
    %255 = vmatprep.subr.bf16.mxu0 0
    %256 = vmatpush1.bf16.xpose.msra.mxu0 0
    %257 = vmatprep.subr.bf16.mxu0 0
    %258 = vmatpush1.bf16.xpose.msra.mxu0 0
    %259 = vmatprep.subr.bf16.mxu0 0
    %260 = vmatpush1.bf16.xpose.msra.mxu0 0
    %261 = vmatprep.subr.bf16.mxu0 0
    %262 = vmatpush1.bf16.xpose.msra.mxu0 0
    %263 = vmatprep.subr.bf16.mxu0 0
    %264 = vmatpush1.bf16.xpose.msra.mxu0 0
    %265 = vmatprep.subr.bf16.mxu0 0
    %266 = vmatpush1.bf16.xpose.msra.mxu0 0
    %267 = vmatprep.subr.bf16.mxu0 0
    %268 = vmatpush1.bf16.xpose.msra.mxu0 0
    %269 = vmatprep.subr.bf16.mxu0 0
    %270 = vmatpush1.bf16.xpose.msra.mxu0 0
    %271 = vmatprep.subr.bf16.mxu0 0
    %272 = vmatpush1.bf16.xpose.msra.mxu0 0
    %273 = vmatprep.subr.bf16.mxu0 0
    %274 = vmatpush1.bf16.xpose.msra.mxu0 0
    %275 = vmatprep.mubr.bf16.mxu0 0
    %276 = vmatmul.mubr.bf16.gmra.mrb[0].mxu0 %v238
    %v277 = vpop.f32.mrb[0].mxu0
    %v278 = vadd.f32 0.0, %v277
    %v279 = vpop.f32.mrb[0].mxu0
    %v280 = vpop.f32.mrb[0].mxu0
    %v281 = vpop.f32.mrb[0].mxu0
    %282 = vdwg.mxu0
    %284 = vrot.lane.b32.xlu0 %v232, 96
    %v285 = vpop.permute.xlu0 %284
    %v287 = vsel %vm236, %v230, 0
    %v290 = vsel %vm236, %v285, 0
    %292 = vmatprep.subr.bf16.mxu0 0
    %293 = vmatpush1.bf16.xpose.msra.mxu0 %v290
    %294 = vmatprep.subr.bf16.mxu0 0
    %295 = vmatpush1.bf16.xpose.msra.mxu0 0
    %296 = vmatprep.subr.bf16.mxu0 0
    %297 = vmatpush1.bf16.xpose.msra.mxu0 0
    %298 = vmatprep.subr.bf16.mxu0 0
    %299 = vmatpush1.bf16.xpose.msra.mxu0 0
    %300 = vmatprep.subr.bf16.mxu0 0
    %301 = vmatpush1.bf16.xpose.msra.mxu0 0
    %302 = vmatprep.subr.bf16.mxu0 0
    %303 = vmatpush1.bf16.xpose.msra.mxu0 0
    %304 = vmatprep.subr.bf16.mxu0 0
    %305 = vmatpush1.bf16.xpose.msra.mxu0 0
    %306 = vmatprep.subr.bf16.mxu0 0
    %307 = vmatpush1.bf16.xpose.msra.mxu0 0
    %308 = vmatprep.subr.bf16.mxu0 0
    %309 = vmatpush1.bf16.xpose.msra.mxu0 0
    %310 = vmatprep.subr.bf16.mxu0 0
    %311 = vmatpush1.bf16.xpose.msra.mxu0 0
    %312 = vmatprep.subr.bf16.mxu0 0
    %313 = vmatpush1.bf16.xpose.msra.mxu0 0
    %314 = vmatprep.subr.bf16.mxu0 0
    %315 = vmatpush1.bf16.xpose.msra.mxu0 0
    %316 = vmatprep.subr.bf16.mxu0 0
    %317 = vmatpush1.bf16.xpose.msra.mxu0 0
    %318 = vmatprep.subr.bf16.mxu0 0
    %319 = vmatpush1.bf16.xpose.msra.mxu0 0
    %320 = vmatprep.subr.bf16.mxu0 0
    %321 = vmatpush1.bf16.xpose.msra.mxu0 0
    %322 = vmatprep.subr.bf16.mxu0 0
    %323 = vmatpush1.bf16.xpose.msra.mxu0 0
    %324 = vmatprep.mubr.bf16.mxu0 0
    %325 = vmatmul.mubr.bf16.gmra.mrb[0].mxu0 %v287
    %v326 = vpop.f32.mrb[0].mxu0
    %v327 = vadd.f32 0.0, %v326
    %v328 = vpop.f32.mrb[0].mxu0
    %v329 = vpop.f32.mrb[0].mxu0
    %v330 = vpop.f32.mrb[0].mxu0
    %331 = vdwg.mxu0
    %vm332 = vcmask 64512
    %v333 = vsel %vm332, %v278, -inf
    %334 = vmax.xlane.f32.xlu0 %v333
    %v335 = vpop.xlane.xlu0 %334
    %v336 = vsel %vm332, %v327, -inf
    %337 = vmax.xlane.f32.xlu0 %v336
    %v338 = vpop.xlane.xlu0 %337
    %v339 = vsub.f32 %v278, %v335
    %v340 = vsub.f32 %v327, %v338
    %v341 = vmul.f32 %v339, 1.442695
    %v342 = vpow.pop %v341
    %v343 = vmul.f32 %v340, 1.442695
    %v344 = vpow.pop %v343
    %v345 = vsel %vm332, %v342, 0.0
    %346 = vadd.xlane.f32.xlu0 %v345
    %v347 = vpop.xlane.xlu0 %346
    %v348 = vsel %vm332, %v344, 0.0
    %349 = vadd.xlane.f32.xlu0 %v348
    %v350 = vpop.xlane.xlu0 %349
    %v351 = vrcp.pop %v347
    %v352 = vrcp.pop %v350
    %v353 = vmul.f32 %v342, %v351
    %v354 = vmul.f32 %v344, %v352
    %v355 = vpack.c.bf16 %v353, %v353
    %v356 = vpack.c.bf16 %v354, %v354
    %357 = vrot.lane.b32.xlu0 %v231, 64
    %v358 = vpop.permute.xlu0 %357
    %v360 = vsel %vm332, %v355, 0
    %vm362 = vcmask 1043456
    %v364 = vsel %vm362, %v358, 0
    %366 = vmatprep.subr.bf16.mxu0 0
    %367 = vmatpush1.bf16.msra.mxu0 %v364
    %368 = vmatprep.subr.bf16.mxu0 0
    %369 = vmatpush1.bf16.msra.mxu0 0
    %370 = vmatprep.subr.bf16.mxu0 0
    %371 = vmatpush1.bf16.msra.mxu0 0
    %372 = vmatprep.subr.bf16.mxu0 0
    %373 = vmatpush1.bf16.msra.mxu0 0
    %374 = vmatprep.subr.bf16.mxu0 0
    %375 = vmatpush1.bf16.msra.mxu0 0
    %376 = vmatprep.subr.bf16.mxu0 0
    %377 = vmatpush1.bf16.msra.mxu0 0
    %378 = vmatprep.subr.bf16.mxu0 0
    %379 = vmatpush1.bf16.msra.mxu0 0
    %380 = vmatprep.subr.bf16.mxu0 0
    %381 = vmatpush1.bf16.msra.mxu0 0
    %382 = vmatprep.subr.bf16.mxu0 0
    %383 = vmatpush1.bf16.msra.mxu0 0
    %384 = vmatprep.subr.bf16.mxu0 0
    %385 = vmatpush1.bf16.msra.mxu0 0
    %386 = vmatprep.subr.bf16.mxu0 0
    %387 = vmatpush1.bf16.msra.mxu0 0
    %388 = vmatprep.subr.bf16.mxu0 0
    %389 = vmatpush1.bf16.msra.mxu0 0
    %390 = vmatprep.subr.bf16.mxu0 0
    %391 = vmatpush1.bf16.msra.mxu0 0
    %392 = vmatprep.subr.bf16.mxu0 0
    %393 = vmatpush1.bf16.msra.mxu0 0
    %394 = vmatprep.subr.bf16.mxu0 0
    %395 = vmatpush1.bf16.msra.mxu0 0
    %396 = vmatprep.subr.bf16.mxu0 0
    %397 = vmatpush1.bf16.msra.mxu0 0
    %398 = vmatprep.mubr.bf16.mxu0 0
    %399 = vmatmul.mubr.bf16.gmra.mrb[0].mxu0 %v360
    %v400 = vpop.f32.mrb[0].mxu0
    %v401 = vadd.f32 0.0, %v400
    %v402 = vpop.f32.mrb[0].mxu0
    %v403 = vpop.f32.mrb[0].mxu0
    %v404 = vpop.f32.mrb[0].mxu0
    %405 = vdwg.mxu0
    %406 = vrot.lane.b32.xlu0 %v232, 64
    %v407 = vpop.permute.xlu0 %406
    %v409 = vsel %vm332, %v356, 0
    %v412 = vsel %vm362, %v407, 0
    %414 = vmatprep.subr.bf16.mxu0 0
    %415 = vmatpush1.bf16.msra.mxu0 %v412
    %416 = vmatprep.subr.bf16.mxu0 0
    %417 = vmatpush1.bf16.msra.mxu0 0
    %418 = vmatprep.subr.bf16.mxu0 0
    %419 = vmatpush1.bf16.msra.mxu0 0
    %420 = vmatprep.subr.bf16.mxu0 0
    %421 = vmatpush1.bf16.msra.mxu0 0
    %422 = vmatprep.subr.bf16.mxu0 0
    %423 = vmatpush1.bf16.msra.mxu0 0
    %424 = vmatprep.subr.bf16.mxu0 0
    %425 = vmatpush1.bf16.msra.mxu0 0
    %426 = vmatprep.subr.bf16.mxu0 0
    %427 = vmatpush1.bf16.msra.mxu0 0
    %428 = vmatprep.subr.bf16.mxu0 0
    %429 = vmatpush1.bf16.msra.mxu0 0
    %430 = vmatprep.subr.bf16.mxu0 0
    %431 = vmatpush1.bf16.msra.mxu0 0
    %432 = vmatprep.subr.bf16.mxu0 0
    %433 = vmatpush1.bf16.msra.mxu0 0
    %434 = vmatprep.subr.bf16.mxu0 0
    %435 = vmatpush1.bf16.msra.mxu0 0
    %436 = vmatprep.subr.bf16.mxu0 0
    %437 = vmatpush1.bf16.msra.mxu0 0
    %438 = vmatprep.subr.bf16.mxu0 0
    %439 = vmatpush1.bf16.msra.mxu0 0
    %440 = vmatprep.subr.bf16.mxu0 0
    %441 = vmatpush1.bf16.msra.mxu0 0
    %442 = vmatprep.subr.bf16.mxu0 0
    %443 = vmatpush1.bf16.msra.mxu0 0
    %444 = vmatprep.subr.bf16.mxu0 0
    %445 = vmatpush1.bf16.msra.mxu0 0
    %446 = vmatprep.mubr.bf16.mxu0 0
    %447 = vmatmul.mubr.bf16.gmra.mrb[0].mxu0 %v409
    %v448 = vpop.f32.mrb[0].mxu0
    %v449 = vadd.f32 0.0, %v448
    %v450 = vpop.f32.mrb[0].mxu0
    %v451 = vpop.f32.mrb[0].mxu0
    %v452 = vpop.f32.mrb[0].mxu0
    %453 = vdwg.mxu0
    %455 = vrot.lane.b32.xlu0 %v229, 112
    %v456 = vpop.permute.xlu0 %455
    %457 = vrot.lane.b32.xlu0 %v231, 80
    %v458 = vpop.permute.xlu0 %457
    %v460 = vsel %vm236, %v456, 0
    %v463 = vsel %vm236, %v458, 0
    %465 = vmatprep.subr.bf16.mxu0 0
    %466 = vmatpush1.bf16.xpose.msra.mxu0 %v463
    %467 = vmatprep.subr.bf16.mxu0 0
    %468 = vmatpush1.bf16.xpose.msra.mxu0 0
    %469 = vmatprep.subr.bf16.mxu0 0
    %470 = vmatpush1.bf16.xpose.msra.mxu0 0
    %471 = vmatprep.subr.bf16.mxu0 0
    %472 = vmatpush1.bf16.xpose.msra.mxu0 0
    %473 = vmatprep.subr.bf16.mxu0 0
    %474 = vmatpush1.bf16.xpose.msra.mxu0 0
    %475 = vmatprep.subr.bf16.mxu0 0
    %476 = vmatpush1.bf16.xpose.msra.mxu0 0
    %477 = vmatprep.subr.bf16.mxu0 0
    %478 = vmatpush1.bf16.xpose.msra.mxu0 0
    %479 = vmatprep.subr.bf16.mxu0 0
    %480 = vmatpush1.bf16.xpose.msra.mxu0 0
    %481 = vmatprep.subr.bf16.mxu0 0
    %482 = vmatpush1.bf16.xpose.msra.mxu0 0
    %483 = vmatprep.subr.bf16.mxu0 0
    %484 = vmatpush1.bf16.xpose.msra.mxu0 0
    %485 = vmatprep.subr.bf16.mxu0 0
    %486 = vmatpush1.bf16.xpose.msra.mxu0 0
    %487 = vmatprep.subr.bf16.mxu0 0
    %488 = vmatpush1.bf16.xpose.msra.mxu0 0
    %489 = vmatprep.subr.bf16.mxu0 0
    %490 = vmatpush1.bf16.xpose.msra.mxu0 0
    %491 = vmatprep.subr.bf16.mxu0 0
    %492 = vmatpush1.bf16.xpose.msra.mxu0 0
    %493 = vmatprep.subr.bf16.mxu0 0
    %494 = vmatpush1.bf16.xpose.msra.mxu0 0
    %495 = vmatprep.subr.bf16.mxu0 0
    %496 = vmatpush1.bf16.xpose.msra.mxu0 0
    %497 = vmatprep.mubr.bf16.mxu0 0
    %498 = vmatmul.mubr.bf16.gmra.mrb[0].mxu0 %v460
    %v499 = vpop.f32.mrb[0].mxu0
    %v500 = vadd.f32 0.0, %v499
    %v501 = vpop.f32.mrb[0].mxu0
    %v502 = vpop.f32.mrb[0].mxu0
    %v503 = vpop.f32.mrb[0].mxu0
    %504 = vdwg.mxu0
    %506 = vrot.lane.b32.xlu0 %v230, 112
    %v507 = vpop.permute.xlu0 %506
    %508 = vrot.lane.b32.xlu0 %v232, 80
    %v509 = vpop.permute.xlu0 %508
    %v511 = vsel %vm236, %v507, 0
    %v514 = vsel %vm236, %v509, 0
    %516 = vmatprep.subr.bf16.mxu0 0
    %517 = vmatpush1.bf16.xpose.msra.mxu0 %v514
    %518 = vmatprep.subr.bf16.mxu0 0
    %519 = vmatpush1.bf16.xpose.msra.mxu0 0
    %520 = vmatprep.subr.bf16.mxu0 0
    %521 = vmatpush1.bf16.xpose.msra.mxu0 0
    %522 = vmatprep.subr.bf16.mxu0 0
    %523 = vmatpush1.bf16.xpose.msra.mxu0 0
    %524 = vmatprep.subr.bf16.mxu0 0
    %525 = vmatpush1.bf16.xpose.msra.mxu0 0
    %526 = vmatprep.subr.bf16.mxu0 0
    %527 = vmatpush1.bf16.xpose.msra.mxu0 0
    %528 = vmatprep.subr.bf16.mxu0 0
    %529 = vmatpush1.bf16.xpose.msra.mxu0 0
    %530 = vmatprep.subr.bf16.mxu0 0
    %531 = vmatpush1.bf16.xpose.msra.mxu0 0
    %532 = vmatprep.subr.bf16.mxu0 0
    %533 = vmatpush1.bf16.xpose.msra.mxu0 0
    %534 = vmatprep.subr.bf16.mxu0 0
    %535 = vmatpush1.bf16.xpose.msra.mxu0 0
    %536 = vmatprep.subr.bf16.mxu0 0
    %537 = vmatpush1.bf16.xpose.msra.mxu0 0
    %538 = vmatprep.subr.bf16.mxu0 0
    %539 = vmatpush1.bf16.xpose.msra.mxu0 0
    %540 = vmatprep.subr.bf16.mxu0 0
    %541 = vmatpush1.bf16.xpose.msra.mxu0 0
    %542 = vmatprep.subr.bf16.mxu0 0
    %543 = vmatpush1.bf16.xpose.msra.mxu0 0
    %544 = vmatprep.subr.bf16.mxu0 0
    %545 = vmatpush1.bf16.xpose.msra.mxu0 0
    %546 = vmatprep.subr.bf16.mxu0 0
    %547 = vmatpush1.bf16.xpose.msra.mxu0 0
    %548 = vmatprep.mubr.bf16.mxu0 0
    %549 = vmatmul.mubr.bf16.gmra.mrb[0].mxu0 %v511
    %v550 = vpop.f32.mrb[0].mxu0
    %v551 = vadd.f32 0.0, %v550
    %v552 = vpop.f32.mrb[0].mxu0
    %v553 = vpop.f32.mrb[0].mxu0
    %v554 = vpop.f32.mrb[0].mxu0
    %555 = vdwg.mxu0
    %v556 = vsel %vm332, %v500, -inf
    %557 = vmax.xlane.f32.xlu0 %v556
    %v558 = vpop.xlane.xlu0 %557
    %v559 = vsel %vm332, %v551, -inf
    %560 = vmax.xlane.f32.xlu0 %v559
    %v561 = vpop.xlane.xlu0 %560
    %v562 = vsub.f32 %v500, %v558
    %v563 = vsub.f32 %v551, %v561
    %v564 = vmul.f32 %v562, 1.442695
    %v565 = vpow.pop %v564
    %v566 = vmul.f32 %v563, 1.442695
    %v567 = vpow.pop %v566
    %v568 = vsel %vm332, %v565, 0.0
    %569 = vadd.xlane.f32.xlu0 %v568
    %v570 = vpop.xlane.xlu0 %569
    %v571 = vsel %vm332, %v567, 0.0
    %572 = vadd.xlane.f32.xlu0 %v571
    %v573 = vpop.xlane.xlu0 %572
    %v574 = vrcp.pop %v570
    %v575 = vrcp.pop %v573
    %v576 = vmul.f32 %v565, %v574
    %v577 = vmul.f32 %v567, %v575
    %v578 = vpack.c.bf16 %v576, %v576
    %v579 = vpack.c.bf16 %v577, %v577
    %580 = vrot.lane.b32.xlu0 %v231, 48
    %v581 = vpop.permute.xlu0 %580
    %v583 = vsel %vm332, %v578, 0
    %v586 = vsel %vm362, %v581, 0
    %588 = vmatprep.subr.bf16.mxu0 0
    %589 = vmatpush1.bf16.msra.mxu0 %v586
    %590 = vmatprep.subr.bf16.mxu0 0
    %591 = vmatpush1.bf16.msra.mxu0 0
    %592 = vmatprep.subr.bf16.mxu0 0
    %593 = vmatpush1.bf16.msra.mxu0 0
    %594 = vmatprep.subr.bf16.mxu0 0
    %595 = vmatpush1.bf16.msra.mxu0 0
    %596 = vmatprep.subr.bf16.mxu0 0
    %597 = vmatpush1.bf16.msra.mxu0 0
    %598 = vmatprep.subr.bf16.mxu0 0
    %599 = vmatpush1.bf16.msra.mxu0 0
    %600 = vmatprep.subr.bf16.mxu0 0
    %601 = vmatpush1.bf16.msra.mxu0 0
    %602 = vmatprep.subr.bf16.mxu0 0
    %603 = vmatpush1.bf16.msra.mxu0 0
    %604 = vmatprep.subr.bf16.mxu0 0
    %605 = vmatpush1.bf16.msra.mxu0 0
    %606 = vmatprep.subr.bf16.mxu0 0
    %607 = vmatpush1.bf16.msra.mxu0 0
    %608 = vmatprep.subr.bf16.mxu0 0
    %609 = vmatpush1.bf16.msra.mxu0 0
    %610 = vmatprep.subr.bf16.mxu0 0
    %611 = vmatpush1.bf16.msra.mxu0 0
    %612 = vmatprep.subr.bf16.mxu0 0
    %613 = vmatpush1.bf16.msra.mxu0 0
    %614 = vmatprep.subr.bf16.mxu0 0
    %615 = vmatpush1.bf16.msra.mxu0 0
    %616 = vmatprep.subr.bf16.mxu0 0
    %617 = vmatpush1.bf16.msra.mxu0 0
    %618 = vmatprep.subr.bf16.mxu0 0
    %619 = vmatpush1.bf16.msra.mxu0 0
    %620 = vmatprep.mubr.bf16.mxu0 0
    %621 = vmatmul.mubr.bf16.gmra.mrb[0].mxu0 %v583
    %v622 = vpop.f32.mrb[0].mxu0
    %v623 = vadd.f32 0.0, %v622
    %v624 = vpop.f32.mrb[0].mxu0
    %v625 = vpop.f32.mrb[0].mxu0
    %v626 = vpop.f32.mrb[0].mxu0
    %627 = vdwg.mxu0
    %628 = vrot.lane.b32.xlu0 %v232, 48
    %v629 = vpop.permute.xlu0 %628
    %v631 = vsel %vm332, %v579, 0
    %v634 = vsel %vm362, %v629, 0
    %636 = vmatprep.subr.bf16.mxu0 0
    %637 = vmatpush1.bf16.msra.mxu0 %v634
    %638 = vmatprep.subr.bf16.mxu0 0
    %639 = vmatpush1.bf16.msra.mxu0 0
    %640 = vmatprep.subr.bf16.mxu0 0
    %641 = vmatpush1.bf16.msra.mxu0 0
    %642 = vmatprep.subr.bf16.mxu0 0
    %643 = vmatpush1.bf16.msra.mxu0 0
    %644 = vmatprep.subr.bf16.mxu0 0
    %645 = vmatpush1.bf16.msra.mxu0 0
    %646 = vmatprep.subr.bf16.mxu0 0
    %647 = vmatpush1.bf16.msra.mxu0 0
    %648 = vmatprep.subr.bf16.mxu0 0
    %649 = vmatpush1.bf16.msra.mxu0 0
    %650 = vmatprep.subr.bf16.mxu0 0
    %651 = vmatpush1.bf16.msra.mxu0 0
    %652 = vmatprep.subr.bf16.mxu0 0
    %653 = vmatpush1.bf16.msra.mxu0 0
    %654 = vmatprep.subr.bf16.mxu0 0
    %655 = vmatpush1.bf16.msra.mxu0 0
    %656 = vmatprep.subr.bf16.mxu0 0
    %657 = vmatpush1.bf16.msra.mxu0 0
    %658 = vmatprep.subr.bf16.mxu0 0
    %659 = vmatpush1.bf16.msra.mxu0 0
    %660 = vmatprep.subr.bf16.mxu0 0
    %661 = vmatpush1.bf16.msra.mxu0 0
    %662 = vmatprep.subr.bf16.mxu0 0
    %663 = vmatpush1.bf16.msra.mxu0 0
    %664 = vmatprep.subr.bf16.mxu0 0
    %665 = vmatpush1.bf16.msra.mxu0 0
    %666 = vmatprep.subr.bf16.mxu0 0
    %667 = vmatpush1.bf16.msra.mxu0 0
    %668 = vmatprep.mubr.bf16.mxu0 0
    %669 = vmatmul.mubr.bf16.gmra.mrb[0].mxu0 %v631
    %v670 = vpop.f32.mrb[0].mxu0
    %v671 = vadd.f32 0.0, %v670
    %v672 = vpop.f32.mrb[0].mxu0
    %v673 = vpop.f32.mrb[0].mxu0
    %v674 = vpop.f32.mrb[0].mxu0
    %675 = vdwg.mxu0
    %678 = vrot.lane.b32.xlu0 %v623, 16
    %v679 = vpop.permute.xlu0 %678
    %680 = vrot.lane.b32.xlu0 %v671, 16
    %v681 = vpop.permute.xlu0 %680
    %v684 = vsel %vm236, %v401, %v679
    %v685 = vsel %vm236, %v449, %v681
    %v686 = vld [vmem:[#allocation2 + $0x30] sm:$0xf]
    %v687 = vld [vmem:[#allocation2 + $0x34] sm:$0xf]
    %v688 = vld [vmem:[#allocation2 + $0x38] sm:$0xf]
    %v689 = vld [vmem:[#allocation2 + $0x3c] sm:$0xf]
    %v690 = vpack.c.bf16 %v685, %v684
    %v691 = vld [vmem:[#allocation4 + $0x1] sm:$0x1]
    %v692 = vlaneseq
    %v693 = vshrl.u32 %v692, 7
    %v694 = vsub.s32 0, %v693
    %v695 = vrot.slane %v691, %v694
    %v700 = vunpack.c.l.b16 %v686
    %v701 = vunpack.c.l.b16 %v687
    %v702 = vunpack.c.l.b16 %v688
    %v703 = vunpack.c.l.b16 %v689
    %v704 = vpack.c.b16 %v701, %v700
    %v705 = vpack.c.b16 %v703, %v702
    %v709 = vsel %vm182, %v690, 0
    %711 = vmatprep.subr.bf16.mxu0 0
    %712 = vmatpush1.bf16.msra.mxu0 %v704
    %713 = vmatprep.subr.bf16.mxu0 0
    %714 = vmatpush1.bf16.msra.mxu0 %v705
    %715 = vmatprep.subr.bf16.mxu0 0
    %716 = vmatpush1.bf16.msra.mxu0 0
    %717 = vmatprep.subr.bf16.mxu0 0
    %718 = vmatpush1.bf16.msra.mxu0 0
    %719 = vmatprep.subr.bf16.mxu0 0
    %720 = vmatpush1.bf16.msra.mxu0 0
    %721 = vmatprep.subr.bf16.mxu0 0
    %722 = vmatpush1.bf16.msra.mxu0 0
    %723 = vmatprep.subr.bf16.mxu0 0
    %724 = vmatpush1.bf16.msra.mxu0 0
    %725 = vmatprep.subr.bf16.mxu0 0
    %726 = vmatpush1.bf16.msra.mxu0 0
    %727 = vmatprep.subr.bf16.mxu0 0
    %728 = vmatpush1.bf16.msra.mxu0 0
    %729 = vmatprep.subr.bf16.mxu0 0
    %730 = vmatpush1.bf16.msra.mxu0 0
    %731 = vmatprep.subr.bf16.mxu0 0
    %732 = vmatpush1.bf16.msra.mxu0 0
    %733 = vmatprep.subr.bf16.mxu0 0
    %734 = vmatpush1.bf16.msra.mxu0 0
    %735 = vmatprep.subr.bf16.mxu0 0
    %736 = vmatpush1.bf16.msra.mxu0 0
    %737 = vmatprep.subr.bf16.mxu0 0
    %738 = vmatpush1.bf16.msra.mxu0 0
    %739 = vmatprep.subr.bf16.mxu0 0
    %740 = vmatpush1.bf16.msra.mxu0 0
    %741 = vmatprep.subr.bf16.mxu0 0
    %742 = vmatpush1.bf16.msra.mxu0 0
    %743 = vmatprep.mubr.bf16.mxu0 0
    %744 = vmatmul.mubr.bf16.gmra.mrb[0].mxu0 %v709
    %v745 = vpop.f32.mrb[0].mxu0
    %v746 = vadd.f32 %v695, %v745
    %v747 = vpop.f32.mrb[0].mxu0
    %v748 = vpop.f32.mrb[0].mxu0
    %v749 = vadd.f32 %v695, %v748
    %v750 = vpop.f32.mrb[0].mxu0
    %751 = vdwg.mxu0
    %v752 = vadd.f32 %v156, %v746
    %v753 = vadd.f32 %v157, %v749
    %v754 = vsel %vm182, %v752, 0.0
    %755 = vadd.xlane.f32.xlu0 %v754
    %v756 = vpop.xlane.xlu0 %755
    %v757 = vsel %vm182, %v753, 0.0
    %758 = vadd.xlane.f32.xlu0 %v757
    %v759 = vpop.xlane.xlu0 %758
    %v760 = vrcp.pop 32.0
    %v761 = vmul.f32 %v756, %v760
    %v762 = vmul.f32 %v759, %v760
    %v763 = vsub.f32 %v752, %v761
    %v764 = vsub.f32 %v753, %v762
    %v765 = vmul.f32 %v763, %v763
    %v766 = vmul.f32 %v764, %v764
    %v767 = vsel %vm182, %v765, 0.0
    %768 = vadd.xlane.f32.xlu0 %v767
    %v769 = vpop.xlane.xlu0 %768
    %v770 = vsel %vm182, %v766, 0.0
    %771 = vadd.xlane.f32.xlu0 %v770
    %v772 = vpop.xlane.xlu0 %771
    %v773 = vmul.f32 %v769, %v760
    %v774 = vmul.f32 %v772, %v760
    %v775 = vadd.f32 %v773, 1e-05
    %v776 = vadd.f32 %v774, 1e-05
    %v777 = vrsqrt.pop %v775
    %v778 = vrsqrt.pop %v776
    %v779 = vmul.f32 %v763, %v777
    %v780 = vmul.f32 %v764, %v778
    %v781 = vld [vmem:[#allocation4 + $0x2] sm:$0x1]
    %v782 = vlaneseq
    %v783 = vshrl.u32 %v782, 7
    %v784 = vsub.s32 0, %v783
    %v785 = vrot.slane %v781, %v784
    %v786 = vmul.f32 %v779, %v785
    %v787 = vmul.f32 %v780, %v785
    %v788 = vld [vmem:[#allocation4 + $0x3] sm:$0x1]
    %v789 = vlaneseq
    %v790 = vshrl.u32 %v789, 7
    %v791 = vsub.s32 0, %v790
    %v792 = vrot.slane %v788, %v791
    %v793 = vadd.f32 %v786, %v792
    %v794 = vadd.f32 %v787, %v792
    %v795 = vld [vmem:[#allocation2 + $0x40] sm:$0xf]
    %v796 = vld [vmem:[#allocation2 + $0x44] sm:$0xf]
    %v797 = vld [vmem:[#allocation2 + $0x48] sm:$0xf]
    %v798 = vld [vmem:[#allocation2 + $0x4c] sm:$0xf]
    %v799 = vpack.c.bf16 %v794, %v793
    %v800 = vld [vmem:[#allocation4 + $0x4] sm:$0x1]
    %v801 = vlaneseq
    %v802 = vshrl.u32 %v801, 7
    %v803 = vsub.s32 0, %v802
    %v804 = vrot.slane %v800, %v803
    %v809 = vunpack.c.l.b16 %v795
    %v810 = vunpack.c.l.b16 %v796
    %v811 = vunpack.c.l.b16 %v797
    %v812 = vunpack.c.l.b16 %v798
    %v813 = vpack.c.b16 %v810, %v809
    %v814 = vpack.c.b16 %v812, %v811
    %v818 = vsel %vm182, %v799, 0
    %820 = vmatprep.subr.bf16.mxu0 0
    %821 = vmatpush1.bf16.msra.mxu0 %v813
    %822 = vmatprep.subr.bf16.mxu0 0
    %823 = vmatpush1.bf16.msra.mxu0 %v814
    %824 = vmatprep.subr.bf16.mxu0 0
    %825 = vmatpush1.bf16.msra.mxu0 0
    %826 = vmatprep.subr.bf16.mxu0 0
    %827 = vmatpush1.bf16.msra.mxu0 0
    %828 = vmatprep.subr.bf16.mxu0 0
    %829 = vmatpush1.bf16.msra.mxu0 0
    %830 = vmatprep.subr.bf16.mxu0 0
    %831 = vmatpush1.bf16.msra.mxu0 0
    %832 = vmatprep.subr.bf16.mxu0 0
    %833 = vmatpush1.bf16.msra.mxu0 0
    %834 = vmatprep.subr.bf16.mxu0 0
    %835 = vmatpush1.bf16.msra.mxu0 0
    %836 = vmatprep.subr.bf16.mxu0 0
    %837 = vmatpush1.bf16.msra.mxu0 0
    %838 = vmatprep.subr.bf16.mxu0 0
    %839 = vmatpush1.bf16.msra.mxu0 0
    %840 = vmatprep.subr.bf16.mxu0 0
    %841 = vmatpush1.bf16.msra.mxu0 0
    %842 = vmatprep.subr.bf16.mxu0 0
    %843 = vmatpush1.bf16.msra.mxu0 0
    %844 = vmatprep.subr.bf16.mxu0 0
    %845 = vmatpush1.bf16.msra.mxu0 0
    %846 = vmatprep.subr.bf16.mxu0 0
    %847 = vmatpush1.bf16.msra.mxu0 0
    %848 = vmatprep.subr.bf16.mxu0 0
    %849 = vmatpush1.bf16.msra.mxu0 0
    %850 = vmatprep.subr.bf16.mxu0 0
    %851 = vmatpush1.bf16.msra.mxu0 0
    %852 = vmatprep.mubr.bf16.mxu0 0
    %853 = vmatmul.mubr.bf16.gmra.mrb[0].mxu0 %v818
    %v854 = vpop.f32.mrb[0].mxu0
    %v855 = vadd.f32 %v804, %v854
    %v856 = vpop.f32.mrb[0].mxu0
    %v857 = vpop.f32.mrb[0].mxu0
    %v858 = vadd.f32 %v804, %v857
    %v859 = vpop.f32.mrb[0].mxu0
    %860 = vdwg.mxu0
    %v861 = vmax.f32 %v855, 0.0
    %v862 = vmax.f32 %v858, 0.0
    %v863 = vld [vmem:[#allocation2 + $0x50] sm:$0xf]
    %v864 = vld [vmem:[#allocation2 + $0x54] sm:$0xf]
    %v865 = vld [vmem:[#allocation2 + $0x58] sm:$0xf]
    %v866 = vld [vmem:[#allocation2 + $0x5c] sm:$0xf]
    %v867 = vld [vmem:[#allocation2 + $0x60] sm:$0xf]
    %v868 = vld [vmem:[#allocation2 + $0x64] sm:$0xf]
    %v869 = vld [vmem:[#allocation2 + $0x68] sm:$0xf]
    %v870 = vld [vmem:[#allocation2 + $0x6c] sm:$0xf]
    %v871 = vpack.c.bf16 %v862, %v861
    %v872 = vld [vmem:[#allocation4 + $0x5] sm:$0x1]
    %v873 = vlaneseq
    %v874 = vshrl.u32 %v873, 7
    %v875 = vsub.s32 0, %v874
    %v876 = vrot.slane %v872, %v875
    %v885 = vunpack.c.l.b16 %v863
    %v886 = vunpack.c.l.b16 %v864
    %v887 = vunpack.c.l.b16 %v865
    %v888 = vunpack.c.l.b16 %v866
    %v889 = vunpack.c.l.b16 %v867
    %v890 = vunpack.c.l.b16 %v868
    %v891 = vunpack.c.l.b16 %v869
    %v892 = vunpack.c.l.b16 %v870
    %v893 = vpack.c.b16 %v886, %v885
    %v894 = vpack.c.b16 %v888, %v887
    %v895 = vpack.c.b16 %v890, %v889
    %v896 = vpack.c.b16 %v892, %v891
    %v902 = vsel %vm92, %v871, 0
    %904 = vmatprep.subr.bf16.mxu0 0
    %905 = vmatpush1.bf16.msra.mxu0 %v893
    %906 = vmatprep.subr.bf16.mxu0 0
    %907 = vmatpush1.bf16.msra.mxu0 %v894
    %908 = vmatprep.subr.bf16.mxu0 0
    %909 = vmatpush1.bf16.msra.mxu0 %v895
    %910 = vmatprep.subr.bf16.mxu0 0
    %911 = vmatpush1.bf16.msra.mxu0 %v896
    %912 = vmatprep.subr.bf16.mxu0 0
    %913 = vmatpush1.bf16.msra.mxu0 0
    %914 = vmatprep.subr.bf16.mxu0 0
    %915 = vmatpush1.bf16.msra.mxu0 0
    %916 = vmatprep.subr.bf16.mxu0 0
    %917 = vmatpush1.bf16.msra.mxu0 0
    %918 = vmatprep.subr.bf16.mxu0 0
    %919 = vmatpush1.bf16.msra.mxu0 0
    %920 = vmatprep.subr.bf16.mxu0 0
    %921 = vmatpush1.bf16.msra.mxu0 0
    %922 = vmatprep.subr.bf16.mxu0 0
    %923 = vmatpush1.bf16.msra.mxu0 0
    %924 = vmatprep.subr.bf16.mxu0 0
    %925 = vmatpush1.bf16.msra.mxu0 0
    %926 = vmatprep.subr.bf16.mxu0 0
    %927 = vmatpush1.bf16.msra.mxu0 0
    %928 = vmatprep.subr.bf16.mxu0 0
    %929 = vmatpush1.bf16.msra.mxu0 0
    %930 = vmatprep.subr.bf16.mxu0 0
    %931 = vmatpush1.bf16.msra.mxu0 0
    %932 = vmatprep.subr.bf16.mxu0 0
    %933 = vmatpush1.bf16.msra.mxu0 0
    %934 = vmatprep.subr.bf16.mxu0 0
    %935 = vmatpush1.bf16.msra.mxu0 0
    %936 = vmatprep.mubr.bf16.mxu0 0
    %937 = vmatmul.mubr.bf16.gmra.mrb[0].mxu0 %v902
    %v938 = vpop.f32.mrb[0].mxu0
    %v939 = vadd.f32 %v876, %v938
    %v940 = vpop.f32.mrb[0].mxu0
    %v941 = vpop.f32.mrb[0].mxu0
    %v942 = vadd.f32 %v876, %v941
    %v943 = vpop.f32.mrb[0].mxu0
    %944 = vdwg.mxu0
    %v945 = vadd.f32 %v793, %v939
    %v946 = vadd.f32 %v794, %v942
    %v947 = vsel %vm182, %v945, 0.0
    %948 = vadd.xlane.f32.xlu0 %v947
    %v949 = vpop.xlane.xlu0 %948
    %v950 = vsel %vm182, %v946, 0.0
    %951 = vadd.xlane.f32.xlu0 %v950
    %v952 = vpop.xlane.xlu0 %951
    %v953 = vmul.f32 %v949, %v760
    %v954 = vmul.f32 %v952, %v760
    %v955 = vsub.f32 %v945, %v953
    %v956 = vsub.f32 %v946, %v954
    %v957 = vmul.f32 %v955, %v955
    %v958 = vmul.f32 %v956, %v956
    %v959 = vsel %vm182, %v957, 0.0
    %960 = vadd.xlane.f32.xlu0 %v959
    %v961 = vpop.xlane.xlu0 %960
    %v962 = vsel %vm182, %v958, 0.0
    %963 = vadd.xlane.f32.xlu0 %v962
    %v964 = vpop.xlane.xlu0 %963
    %v965 = vmul.f32 %v961, %v760
    %v966 = vmul.f32 %v964, %v760
    %v967 = vadd.f32 %v965, 1e-05
    %v968 = vadd.f32 %v966, 1e-05
    %v969 = vrsqrt.pop %v967
    %v970 = vrsqrt.pop %v968
    %v971 = vmul.f32 %v955, %v969
    %v972 = vmul.f32 %v956, %v970
    %v973 = vld [vmem:[#allocation4 + $0x6] sm:$0x1]
    %v974 = vlaneseq
    %v975 = vshrl.u32 %v974, 7
    %v976 = vsub.s32 0, %v975
    %v977 = vrot.slane %v973, %v976
    %v978 = vmul.f32 %v971, %v977
    %v979 = vmul.f32 %v972, %v977
    %v980 = vld [vmem:[#allocation4 + $0x7] sm:$0x1]
    %v981 = vlaneseq
    %v982 = vshrl.u32 %v981, 7
    %v983 = vsub.s32 0, %v982
    %v984 = vrot.slane %v980, %v983
    %v985 = vadd.f32 %v978, %v984
    %v986 = vadd.f32 %v979, %v984
    %v987 = vld [vmem:[#allocation2 + $0x70] sm:$0xf]
    %v988 = vld [vmem:[#allocation2 + $0x74] sm:$0xf]
    %v989 = vld [vmem:[#allocation2 + $0x78] sm:$0xf]
    %v990 = vld [vmem:[#allocation2 + $0x7c] sm:$0xf]
    %v991 = vpack.c.bf16 %v159, %v158
    %v992 = vld [vmem:[#allocation4 + $0x8] sm:$0x1]
    %v993 = vlaneseq
    %v994 = vshrl.u32 %v993, 7
    %v995 = vsub.s32 0, %v994
    %v996 = vrot.slane %v992, %v995
    %v1001 = vunpack.c.l.b16 %v987
    %v1002 = vunpack.c.l.b16 %v988
    %v1003 = vunpack.c.l.b16 %v989
    %v1004 = vunpack.c.l.b16 %v990
    %v1005 = vpack.c.b16 %v1002, %v1001
    %v1006 = vpack.c.b16 %v1004, %v1003
    %v1010 = vsel %vm182, %v991, 0
    %1012 = vmatprep.subr.bf16.mxu0 0
    %1013 = vmatpush1.bf16.msra.mxu0 %v1005
    %1014 = vmatprep.subr.bf16.mxu0 0
    %1015 = vmatpush1.bf16.msra.mxu0 %v1006
    %1016 = vmatprep.subr.bf16.mxu0 0
    %1017 = vmatpush1.bf16.msra.mxu0 0
    %1018 = vmatprep.subr.bf16.mxu0 0
    %1019 = vmatpush1.bf16.msra.mxu0 0
    %1020 = vmatprep.subr.bf16.mxu0 0
    %1021 = vmatpush1.bf16.msra.mxu0 0
    %1022 = vmatprep.subr.bf16.mxu0 0
    %1023 = vmatpush1.bf16.msra.mxu0 0
    %1024 = vmatprep.subr.bf16.mxu0 0
    %1025 = vmatpush1.bf16.msra.mxu0 0
    %1026 = vmatprep.subr.bf16.mxu0 0
    %1027 = vmatpush1.bf16.msra.mxu0 0
    %1028 = vmatprep.subr.bf16.mxu0 0
    %1029 = vmatpush1.bf16.msra.mxu0 0
    %1030 = vmatprep.subr.bf16.mxu0 0
    %1031 = vmatpush1.bf16.msra.mxu0 0
    %1032 = vmatprep.subr.bf16.mxu0 0
    %1033 = vmatpush1.bf16.msra.mxu0 0
    %1034 = vmatprep.subr.bf16.mxu0 0
    %1035 = vmatpush1.bf16.msra.mxu0 0
    %1036 = vmatprep.subr.bf16.mxu0 0
    %1037 = vmatpush1.bf16.msra.mxu0 0
    %1038 = vmatprep.subr.bf16.mxu0 0
    %1039 = vmatpush1.bf16.msra.mxu0 0
    %1040 = vmatprep.subr.bf16.mxu0 0
    %1041 = vmatpush1.bf16.msra.mxu0 0
    %1042 = vmatprep.subr.bf16.mxu0 0
    %1043 = vmatpush1.bf16.msra.mxu0 0
    %1044 = vmatprep.mubr.bf16.mxu0 0
    %1045 = vmatmul.mubr.bf16.gmra.mrb[0].mxu0 %v1010
    %v1046 = vpop.f32.mrb[0].mxu0
    %v1047 = vadd.f32 %v996, %v1046
    %v1048 = vpop.f32.mrb[0].mxu0
    %v1049 = vpop.f32.mrb[0].mxu0
    %v1050 = vadd.f32 %v996, %v1049
    %v1051 = vpop.f32.mrb[0].mxu0
    %1052 = vdwg.mxu0
    %v1053 = vmul.f32 %v1047, 0.25
    %v1054 = vmul.f32 %v1050, 0.25
    %v1055 = vpack.c.bf16 %v1053, %v1053
    %v1056 = vpack.c.bf16 %v1054, %v1054
    %v1057 = vpack.c.bf16 %v1047, %v1047
    %v1058 = vpack.c.bf16 %v1050, %v1050
    %1060 = vrot.lane.b32.xlu0 %v1057, 96
    %v1061 = vpop.permute.xlu0 %1060
    %v1063 = vsel %vm236, %v1055, 0
    %v1066 = vsel %vm236, %v1061, 0
    %1068 = vmatprep.subr.bf16.mxu0 0
    %1069 = vmatpush1.bf16.xpose.msra.mxu0 %v1066
    %1070 = vmatprep.subr.bf16.mxu0 0
    %1071 = vmatpush1.bf16.xpose.msra.mxu0 0
    %1072 = vmatprep.subr.bf16.mxu0 0
    %1073 = vmatpush1.bf16.xpose.msra.mxu0 0
    %1074 = vmatprep.subr.bf16.mxu0 0
    %1075 = vmatpush1.bf16.xpose.msra.mxu0 0
    %1076 = vmatprep.subr.bf16.mxu0 0
    %1077 = vmatpush1.bf16.xpose.msra.mxu0 0
    %1078 = vmatprep.subr.bf16.mxu0 0
    %1079 = vmatpush1.bf16.xpose.msra.mxu0 0
    %1080 = vmatprep.subr.bf16.mxu0 0
    %1081 = vmatpush1.bf16.xpose.msra.mxu0 0
    %1082 = vmatprep.subr.bf16.mxu0 0
    %1083 = vmatpush1.bf16.xpose.msra.mxu0 0
    %1084 = vmatprep.subr.bf16.mxu0 0
    %1085 = vmatpush1.bf16.xpose.msra.mxu0 0
    %1086 = vmatprep.subr.bf16.mxu0 0
    %1087 = vmatpush1.bf16.xpose.msra.mxu0 0
    %1088 = vmatprep.subr.bf16.mxu0 0
    %1089 = vmatpush1.bf16.xpose.msra.mxu0 0
    %1090 = vmatprep.subr.bf16.mxu0 0
    %1091 = vmatpush1.bf16.xpose.msra.mxu0 0
    %1092 = vmatprep.subr.bf16.mxu0 0
    %1093 = vmatpush1.bf16.xpose.msra.mxu0 0
    %1094 = vmatprep.subr.bf16.mxu0 0
    %1095 = vmatpush1.bf16.xpose.msra.mxu0 0
    %1096 = vmatprep.subr.bf16.mxu0 0
    %1097 = vmatpush1.bf16.xpose.msra.mxu0 0
    %1098 = vmatprep.subr.bf16.mxu0 0
    %1099 = vmatpush1.bf16.xpose.msra.mxu0 0
    %1100 = vmatprep.mubr.bf16.mxu0 0
    %1101 = vmatmul.mubr.bf16.gmra.mrb[0].mxu0 %v1063
    %v1102 = vpop.f32.mrb[0].mxu0
    %v1103 = vadd.f32 0.0, %v1102
    %v1104 = vpop.f32.mrb[0].mxu0
    %v1105 = vpop.f32.mrb[0].mxu0
    %v1106 = vpop.f32.mrb[0].mxu0
    %1107 = vdwg.mxu0
    %1109 = vrot.lane.b32.xlu0 %v1058, 96
    %v1110 = vpop.permute.xlu0 %1109
    %v1112 = vsel %vm236, %v1056, 0
    %v1115 = vsel %vm236, %v1110, 0
    %1117 = vmatprep.subr.bf16.mxu0 0
    %1118 = vmatpush1.bf16.xpose.msra.mxu0 %v1115
    %1119 = vmatprep.subr.bf16.mxu0 0
    %1120 = vmatpush1.bf16.xpose.msra.mxu0 0
    %1121 = vmatprep.subr.bf16.mxu0 0
    %1122 = vmatpush1.bf16.xpose.msra.mxu0 0
    %1123 = vmatprep.subr.bf16.mxu0 0
    %1124 = vmatpush1.bf16.xpose.msra.mxu0 0
    %1125 = vmatprep.subr.bf16.mxu0 0
    %1126 = vmatpush1.bf16.xpose.msra.mxu0 0
    %1127 = vmatprep.subr.bf16.mxu0 0
    %1128 = vmatpush1.bf16.xpose.msra.mxu0 0
    %1129 = vmatprep.subr.bf16.mxu0 0
    %1130 = vmatpush1.bf16.xpose.msra.mxu0 0
    %1131 = vmatprep.subr.bf16.mxu0 0
    %1132 = vmatpush1.bf16.xpose.msra.mxu0 0
    %1133 = vmatprep.subr.bf16.mxu0 0
    %1134 = vmatpush1.bf16.xpose.msra.mxu0 0
    %1135 = vmatprep.subr.bf16.mxu0 0
    %1136 = vmatpush1.bf16.xpose.msra.mxu0 0
    %1137 = vmatprep.subr.bf16.mxu0 0
    %1138 = vmatpush1.bf16.xpose.msra.mxu0 0
    %1139 = vmatprep.subr.bf16.mxu0 0
    %1140 = vmatpush1.bf16.xpose.msra.mxu0 0
    %1141 = vmatprep.subr.bf16.mxu0 0
    %1142 = vmatpush1.bf16.xpose.msra.mxu0 0
    %1143 = vmatprep.subr.bf16.mxu0 0
    %1144 = vmatpush1.bf16.xpose.msra.mxu0 0
    %1145 = vmatprep.subr.bf16.mxu0 0
    %1146 = vmatpush1.bf16.xpose.msra.mxu0 0
    %1147 = vmatprep.subr.bf16.mxu0 0
    %1148 = vmatpush1.bf16.xpose.msra.mxu0 0
    %1149 = vmatprep.mubr.bf16.mxu0 0
    %1150 = vmatmul.mubr.bf16.gmra.mrb[0].mxu0 %v1112
    %v1151 = vpop.f32.mrb[0].mxu0
    %v1152 = vadd.f32 0.0, %v1151
    %v1153 = vpop.f32.mrb[0].mxu0
    %v1154 = vpop.f32.mrb[0].mxu0
    %v1155 = vpop.f32.mrb[0].mxu0
    %1156 = vdwg.mxu0
    %v1157 = vsel %vm332, %v1103, -inf
    %1158 = vmax.xlane.f32.xlu0 %v1157
    %v1159 = vpop.xlane.xlu0 %1158
    %v1160 = vsel %vm332, %v1152, -inf
    %1161 = vmax.xlane.f32.xlu0 %v1160
    %v1162 = vpop.xlane.xlu0 %1161
    %v1163 = vsub.f32 %v1103, %v1159
    %v1164 = vsub.f32 %v1152, %v1162
    %v1165 = vmul.f32 %v1163, 1.442695
    %v1166 = vpow.pop %v1165
    %v1167 = vmul.f32 %v1164, 1.442695
    %v1168 = vpow.pop %v1167
    %v1169 = vsel %vm332, %v1166, 0.0
    %1170 = vadd.xlane.f32.xlu0 %v1169
    %v1171 = vpop.xlane.xlu0 %1170
    %v1172 = vsel %vm332, %v1168, 0.0
    %1173 = vadd.xlane.f32.xlu0 %v1172
    %v1174 = vpop.xlane.xlu0 %1173
    %v1175 = vrcp.pop %v1171
    %v1176 = vrcp.pop %v1174
    %v1177 = vmul.f32 %v1166, %v1175
    %v1178 = vmul.f32 %v1168, %v1176
    %v1179 = vpack.c.bf16 %v1177, %v1177
    %v1180 = vpack.c.bf16 %v1178, %v1178
    %1181 = vrot.lane.b32.xlu0 %v1057, 64
    %v1182 = vpop.permute.xlu0 %1181
    %v1184 = vsel %vm332, %v1179, 0
    %v1187 = vsel %vm362, %v1182, 0
    %1189 = vmatprep.subr.bf16.mxu0 0
    %1190 = vmatpush1.bf16.msra.mxu0 %v1187
    %1191 = vmatprep.subr.bf16.mxu0 0
    %1192 = vmatpush1.bf16.msra.mxu0 0
    %1193 = vmatprep.subr.bf16.mxu0 0
    %1194 = vmatpush1.bf16.msra.mxu0 0
    %1195 = vmatprep.subr.bf16.mxu0 0
    %1196 = vmatpush1.bf16.msra.mxu0 0
    %1197 = vmatprep.subr.bf16.mxu0 0
    %1198 = vmatpush1.bf16.msra.mxu0 0
    %1199 = vmatprep.subr.bf16.mxu0 0
    %1200 = vmatpush1.bf16.msra.mxu0 0
    %1201 = vmatprep.subr.bf16.mxu0 0
    %1202 = vmatpush1.bf16.msra.mxu0 0
    %1203 = vmatprep.subr.bf16.mxu0 0
    %1204 = vmatpush1.bf16.msra.mxu0 0
    %1205 = vmatprep.subr.bf16.mxu0 0
    %1206 = vmatpush1.bf16.msra.mxu0 0
    %1207 = vmatprep.subr.bf16.mxu0 0
    %1208 = vmatpush1.bf16.msra.mxu0 0
    %1209 = vmatprep.subr.bf16.mxu0 0
    %1210 = vmatpush1.bf16.msra.mxu0 0
    %1211 = vmatprep.subr.bf16.mxu0 0
    %1212 = vmatpush1.bf16.msra.mxu0 0
    %1213 = vmatprep.subr.bf16.mxu0 0
    %1214 = vmatpush1.bf16.msra.mxu0 0
    %1215 = vmatprep.subr.bf16.mxu0 0
    %1216 = vmatpush1.bf16.msra.mxu0 0
    %1217 = vmatprep.subr.bf16.mxu0 0
    %1218 = vmatpush1.bf16.msra.mxu0 0
    %1219 = vmatprep.subr.bf16.mxu0 0
    %1220 = vmatpush1.bf16.msra.mxu0 0
    %1221 = vmatprep.mubr.bf16.mxu0 0
    %1222 = vmatmul.mubr.bf16.gmra.mrb[0].mxu0 %v1184
    %v1223 = vpop.f32.mrb[0].mxu0
    %v1224 = vadd.f32 0.0, %v1223
    %v1225 = vpop.f32.mrb[0].mxu0
    %v1226 = vpop.f32.mrb[0].mxu0
    %v1227 = vpop.f32.mrb[0].mxu0
    %1228 = vdwg.mxu0
    %1229 = vrot.lane.b32.xlu0 %v1058, 64
    %v1230 = vpop.permute.xlu0 %1229
    %v1232 = vsel %vm332, %v1180, 0
    %v1235 = vsel %vm362, %v1230, 0
    %1237 = vmatprep.subr.bf16.mxu0 0
    %1238 = vmatpush1.bf16.msra.mxu0 %v1235
    %1239 = vmatprep.subr.bf16.mxu0 0
    %1240 = vmatpush1.bf16.msra.mxu0 0
    %1241 = vmatprep.subr.bf16.mxu0 0
    %1242 = vmatpush1.bf16.msra.mxu0 0
    %1243 = vmatprep.subr.bf16.mxu0 0
    %1244 = vmatpush1.bf16.msra.mxu0 0
    %1245 = vmatprep.subr.bf16.mxu0 0
    %1246 = vmatpush1.bf16.msra.mxu0 0
    %1247 = vmatprep.subr.bf16.mxu0 0
    %1248 = vmatpush1.bf16.msra.mxu0 0
    %1249 = vmatprep.subr.bf16.mxu0 0
    %1250 = vmatpush1.bf16.msra.mxu0 0
    %1251 = vmatprep.subr.bf16.mxu0 0
    %1252 = vmatpush1.bf16.msra.mxu0 0
    %1253 = vmatprep.subr.bf16.mxu0 0
    %1254 = vmatpush1.bf16.msra.mxu0 0
    %1255 = vmatprep.subr.bf16.mxu0 0
    %1256 = vmatpush1.bf16.msra.mxu0 0
    %1257 = vmatprep.subr.bf16.mxu0 0
    %1258 = vmatpush1.bf16.msra.mxu0 0
    %1259 = vmatprep.subr.bf16.mxu0 0
    %1260 = vmatpush1.bf16.msra.mxu0 0
    %1261 = vmatprep.subr.bf16.mxu0 0
    %1262 = vmatpush1.bf16.msra.mxu0 0
    %1263 = vmatprep.subr.bf16.mxu0 0
    %1264 = vmatpush1.bf16.msra.mxu0 0
    %1265 = vmatprep.subr.bf16.mxu0 0
    %1266 = vmatpush1.bf16.msra.mxu0 0
    %1267 = vmatprep.subr.bf16.mxu0 0
    %1268 = vmatpush1.bf16.msra.mxu0 0
    %1269 = vmatprep.mubr.bf16.mxu0 0
    %1270 = vmatmul.mubr.bf16.gmra.mrb[0].mxu0 %v1232
    %v1271 = vpop.f32.mrb[0].mxu0
    %v1272 = vadd.f32 0.0, %v1271
    %v1273 = vpop.f32.mrb[0].mxu0
    %v1274 = vpop.f32.mrb[0].mxu0
    %v1275 = vpop.f32.mrb[0].mxu0
    %1276 = vdwg.mxu0
    %1278 = vrot.lane.b32.xlu0 %v1055, 112
    %v1279 = vpop.permute.xlu0 %1278
    %1280 = vrot.lane.b32.xlu0 %v1057, 80
    %v1281 = vpop.permute.xlu0 %1280
    %v1283 = vsel %vm236, %v1279, 0
    %v1286 = vsel %vm236, %v1281, 0
    %1288 = vmatprep.subr.bf16.mxu0 0
    %1289 = vmatpush1.bf16.xpose.msra.mxu0 %v1286
    %1290 = vmatprep.subr.bf16.mxu0 0
    %1291 = vmatpush1.bf16.xpose.msra.mxu0 0
    %1292 = vmatprep.subr.bf16.mxu0 0
    %1293 = vmatpush1.bf16.xpose.msra.mxu0 0
    %1294 = vmatprep.subr.bf16.mxu0 0
    %1295 = vmatpush1.bf16.xpose.msra.mxu0 0
    %1296 = vmatprep.subr.bf16.mxu0 0
    %1297 = vmatpush1.bf16.xpose.msra.mxu0 0
    %1298 = vmatprep.subr.bf16.mxu0 0
    %1299 = vmatpush1.bf16.xpose.msra.mxu0 0
    %1300 = vmatprep.subr.bf16.mxu0 0
    %1301 = vmatpush1.bf16.xpose.msra.mxu0 0
    %1302 = vmatprep.subr.bf16.mxu0 0
    %1303 = vmatpush1.bf16.xpose.msra.mxu0 0
    %1304 = vmatprep.subr.bf16.mxu0 0
    %1305 = vmatpush1.bf16.xpose.msra.mxu0 0
    %1306 = vmatprep.subr.bf16.mxu0 0
    %1307 = vmatpush1.bf16.xpose.msra.mxu0 0
    %1308 = vmatprep.subr.bf16.mxu0 0
    %1309 = vmatpush1.bf16.xpose.msra.mxu0 0
    %1310 = vmatprep.subr.bf16.mxu0 0
    %1311 = vmatpush1.bf16.xpose.msra.mxu0 0
    %1312 = vmatprep.subr.bf16.mxu0 0
    %1313 = vmatpush1.bf16.xpose.msra.mxu0 0
    %1314 = vmatprep.subr.bf16.mxu0 0
    %1315 = vmatpush1.bf16.xpose.msra.mxu0 0
    %1316 = vmatprep.subr.bf16.mxu0 0
    %1317 = vmatpush1.bf16.xpose.msra.mxu0 0
    %1318 = vmatprep.subr.bf16.mxu0 0
    %1319 = vmatpush1.bf16.xpose.msra.mxu0 0
    %1320 = vmatprep.mubr.bf16.mxu0 0
    %1321 = vmatmul.mubr.bf16.gmra.mrb[0].mxu0 %v1283
    %v1322 = vpop.f32.mrb[0].mxu0
    %v1323 = vadd.f32 0.0, %v1322
    %v1324 = vpop.f32.mrb[0].mxu0
    %v1325 = vpop.f32.mrb[0].mxu0
    %v1326 = vpop.f32.mrb[0].mxu0
    %1327 = vdwg.mxu0
    %1329 = vrot.lane.b32.xlu0 %v1056, 112
    %v1330 = vpop.permute.xlu0 %1329
    %1331 = vrot.lane.b32.xlu0 %v1058, 80
    %v1332 = vpop.permute.xlu0 %1331
    %v1334 = vsel %vm236, %v1330, 0
    %v1337 = vsel %vm236, %v1332, 0
    %1339 = vmatprep.subr.bf16.mxu0 0
    %1340 = vmatpush1.bf16.xpose.msra.mxu0 %v1337
    %1341 = vmatprep.subr.bf16.mxu0 0
    %1342 = vmatpush1.bf16.xpose.msra.mxu0 0
    %1343 = vmatprep.subr.bf16.mxu0 0
    %1344 = vmatpush1.bf16.xpose.msra.mxu0 0
    %1345 = vmatprep.subr.bf16.mxu0 0
    %1346 = vmatpush1.bf16.xpose.msra.mxu0 0
    %1347 = vmatprep.subr.bf16.mxu0 0
    %1348 = vmatpush1.bf16.xpose.msra.mxu0 0
    %1349 = vmatprep.subr.bf16.mxu0 0
    %1350 = vmatpush1.bf16.xpose.msra.mxu0 0
    %1351 = vmatprep.subr.bf16.mxu0 0
    %1352 = vmatpush1.bf16.xpose.msra.mxu0 0
    %1353 = vmatprep.subr.bf16.mxu0 0
    %1354 = vmatpush1.bf16.xpose.msra.mxu0 0
    %1355 = vmatprep.subr.bf16.mxu0 0
    %1356 = vmatpush1.bf16.xpose.msra.mxu0 0
    %1357 = vmatprep.subr.bf16.mxu0 0
    %1358 = vmatpush1.bf16.xpose.msra.mxu0 0
    %1359 = vmatprep.subr.bf16.mxu0 0
    %1360 = vmatpush1.bf16.xpose.msra.mxu0 0
    %1361 = vmatprep.subr.bf16.mxu0 0
    %1362 = vmatpush1.bf16.xpose.msra.mxu0 0
    %1363 = vmatprep.subr.bf16.mxu0 0
    %1364 = vmatpush1.bf16.xpose.msra.mxu0 0
    %1365 = vmatprep.subr.bf16.mxu0 0
    %1366 = vmatpush1.bf16.xpose.msra.mxu0 0
    %1367 = vmatprep.subr.bf16.mxu0 0
    %1368 = vmatpush1.bf16.xpose.msra.mxu0 0
    %1369 = vmatprep.subr.bf16.mxu0 0
    %1370 = vmatpush1.bf16.xpose.msra.mxu0 0
    %1371 = vmatprep.mubr.bf16.mxu0 0
    %1372 = vmatmul.mubr.bf16.gmra.mrb[0].mxu0 %v1334
    %v1373 = vpop.f32.mrb[0].mxu0
    %v1374 = vadd.f32 0.0, %v1373
    %v1375 = vpop.f32.mrb[0].mxu0
    %v1376 = vpop.f32.mrb[0].mxu0
    %v1377 = vpop.f32.mrb[0].mxu0
    %1378 = vdwg.mxu0
    %v1379 = vsel %vm332, %v1323, -inf
    %1380 = vmax.xlane.f32.xlu0 %v1379
    %v1381 = vpop.xlane.xlu0 %1380
    %v1382 = vsel %vm332, %v1374, -inf
    %1383 = vmax.xlane.f32.xlu0 %v1382
    %v1384 = vpop.xlane.xlu0 %1383
    %v1385 = vsub.f32 %v1323, %v1381
    %v1386 = vsub.f32 %v1374, %v1384
    %v1387 = vmul.f32 %v1385, 1.442695
    %v1388 = vpow.pop %v1387
    %v1389 = vmul.f32 %v1386, 1.442695
    %v1390 = vpow.pop %v1389
    %v1391 = vsel %vm332, %v1388, 0.0
    %1392 = vadd.xlane.f32.xlu0 %v1391
    %v1393 = vpop.xlane.xlu0 %1392
    %v1394 = vsel %vm332, %v1390, 0.0
    %1395 = vadd.xlane.f32.xlu0 %v1394
    %v1396 = vpop.xlane.xlu0 %1395
    %v1397 = vrcp.pop %v1393
    %v1398 = vrcp.pop %v1396
    %v1399 = vmul.f32 %v1388, %v1397
    %v1400 = vmul.f32 %v1390, %v1398
    %v1401 = vpack.c.bf16 %v1399, %v1399
    %v1402 = vpack.c.bf16 %v1400, %v1400
    %1403 = vrot.lane.b32.xlu0 %v1057, 48
    %v1404 = vpop.permute.xlu0 %1403
    %v1406 = vsel %vm332, %v1401, 0
    %v1409 = vsel %vm362, %v1404, 0
    %1411 = vmatprep.subr.bf16.mxu0 0
    %1412 = vmatpush1.bf16.msra.mxu0 %v1409
    %1413 = vmatprep.subr.bf16.mxu0 0
    %1414 = vmatpush1.bf16.msra.mxu0 0
    %1415 = vmatprep.subr.bf16.mxu0 0
    %1416 = vmatpush1.bf16.msra.mxu0 0
    %1417 = vmatprep.subr.bf16.mxu0 0
    %1418 = vmatpush1.bf16.msra.mxu0 0
    %1419 = vmatprep.subr.bf16.mxu0 0
    %1420 = vmatpush1.bf16.msra.mxu0 0
    %1421 = vmatprep.subr.bf16.mxu0 0
    %1422 = vmatpush1.bf16.msra.mxu0 0
    %1423 = vmatprep.subr.bf16.mxu0 0
    %1424 = vmatpush1.bf16.msra.mxu0 0
    %1425 = vmatprep.subr.bf16.mxu0 0
    %1426 = vmatpush1.bf16.msra.mxu0 0
    %1427 = vmatprep.subr.bf16.mxu0 0
    %1428 = vmatpush1.bf16.msra.mxu0 0
    %1429 = vmatprep.subr.bf16.mxu0 0
    %1430 = vmatpush1.bf16.msra.mxu0 0
    %1431 = vmatprep.subr.bf16.mxu0 0
    %1432 = vmatpush1.bf16.msra.mxu0 0
    %1433 = vmatprep.subr.bf16.mxu0 0
    %1434 = vmatpush1.bf16.msra.mxu0 0
    %1435 = vmatprep.subr.bf16.mxu0 0
    %1436 = vmatpush1.bf16.msra.mxu0 0
    %1437 = vmatprep.subr.bf16.mxu0 0
    %1438 = vmatpush1.bf16.msra.mxu0 0
    %1439 = vmatprep.subr.bf16.mxu0 0
    %1440 = vmatpush1.bf16.msra.mxu0 0
    %1441 = vmatprep.subr.bf16.mxu0 0
    %1442 = vmatpush1.bf16.msra.mxu0 0
    %1443 = vmatprep.mubr.bf16.mxu0 0
    %1444 = vmatmul.mubr.bf16.gmra.mrb[0].mxu0 %v1406
    %v1445 = vpop.f32.mrb[0].mxu0
    %v1446 = vadd.f32 0.0, %v1445
    %v1447 = vpop.f32.mrb[0].mxu0
    %v1448 = vpop.f32.mrb[0].mxu0
    %v1449 = vpop.f32.mrb[0].mxu0
    %1450 = vdwg.mxu0
    %1451 = vrot.lane.b32.xlu0 %v1058, 48
    %v1452 = vpop.permute.xlu0 %1451
    %v1454 = vsel %vm332, %v1402, 0
    %v1457 = vsel %vm362, %v1452, 0
    %1459 = vmatprep.subr.bf16.mxu0 0
    %1460 = vmatpush1.bf16.msra.mxu0 %v1457
    %1461 = vmatprep.subr.bf16.mxu0 0
    %1462 = vmatpush1.bf16.msra.mxu0 0
    %1463 = vmatprep.subr.bf16.mxu0 0
    %1464 = vmatpush1.bf16.msra.mxu0 0
    %1465 = vmatprep.subr.bf16.mxu0 0
    %1466 = vmatpush1.bf16.msra.mxu0 0
    %1467 = vmatprep.subr.bf16.mxu0 0
    %1468 = vmatpush1.bf16.msra.mxu0 0
    %1469 = vmatprep.subr.bf16.mxu0 0
    %1470 = vmatpush1.bf16.msra.mxu0 0
    %1471 = vmatprep.subr.bf16.mxu0 0
    %1472 = vmatpush1.bf16.msra.mxu0 0
    %1473 = vmatprep.subr.bf16.mxu0 0
    %1474 = vmatpush1.bf16.msra.mxu0 0
    %1475 = vmatprep.subr.bf16.mxu0 0
    %1476 = vmatpush1.bf16.msra.mxu0 0
    %1477 = vmatprep.subr.bf16.mxu0 0
    %1478 = vmatpush1.bf16.msra.mxu0 0
    %1479 = vmatprep.subr.bf16.mxu0 0
    %1480 = vmatpush1.bf16.msra.mxu0 0
    %1481 = vmatprep.subr.bf16.mxu0 0
    %1482 = vmatpush1.bf16.msra.mxu0 0
    %1483 = vmatprep.subr.bf16.mxu0 0
    %1484 = vmatpush1.bf16.msra.mxu0 0
    %1485 = vmatprep.subr.bf16.mxu0 0
    %1486 = vmatpush1.bf16.msra.mxu0 0
    %1487 = vmatprep.subr.bf16.mxu0 0
    %1488 = vmatpush1.bf16.msra.mxu0 0
    %1489 = vmatprep.subr.bf16.mxu0 0
    %1490 = vmatpush1.bf16.msra.mxu0 0
    %1491 = vmatprep.mubr.bf16.mxu0 0
    %1492 = vmatmul.mubr.bf16.gmra.mrb[0].mxu0 %v1454
    %v1493 = vpop.f32.mrb[0].mxu0
    %v1494 = vadd.f32 0.0, %v1493
    %v1495 = vpop.f32.mrb[0].mxu0
    %v1496 = vpop.f32.mrb[0].mxu0
    %v1497 = vpop.f32.mrb[0].mxu0
    %1498 = vdwg.mxu0
    %1501 = vrot.lane.b32.xlu0 %v1446, 16
    %v1502 = vpop.permute.xlu0 %1501
    %1503 = vrot.lane.b32.xlu0 %v1494, 16
    %v1504 = vpop.permute.xlu0 %1503
    %v1507 = vsel %vm236, %v1224, %v1502
    %v1508 = vsel %vm236, %v1272, %v1504
    %v1509 = vld [vmem:[#allocation2 + $0x80] sm:$0xf]
    %v1510 = vld [vmem:[#allocation2 + $0x84] sm:$0xf]
    %v1511 = vld [vmem:[#allocation2 + $0x88] sm:$0xf]
    %v1512 = vld [vmem:[#allocation2 + $0x8c] sm:$0xf]
    %v1513 = vpack.c.bf16 %v1508, %v1507
    %v1514 = vld [vmem:[#allocation4 + $0x9] sm:$0x1]
    %v1515 = vlaneseq
    %v1516 = vshrl.u32 %v1515, 7
    %v1517 = vsub.s32 0, %v1516
    %v1518 = vrot.slane %v1514, %v1517
    %v1523 = vunpack.c.l.b16 %v1509
    %v1524 = vunpack.c.l.b16 %v1510
    %v1525 = vunpack.c.l.b16 %v1511
    %v1526 = vunpack.c.l.b16 %v1512
    %v1527 = vpack.c.b16 %v1524, %v1523
    %v1528 = vpack.c.b16 %v1526, %v1525
    %v1532 = vsel %vm182, %v1513, 0
    %1534 = vmatprep.subr.bf16.mxu0 0
    %1535 = vmatpush1.bf16.msra.mxu0 %v1527
    %1536 = vmatprep.subr.bf16.mxu0 0
    %1537 = vmatpush1.bf16.msra.mxu0 %v1528
    %1538 = vmatprep.subr.bf16.mxu0 0
    %1539 = vmatpush1.bf16.msra.mxu0 0
    %1540 = vmatprep.subr.bf16.mxu0 0
    %1541 = vmatpush1.bf16.msra.mxu0 0
    %1542 = vmatprep.subr.bf16.mxu0 0
    %1543 = vmatpush1.bf16.msra.mxu0 0
    %1544 = vmatprep.subr.bf16.mxu0 0
    %1545 = vmatpush1.bf16.msra.mxu0 0
    %1546 = vmatprep.subr.bf16.mxu0 0
    %1547 = vmatpush1.bf16.msra.mxu0 0
    %1548 = vmatprep.subr.bf16.mxu0 0
    %1549 = vmatpush1.bf16.msra.mxu0 0
    %1550 = vmatprep.subr.bf16.mxu0 0
    %1551 = vmatpush1.bf16.msra.mxu0 0
    %1552 = vmatprep.subr.bf16.mxu0 0
    %1553 = vmatpush1.bf16.msra.mxu0 0
    %1554 = vmatprep.subr.bf16.mxu0 0
    %1555 = vmatpush1.bf16.msra.mxu0 0
    %1556 = vmatprep.subr.bf16.mxu0 0
    %1557 = vmatpush1.bf16.msra.mxu0 0
    %1558 = vmatprep.subr.bf16.mxu0 0
    %1559 = vmatpush1.bf16.msra.mxu0 0
    %1560 = vmatprep.subr.bf16.mxu0 0
    %1561 = vmatpush1.bf16.msra.mxu0 0
    %1562 = vmatprep.subr.bf16.mxu0 0
    %1563 = vmatpush1.bf16.msra.mxu0 0
    %1564 = vmatprep.subr.bf16.mxu0 0
    %1565 = vmatpush1.bf16.msra.mxu0 0
    %1566 = vmatprep.mubr.bf16.mxu0 0
    %1567 = vmatmul.mubr.bf16.gmra.mrb[0].mxu0 %v1532
    %v1568 = vpop.f32.mrb[0].mxu0
    %v1569 = vadd.f32 %v1518, %v1568
    %v1570 = vpop.f32.mrb[0].mxu0
    %v1571 = vpop.f32.mrb[0].mxu0
    %v1572 = vadd.f32 %v1518, %v1571
    %v1573 = vpop.f32.mrb[0].mxu0
    %1574 = vdwg.mxu0
    %v1575 = vadd.f32 %v158, %v1569
    %v1576 = vadd.f32 %v159, %v1572
    %v1577 = vsel %vm182, %v1575, 0.0
    %1578 = vadd.xlane.f32.xlu0 %v1577
    %v1579 = vpop.xlane.xlu0 %1578
    %v1580 = vsel %vm182, %v1576, 0.0
    %1581 = vadd.xlane.f32.xlu0 %v1580
    %v1582 = vpop.xlane.xlu0 %1581
    %v1583 = vmul.f32 %v1579, %v760
    %v1584 = vmul.f32 %v1582, %v760
    %v1585 = vsub.f32 %v1575, %v1583
    %v1586 = vsub.f32 %v1576, %v1584
    %v1587 = vmul.f32 %v1585, %v1585
    %v1588 = vmul.f32 %v1586, %v1586
    %v1589 = vsel %vm182, %v1587, 0.0
    %1590 = vadd.xlane.f32.xlu0 %v1589
    %v1591 = vpop.xlane.xlu0 %1590
    %v1592 = vsel %vm182, %v1588, 0.0
    %1593 = vadd.xlane.f32.xlu0 %v1592
    %v1594 = vpop.xlane.xlu0 %1593
    %v1595 = vmul.f32 %v1591, %v760
    %v1596 = vmul.f32 %v1594, %v760
    %v1597 = vadd.f32 %v1595, 1e-05
    %v1598 = vadd.f32 %v1596, 1e-05
    %v1599 = vrsqrt.pop %v1597
    %v1600 = vrsqrt.pop %v1598
    %v1601 = vmul.f32 %v1585, %v1599
    %v1602 = vmul.f32 %v1586, %v1600
    %v1603 = vld [vmem:[#allocation4 + $0xa] sm:$0x1]
    %v1604 = vlaneseq
    %v1605 = vshrl.u32 %v1604, 7
    %v1606 = vsub.s32 0, %v1605
    %v1607 = vrot.slane %v1603, %v1606
    %v1608 = vmul.f32 %v1601, %v1607
    %v1609 = vmul.f32 %v1602, %v1607
    %v1610 = vld [vmem:[#allocation4 + $0xb] sm:$0x1]
    %v1611 = vlaneseq
    %v1612 = vshrl.u32 %v1611, 7
    %v1613 = vsub.s32 0, %v1612
    %v1614 = vrot.slane %v1610, %v1613
    %v1615 = vadd.f32 %v1608, %v1614
    %v1616 = vadd.f32 %v1609, %v1614
    %v1617 = vld [vmem:[#allocation2 + $0x90] sm:$0xf]
    %v1618 = vld [vmem:[#allocation2 + $0x94] sm:$0xf]
    %v1619 = vld [vmem:[#allocation2 + $0x98] sm:$0xf]
    %v1620 = vld [vmem:[#allocation2 + $0x9c] sm:$0xf]
    %v1621 = vpack.c.bf16 %v1616, %v1615
    %v1622 = vld [vmem:[#allocation4 + $0xc] sm:$0x1]
    %v1623 = vlaneseq
    %v1624 = vshrl.u32 %v1623, 7
    %v1625 = vsub.s32 0, %v1624
    %v1626 = vrot.slane %v1622, %v1625
    %v1631 = vunpack.c.l.b16 %v1617
    %v1632 = vunpack.c.l.b16 %v1618
    %v1633 = vunpack.c.l.b16 %v1619
    %v1634 = vunpack.c.l.b16 %v1620
    %v1635 = vpack.c.b16 %v1632, %v1631
    %v1636 = vpack.c.b16 %v1634, %v1633
    %v1640 = vsel %vm182, %v1621, 0
    %1642 = vmatprep.subr.bf16.mxu0 0
    %1643 = vmatpush1.bf16.msra.mxu0 %v1635
    %1644 = vmatprep.subr.bf16.mxu0 0
    %1645 = vmatpush1.bf16.msra.mxu0 %v1636
    %1646 = vmatprep.subr.bf16.mxu0 0
    %1647 = vmatpush1.bf16.msra.mxu0 0
    %1648 = vmatprep.subr.bf16.mxu0 0
    %1649 = vmatpush1.bf16.msra.mxu0 0
    %1650 = vmatprep.subr.bf16.mxu0 0
    %1651 = vmatpush1.bf16.msra.mxu0 0
    %1652 = vmatprep.subr.bf16.mxu0 0
    %1653 = vmatpush1.bf16.msra.mxu0 0
    %1654 = vmatprep.subr.bf16.mxu0 0
    %1655 = vmatpush1.bf16.msra.mxu0 0
    %1656 = vmatprep.subr.bf16.mxu0 0
    %1657 = vmatpush1.bf16.msra.mxu0 0
    %1658 = vmatprep.subr.bf16.mxu0 0
    %1659 = vmatpush1.bf16.msra.mxu0 0
    %1660 = vmatprep.subr.bf16.mxu0 0
    %1661 = vmatpush1.bf16.msra.mxu0 0
    %1662 = vmatprep.subr.bf16.mxu0 0
    %1663 = vmatpush1.bf16.msra.mxu0 0
    %1664 = vmatprep.subr.bf16.mxu0 0
    %1665 = vmatpush1.bf16.msra.mxu0 0
    %1666 = vmatprep.subr.bf16.mxu0 0
    %1667 = vmatpush1.bf16.msra.mxu0 0
    %1668 = vmatprep.subr.bf16.mxu0 0
    %1669 = vmatpush1.bf16.msra.mxu0 0
    %1670 = vmatprep.subr.bf16.mxu0 0
    %1671 = vmatpush1.bf16.msra.mxu0 0
    %1672 = vmatprep.subr.bf16.mxu0 0
    %1673 = vmatpush1.bf16.msra.mxu0 0
    %1674 = vmatprep.mubr.bf16.mxu0 0
    %1675 = vmatmul.mubr.bf16.gmra.mrb[0].mxu0 %v1640
    %v1676 = vpop.f32.mrb[0].mxu0
    %v1677 = vadd.f32 %v1626, %v1676
    %v1678 = vpop.f32.mrb[0].mxu0
    %v1679 = vpop.f32.mrb[0].mxu0
    %v1680 = vadd.f32 %v1626, %v1679
    %v1681 = vpop.f32.mrb[0].mxu0
    %1682 = vdwg.mxu0
    %v1683 = vld [vmem:[#allocation2 + $0xa0] sm:$0xf]
    %v1684 = vld [vmem:[#allocation2 + $0xa4] sm:$0xf]
    %v1685 = vld [vmem:[#allocation2 + $0xa8] sm:$0xf]
    %v1686 = vld [vmem:[#allocation2 + $0xac] sm:$0xf]
    %v1687 = vpack.c.bf16 %v986, %v985
    %v1688 = vld [vmem:[#allocation4 + $0xd] sm:$0x1]
    %v1689 = vlaneseq
    %v1690 = vshrl.u32 %v1689, 7
    %v1691 = vsub.s32 0, %v1690
    %v1692 = vrot.slane %v1688, %v1691
    %v1697 = vunpack.c.l.b16 %v1683
    %v1698 = vunpack.c.l.b16 %v1684
    %v1699 = vunpack.c.l.b16 %v1685
    %v1700 = vunpack.c.l.b16 %v1686
    %v1701 = vpack.c.b16 %v1698, %v1697
    %v1702 = vpack.c.b16 %v1700, %v1699
    %v1706 = vsel %vm182, %v1687, 0
    %1708 = vmatprep.subr.bf16.mxu0 0
    %1709 = vmatpush1.bf16.msra.mxu0 %v1701
    %1710 = vmatprep.subr.bf16.mxu0 0
    %1711 = vmatpush1.bf16.msra.mxu0 %v1702
    %1712 = vmatprep.subr.bf16.mxu0 0
    %1713 = vmatpush1.bf16.msra.mxu0 0
    %1714 = vmatprep.subr.bf16.mxu0 0
    %1715 = vmatpush1.bf16.msra.mxu0 0
    %1716 = vmatprep.subr.bf16.mxu0 0
    %1717 = vmatpush1.bf16.msra.mxu0 0
    %1718 = vmatprep.subr.bf16.mxu0 0
    %1719 = vmatpush1.bf16.msra.mxu0 0
    %1720 = vmatprep.subr.bf16.mxu0 0
    %1721 = vmatpush1.bf16.msra.mxu0 0
    %1722 = vmatprep.subr.bf16.mxu0 0
    %1723 = vmatpush1.bf16.msra.mxu0 0
    %1724 = vmatprep.subr.bf16.mxu0 0
    %1725 = vmatpush1.bf16.msra.mxu0 0
    %1726 = vmatprep.subr.bf16.mxu0 0
    %1727 = vmatpush1.bf16.msra.mxu0 0
    %1728 = vmatprep.subr.bf16.mxu0 0
    %1729 = vmatpush1.bf16.msra.mxu0 0
    %1730 = vmatprep.subr.bf16.mxu0 0
    %1731 = vmatpush1.bf16.msra.mxu0 0
    %1732 = vmatprep.subr.bf16.mxu0 0
    %1733 = vmatpush1.bf16.msra.mxu0 0
    %1734 = vmatprep.subr.bf16.mxu0 0
    %1735 = vmatpush1.bf16.msra.mxu0 0
    %1736 = vmatprep.subr.bf16.mxu0 0
    %1737 = vmatpush1.bf16.msra.mxu0 0
    %1738 = vmatprep.subr.bf16.mxu0 0
    %1739 = vmatpush1.bf16.msra.mxu0 0
    %1740 = vmatprep.mubr.bf16.mxu0 0
    %1741 = vmatmul.mubr.bf16.gmra.mrb[0].mxu0 %v1706
    %v1742 = vpop.f32.mrb[0].mxu0
    %v1743 = vadd.f32 %v1692, %v1742
    %v1744 = vpop.f32.mrb[0].mxu0
    %v1745 = vpop.f32.mrb[0].mxu0
    %v1746 = vadd.f32 %v1692, %v1745
    %v1747 = vpop.f32.mrb[0].mxu0
    %1748 = vdwg.mxu0
    %v1749 = vmul.f32 %v1677, 0.25
    %v1750 = vmul.f32 %v1680, 0.25
    %v1751 = vpack.c.bf16 %v1749, %v1749
    %v1752 = vpack.c.bf16 %v1750, %v1750
    %v1753 = vpack.c.bf16 %v1743, %v1743
    %v1754 = vpack.c.bf16 %v1746, %v1746
    %v1756 = vsel %vm236, %v1751, 0
    %v1759 = vsel %vm236, %v1753, 0
    %1761 = vmatprep.subr.bf16.mxu0 0
    %1762 = vmatpush1.bf16.xpose.msra.mxu0 %v1759
    %1763 = vmatprep.subr.bf16.mxu0 0
    %1764 = vmatpush1.bf16.xpose.msra.mxu0 0
    %1765 = vmatprep.subr.bf16.mxu0 0
    %1766 = vmatpush1.bf16.xpose.msra.mxu0 0
    %1767 = vmatprep.subr.bf16.mxu0 0
    %1768 = vmatpush1.bf16.xpose.msra.mxu0 0
    %1769 = vmatprep.subr.bf16.mxu0 0
    %1770 = vmatpush1.bf16.xpose.msra.mxu0 0
    %1771 = vmatprep.subr.bf16.mxu0 0
    %1772 = vmatpush1.bf16.xpose.msra.mxu0 0
    %1773 = vmatprep.subr.bf16.mxu0 0
    %1774 = vmatpush1.bf16.xpose.msra.mxu0 0
    %1775 = vmatprep.subr.bf16.mxu0 0
    %1776 = vmatpush1.bf16.xpose.msra.mxu0 0
    %1777 = vmatprep.subr.bf16.mxu0 0
    %1778 = vmatpush1.bf16.xpose.msra.mxu0 0
    %1779 = vmatprep.subr.bf16.mxu0 0
    %1780 = vmatpush1.bf16.xpose.msra.mxu0 0
    %1781 = vmatprep.subr.bf16.mxu0 0
    %1782 = vmatpush1.bf16.xpose.msra.mxu0 0
    %1783 = vmatprep.subr.bf16.mxu0 0
    %1784 = vmatpush1.bf16.xpose.msra.mxu0 0
    %1785 = vmatprep.subr.bf16.mxu0 0
    %1786 = vmatpush1.bf16.xpose.msra.mxu0 0
    %1787 = vmatprep.subr.bf16.mxu0 0
    %1788 = vmatpush1.bf16.xpose.msra.mxu0 0
    %1789 = vmatprep.subr.bf16.mxu0 0
    %1790 = vmatpush1.bf16.xpose.msra.mxu0 0
    %1791 = vmatprep.subr.bf16.mxu0 0
    %1792 = vmatpush1.bf16.xpose.msra.mxu0 0
    %1793 = vmatprep.mubr.bf16.mxu0 0
    %1794 = vmatmul.mubr.bf16.gmra.mrb[0].mxu0 %v1756
    %v1795 = vpop.f32.mrb[0].mxu0
    %v1796 = vadd.f32 0.0, %v1795
    %v1797 = vpop.f32.mrb[0].mxu0
    %v1798 = vpop.f32.mrb[0].mxu0
    %v1799 = vpop.f32.mrb[0].mxu0
    %1800 = vdwg.mxu0
    %v1802 = vsel %vm236, %v1752, 0
    %v1805 = vsel %vm236, %v1754, 0
    %1807 = vmatprep.subr.bf16.mxu0 0
    %1808 = vmatpush1.bf16.xpose.msra.mxu0 %v1805
    %1809 = vmatprep.subr.bf16.mxu0 0
    %1810 = vmatpush1.bf16.xpose.msra.mxu0 0
    %1811 = vmatprep.subr.bf16.mxu0 0
    %1812 = vmatpush1.bf16.xpose.msra.mxu0 0
    %1813 = vmatprep.subr.bf16.mxu0 0
    %1814 = vmatpush1.bf16.xpose.msra.mxu0 0
    %1815 = vmatprep.subr.bf16.mxu0 0
    %1816 = vmatpush1.bf16.xpose.msra.mxu0 0
    %1817 = vmatprep.subr.bf16.mxu0 0
    %1818 = vmatpush1.bf16.xpose.msra.mxu0 0
    %1819 = vmatprep.subr.bf16.mxu0 0
    %1820 = vmatpush1.bf16.xpose.msra.mxu0 0
    %1821 = vmatprep.subr.bf16.mxu0 0
    %1822 = vmatpush1.bf16.xpose.msra.mxu0 0
    %1823 = vmatprep.subr.bf16.mxu0 0
    %1824 = vmatpush1.bf16.xpose.msra.mxu0 0
    %1825 = vmatprep.subr.bf16.mxu0 0
    %1826 = vmatpush1.bf16.xpose.msra.mxu0 0
    %1827 = vmatprep.subr.bf16.mxu0 0
    %1828 = vmatpush1.bf16.xpose.msra.mxu0 0
    %1829 = vmatprep.subr.bf16.mxu0 0
    %1830 = vmatpush1.bf16.xpose.msra.mxu0 0
    %1831 = vmatprep.subr.bf16.mxu0 0
    %1832 = vmatpush1.bf16.xpose.msra.mxu0 0
    %1833 = vmatprep.subr.bf16.mxu0 0
    %1834 = vmatpush1.bf16.xpose.msra.mxu0 0
    %1835 = vmatprep.subr.bf16.mxu0 0
    %1836 = vmatpush1.bf16.xpose.msra.mxu0 0
    %1837 = vmatprep.subr.bf16.mxu0 0
    %1838 = vmatpush1.bf16.xpose.msra.mxu0 0
    %1839 = vmatprep.mubr.bf16.mxu0 0
    %1840 = vmatmul.mubr.bf16.gmra.mrb[0].mxu0 %v1802
    %v1841 = vpop.f32.mrb[0].mxu0
    %v1842 = vadd.f32 0.0, %v1841
    %v1843 = vpop.f32.mrb[0].mxu0
    %v1844 = vpop.f32.mrb[0].mxu0
    %v1845 = vpop.f32.mrb[0].mxu0
    %1846 = vdwg.mxu0
    %v1847 = vsel %vm332, %v1796, -inf
    %1848 = vmax.xlane.f32.xlu0 %v1847
    %v1849 = vpop.xlane.xlu0 %1848
    %v1850 = vsel %vm332, %v1842, -inf
    %1851 = vmax.xlane.f32.xlu0 %v1850
    %v1852 = vpop.xlane.xlu0 %1851
    %v1853 = vsub.f32 %v1796, %v1849
    %v1854 = vsub.f32 %v1842, %v1852
    %v1855 = vmul.f32 %v1853, 1.442695
    %v1856 = vpow.pop %v1855
    %v1857 = vmul.f32 %v1854, 1.442695
    %v1858 = vpow.pop %v1857
    %v1859 = vsel %vm332, %v1856, 0.0
    %1860 = vadd.xlane.f32.xlu0 %v1859
    %v1861 = vpop.xlane.xlu0 %1860
    %v1862 = vsel %vm332, %v1858, 0.0
    %1863 = vadd.xlane.f32.xlu0 %v1862
    %v1864 = vpop.xlane.xlu0 %1863
    %v1865 = vrcp.pop %v1861
    %v1866 = vrcp.pop %v1864
    %v1867 = vmul.f32 %v1856, %v1865
    %v1868 = vmul.f32 %v1858, %v1866
    %v1869 = vpack.c.bf16 %v1867, %v1867
    %v1870 = vpack.c.bf16 %v1868, %v1868
    %1872 = vrot.lane.b32.xlu0 %v1753, 96
    %v1873 = vpop.permute.xlu0 %1872
    %v1875 = vsel %vm332, %v1869, 0
    %v1878 = vsel %vm362, %v1873, 0
    %1880 = vmatprep.subr.bf16.mxu0 0
    %1881 = vmatpush1.bf16.msra.mxu0 %v1878
    %1882 = vmatprep.subr.bf16.mxu0 0
    %1883 = vmatpush1.bf16.msra.mxu0 0
    %1884 = vmatprep.subr.bf16.mxu0 0
    %1885 = vmatpush1.bf16.msra.mxu0 0
    %1886 = vmatprep.subr.bf16.mxu0 0
    %1887 = vmatpush1.bf16.msra.mxu0 0
    %1888 = vmatprep.subr.bf16.mxu0 0
    %1889 = vmatpush1.bf16.msra.mxu0 0
    %1890 = vmatprep.subr.bf16.mxu0 0
    %1891 = vmatpush1.bf16.msra.mxu0 0
    %1892 = vmatprep.subr.bf16.mxu0 0
    %1893 = vmatpush1.bf16.msra.mxu0 0
    %1894 = vmatprep.subr.bf16.mxu0 0
    %1895 = vmatpush1.bf16.msra.mxu0 0
    %1896 = vmatprep.subr.bf16.mxu0 0
    %1897 = vmatpush1.bf16.msra.mxu0 0
    %1898 = vmatprep.subr.bf16.mxu0 0
    %1899 = vmatpush1.bf16.msra.mxu0 0
    %1900 = vmatprep.subr.bf16.mxu0 0
    %1901 = vmatpush1.bf16.msra.mxu0 0
    %1902 = vmatprep.subr.bf16.mxu0 0
    %1903 = vmatpush1.bf16.msra.mxu0 0
    %1904 = vmatprep.subr.bf16.mxu0 0
    %1905 = vmatpush1.bf16.msra.mxu0 0
    %1906 = vmatprep.subr.bf16.mxu0 0
    %1907 = vmatpush1.bf16.msra.mxu0 0
    %1908 = vmatprep.subr.bf16.mxu0 0
    %1909 = vmatpush1.bf16.msra.mxu0 0
    %1910 = vmatprep.subr.bf16.mxu0 0
    %1911 = vmatpush1.bf16.msra.mxu0 0
    %1912 = vmatprep.mubr.bf16.mxu0 0
    %1913 = vmatmul.mubr.bf16.gmra.mrb[0].mxu0 %v1875
    %v1914 = vpop.f32.mrb[0].mxu0
    %v1915 = vadd.f32 0.0, %v1914
    %v1916 = vpop.f32.mrb[0].mxu0
    %v1917 = vpop.f32.mrb[0].mxu0
    %v1918 = vpop.f32.mrb[0].mxu0
    %1919 = vdwg.mxu0
    %1921 = vrot.lane.b32.xlu0 %v1754, 96
    %v1922 = vpop.permute.xlu0 %1921
    %v1924 = vsel %vm332, %v1870, 0
    %v1927 = vsel %vm362, %v1922, 0
    %1929 = vmatprep.subr.bf16.mxu0 0
    %1930 = vmatpush1.bf16.msra.mxu0 %v1927
    %1931 = vmatprep.subr.bf16.mxu0 0
    %1932 = vmatpush1.bf16.msra.mxu0 0
    %1933 = vmatprep.subr.bf16.mxu0 0
    %1934 = vmatpush1.bf16.msra.mxu0 0
    %1935 = vmatprep.subr.bf16.mxu0 0
    %1936 = vmatpush1.bf16.msra.mxu0 0
    %1937 = vmatprep.subr.bf16.mxu0 0
    %1938 = vmatpush1.bf16.msra.mxu0 0
    %1939 = vmatprep.subr.bf16.mxu0 0
    %1940 = vmatpush1.bf16.msra.mxu0 0
    %1941 = vmatprep.subr.bf16.mxu0 0
    %1942 = vmatpush1.bf16.msra.mxu0 0
    %1943 = vmatprep.subr.bf16.mxu0 0
    %1944 = vmatpush1.bf16.msra.mxu0 0
    %1945 = vmatprep.subr.bf16.mxu0 0
    %1946 = vmatpush1.bf16.msra.mxu0 0
    %1947 = vmatprep.subr.bf16.mxu0 0
    %1948 = vmatpush1.bf16.msra.mxu0 0
    %1949 = vmatprep.subr.bf16.mxu0 0
    %1950 = vmatpush1.bf16.msra.mxu0 0
    %1951 = vmatprep.subr.bf16.mxu0 0
    %1952 = vmatpush1.bf16.msra.mxu0 0
    %1953 = vmatprep.subr.bf16.mxu0 0
    %1954 = vmatpush1.bf16.msra.mxu0 0
    %1955 = vmatprep.subr.bf16.mxu0 0
    %1956 = vmatpush1.bf16.msra.mxu0 0
    %1957 = vmatprep.subr.bf16.mxu0 0
    %1958 = vmatpush1.bf16.msra.mxu0 0
    %1959 = vmatprep.subr.bf16.mxu0 0
    %1960 = vmatpush1.bf16.msra.mxu0 0
    %1961 = vmatprep.mubr.bf16.mxu0 0
    %1962 = vmatmul.mubr.bf16.gmra.mrb[0].mxu0 %v1924
    %v1963 = vpop.f32.mrb[0].mxu0
    %v1964 = vadd.f32 0.0, %v1963
    %v1965 = vpop.f32.mrb[0].mxu0
    %v1966 = vpop.f32.mrb[0].mxu0
    %v1967 = vpop.f32.mrb[0].mxu0
    %1968 = vdwg.mxu0
    %1970 = vrot.lane.b32.xlu0 %v1751, 112
    %v1971 = vpop.permute.xlu0 %1970
    %1972 = vrot.lane.b32.xlu0 %v1753, 112
    %v1973 = vpop.permute.xlu0 %1972
    %v1975 = vsel %vm236, %v1971, 0
    %v1978 = vsel %vm236, %v1973, 0
    %1980 = vmatprep.subr.bf16.mxu0 0
    %1981 = vmatpush1.bf16.xpose.msra.mxu0 %v1978
    %1982 = vmatprep.subr.bf16.mxu0 0
    %1983 = vmatpush1.bf16.xpose.msra.mxu0 0
    %1984 = vmatprep.subr.bf16.mxu0 0
    %1985 = vmatpush1.bf16.xpose.msra.mxu0 0
    %1986 = vmatprep.subr.bf16.mxu0 0
    %1987 = vmatpush1.bf16.xpose.msra.mxu0 0
    %1988 = vmatprep.subr.bf16.mxu0 0
    %1989 = vmatpush1.bf16.xpose.msra.mxu0 0
    %1990 = vmatprep.subr.bf16.mxu0 0
    %1991 = vmatpush1.bf16.xpose.msra.mxu0 0
    %1992 = vmatprep.subr.bf16.mxu0 0
    %1993 = vmatpush1.bf16.xpose.msra.mxu0 0
    %1994 = vmatprep.subr.bf16.mxu0 0
    %1995 = vmatpush1.bf16.xpose.msra.mxu0 0
    %1996 = vmatprep.subr.bf16.mxu0 0
    %1997 = vmatpush1.bf16.xpose.msra.mxu0 0
    %1998 = vmatprep.subr.bf16.mxu0 0
    %1999 = vmatpush1.bf16.xpose.msra.mxu0 0
    %2000 = vmatprep.subr.bf16.mxu0 0
    %2001 = vmatpush1.bf16.xpose.msra.mxu0 0
    %2002 = vmatprep.subr.bf16.mxu0 0
    %2003 = vmatpush1.bf16.xpose.msra.mxu0 0
    %2004 = vmatprep.subr.bf16.mxu0 0
    %2005 = vmatpush1.bf16.xpose.msra.mxu0 0
    %2006 = vmatprep.subr.bf16.mxu0 0
    %2007 = vmatpush1.bf16.xpose.msra.mxu0 0
    %2008 = vmatprep.subr.bf16.mxu0 0
    %2009 = vmatpush1.bf16.xpose.msra.mxu0 0
    %2010 = vmatprep.subr.bf16.mxu0 0
    %2011 = vmatpush1.bf16.xpose.msra.mxu0 0
    %2012 = vmatprep.mubr.bf16.mxu0 0
    %2013 = vmatmul.mubr.bf16.gmra.mrb[0].mxu0 %v1975
    %v2014 = vpop.f32.mrb[0].mxu0
    %v2015 = vadd.f32 0.0, %v2014
    %v2016 = vpop.f32.mrb[0].mxu0
    %v2017 = vpop.f32.mrb[0].mxu0
    %v2018 = vpop.f32.mrb[0].mxu0
    %2019 = vdwg.mxu0
    %2021 = vrot.lane.b32.xlu0 %v1752, 112
    %v2022 = vpop.permute.xlu0 %2021
    %2023 = vrot.lane.b32.xlu0 %v1754, 112
    %v2024 = vpop.permute.xlu0 %2023
    %v2026 = vsel %vm236, %v2022, 0
    %v2029 = vsel %vm236, %v2024, 0
    %2031 = vmatprep.subr.bf16.mxu0 0
    %2032 = vmatpush1.bf16.xpose.msra.mxu0 %v2029
    %2033 = vmatprep.subr.bf16.mxu0 0
    %2034 = vmatpush1.bf16.xpose.msra.mxu0 0
    %2035 = vmatprep.subr.bf16.mxu0 0
    %2036 = vmatpush1.bf16.xpose.msra.mxu0 0
    %2037 = vmatprep.subr.bf16.mxu0 0
    %2038 = vmatpush1.bf16.xpose.msra.mxu0 0
    %2039 = vmatprep.subr.bf16.mxu0 0
    %2040 = vmatpush1.bf16.xpose.msra.mxu0 0
    %2041 = vmatprep.subr.bf16.mxu0 0
    %2042 = vmatpush1.bf16.xpose.msra.mxu0 0
    %2043 = vmatprep.subr.bf16.mxu0 0
    %2044 = vmatpush1.bf16.xpose.msra.mxu0 0
    %2045 = vmatprep.subr.bf16.mxu0 0
    %2046 = vmatpush1.bf16.xpose.msra.mxu0 0
    %2047 = vmatprep.subr.bf16.mxu0 0
    %2048 = vmatpush1.bf16.xpose.msra.mxu0 0
    %2049 = vmatprep.subr.bf16.mxu0 0
    %2050 = vmatpush1.bf16.xpose.msra.mxu0 0
    %2051 = vmatprep.subr.bf16.mxu0 0
    %2052 = vmatpush1.bf16.xpose.msra.mxu0 0
    %2053 = vmatprep.subr.bf16.mxu0 0
    %2054 = vmatpush1.bf16.xpose.msra.mxu0 0
    %2055 = vmatprep.subr.bf16.mxu0 0
    %2056 = vmatpush1.bf16.xpose.msra.mxu0 0
    %2057 = vmatprep.subr.bf16.mxu0 0
    %2058 = vmatpush1.bf16.xpose.msra.mxu0 0
    %2059 = vmatprep.subr.bf16.mxu0 0
    %2060 = vmatpush1.bf16.xpose.msra.mxu0 0
    %2061 = vmatprep.subr.bf16.mxu0 0
    %2062 = vmatpush1.bf16.xpose.msra.mxu0 0
    %2063 = vmatprep.mubr.bf16.mxu0 0
    %2064 = vmatmul.mubr.bf16.gmra.mrb[0].mxu0 %v2026
    %v2065 = vpop.f32.mrb[0].mxu0
    %v2066 = vadd.f32 0.0, %v2065
    %v2067 = vpop.f32.mrb[0].mxu0
    %v2068 = vpop.f32.mrb[0].mxu0
    %v2069 = vpop.f32.mrb[0].mxu0
    %2070 = vdwg.mxu0
    %v2071 = vsel %vm332, %v2015, -inf
    %2072 = vmax.xlane.f32.xlu0 %v2071
    %v2073 = vpop.xlane.xlu0 %2072
    %v2074 = vsel %vm332, %v2066, -inf
    %2075 = vmax.xlane.f32.xlu0 %v2074
    %v2076 = vpop.xlane.xlu0 %2075
    %v2077 = vsub.f32 %v2015, %v2073
    %v2078 = vsub.f32 %v2066, %v2076
    %v2079 = vmul.f32 %v2077, 1.442695
    %v2080 = vpow.pop %v2079
    %v2081 = vmul.f32 %v2078, 1.442695
    %v2082 = vpow.pop %v2081
    %v2083 = vsel %vm332, %v2080, 0.0
    %2084 = vadd.xlane.f32.xlu0 %v2083
    %v2085 = vpop.xlane.xlu0 %2084
    %v2086 = vsel %vm332, %v2082, 0.0
    %2087 = vadd.xlane.f32.xlu0 %v2086
    %v2088 = vpop.xlane.xlu0 %2087
    %v2089 = vrcp.pop %v2085
    %v2090 = vrcp.pop %v2088
    %v2091 = vmul.f32 %v2080, %v2089
    %v2092 = vmul.f32 %v2082, %v2090
    %v2093 = vpack.c.bf16 %v2091, %v2091
    %v2094 = vpack.c.bf16 %v2092, %v2092
    %2095 = vrot.lane.b32.xlu0 %v1753, 80
    %v2096 = vpop.permute.xlu0 %2095
    %v2098 = vsel %vm332, %v2093, 0
    %v2101 = vsel %vm362, %v2096, 0
    %2103 = vmatprep.subr.bf16.mxu0 0
    %2104 = vmatpush1.bf16.msra.mxu0 %v2101
    %2105 = vmatprep.subr.bf16.mxu0 0
    %2106 = vmatpush1.bf16.msra.mxu0 0
    %2107 = vmatprep.subr.bf16.mxu0 0
    %2108 = vmatpush1.bf16.msra.mxu0 0
    %2109 = vmatprep.subr.bf16.mxu0 0
    %2110 = vmatpush1.bf16.msra.mxu0 0
    %2111 = vmatprep.subr.bf16.mxu0 0
    %2112 = vmatpush1.bf16.msra.mxu0 0
    %2113 = vmatprep.subr.bf16.mxu0 0
    %2114 = vmatpush1.bf16.msra.mxu0 0
    %2115 = vmatprep.subr.bf16.mxu0 0
    %2116 = vmatpush1.bf16.msra.mxu0 0
    %2117 = vmatprep.subr.bf16.mxu0 0
    %2118 = vmatpush1.bf16.msra.mxu0 0
    %2119 = vmatprep.subr.bf16.mxu0 0
    %2120 = vmatpush1.bf16.msra.mxu0 0
    %2121 = vmatprep.subr.bf16.mxu0 0
    %2122 = vmatpush1.bf16.msra.mxu0 0
    %2123 = vmatprep.subr.bf16.mxu0 0
    %2124 = vmatpush1.bf16.msra.mxu0 0
    %2125 = vmatprep.subr.bf16.mxu0 0
    %2126 = vmatpush1.bf16.msra.mxu0 0
    %2127 = vmatprep.subr.bf16.mxu0 0
    %2128 = vmatpush1.bf16.msra.mxu0 0
    %2129 = vmatprep.subr.bf16.mxu0 0
    %2130 = vmatpush1.bf16.msra.mxu0 0
    %2131 = vmatprep.subr.bf16.mxu0 0
    %2132 = vmatpush1.bf16.msra.mxu0 0
    %2133 = vmatprep.subr.bf16.mxu0 0
    %2134 = vmatpush1.bf16.msra.mxu0 0
    %2135 = vmatprep.mubr.bf16.mxu0 0
    %2136 = vmatmul.mubr.bf16.gmra.mrb[0].mxu0 %v2098
    %v2137 = vpop.f32.mrb[0].mxu0
    %v2138 = vadd.f32 0.0, %v2137
    %v2139 = vpop.f32.mrb[0].mxu0
    %v2140 = vpop.f32.mrb[0].mxu0
    %v2141 = vpop.f32.mrb[0].mxu0
    %2142 = vdwg.mxu0
    %2143 = vrot.lane.b32.xlu0 %v1754, 80
    %v2144 = vpop.permute.xlu0 %2143
    %v2146 = vsel %vm332, %v2094, 0
    %v2149 = vsel %vm362, %v2144, 0
    %2151 = vmatprep.subr.bf16.mxu0 0
    %2152 = vmatpush1.bf16.msra.mxu0 %v2149
    %2153 = vmatprep.subr.bf16.mxu0 0
    %2154 = vmatpush1.bf16.msra.mxu0 0
    %2155 = vmatprep.subr.bf16.mxu0 0
    %2156 = vmatpush1.bf16.msra.mxu0 0
    %2157 = vmatprep.subr.bf16.mxu0 0
    %2158 = vmatpush1.bf16.msra.mxu0 0
    %2159 = vmatprep.subr.bf16.mxu0 0
    %2160 = vmatpush1.bf16.msra.mxu0 0
    %2161 = vmatprep.subr.bf16.mxu0 0
    %2162 = vmatpush1.bf16.msra.mxu0 0
    %2163 = vmatprep.subr.bf16.mxu0 0
    %2164 = vmatpush1.bf16.msra.mxu0 0
    %2165 = vmatprep.subr.bf16.mxu0 0
    %2166 = vmatpush1.bf16.msra.mxu0 0
    %2167 = vmatprep.subr.bf16.mxu0 0
    %2168 = vmatpush1.bf16.msra.mxu0 0
    %2169 = vmatprep.subr.bf16.mxu0 0
    %2170 = vmatpush1.bf16.msra.mxu0 0
    %2171 = vmatprep.subr.bf16.mxu0 0
    %2172 = vmatpush1.bf16.msra.mxu0 0
    %2173 = vmatprep.subr.bf16.mxu0 0
    %2174 = vmatpush1.bf16.msra.mxu0 0
    %2175 = vmatprep.subr.bf16.mxu0 0
    %2176 = vmatpush1.bf16.msra.mxu0 0
    %2177 = vmatprep.subr.bf16.mxu0 0
    %2178 = vmatpush1.bf16.msra.mxu0 0
    %2179 = vmatprep.subr.bf16.mxu0 0
    %2180 = vmatpush1.bf16.msra.mxu0 0
    %2181 = vmatprep.subr.bf16.mxu0 0
    %2182 = vmatpush1.bf16.msra.mxu0 0
    %2183 = vmatprep.mubr.bf16.mxu0 0
    %2184 = vmatmul.mubr.bf16.gmra.mrb[0].mxu0 %v2146
    %v2185 = vpop.f32.mrb[0].mxu0
    %v2186 = vadd.f32 0.0, %v2185
    %v2187 = vpop.f32.mrb[0].mxu0
    %v2188 = vpop.f32.mrb[0].mxu0
    %v2189 = vpop.f32.mrb[0].mxu0
    %2190 = vdwg.mxu0
    %2193 = vrot.lane.b32.xlu0 %v2138, 16
    %v2194 = vpop.permute.xlu0 %2193
    %2195 = vrot.lane.b32.xlu0 %v2186, 16
    %v2196 = vpop.permute.xlu0 %2195
    %v2199 = vsel %vm236, %v1915, %v2194
    %v2200 = vsel %vm236, %v1964, %v2196
    %v2201 = vld [vmem:[#allocation2 + $0xb0] sm:$0xf]
    %v2202 = vld [vmem:[#allocation2 + $0xb4] sm:$0xf]
    %v2203 = vld [vmem:[#allocation2 + $0xb8] sm:$0xf]
    %v2204 = vld [vmem:[#allocation2 + $0xbc] sm:$0xf]
    %v2205 = vpack.c.bf16 %v2200, %v2199
    %v2206 = vld [vmem:[#allocation4 + $0xe] sm:$0x1]
    %v2207 = vlaneseq
    %v2208 = vshrl.u32 %v2207, 7
    %v2209 = vsub.s32 0, %v2208
    %v2210 = vrot.slane %v2206, %v2209
    %v2215 = vunpack.c.l.b16 %v2201
    %v2216 = vunpack.c.l.b16 %v2202
    %v2217 = vunpack.c.l.b16 %v2203
    %v2218 = vunpack.c.l.b16 %v2204
    %v2219 = vpack.c.b16 %v2216, %v2215
    %v2220 = vpack.c.b16 %v2218, %v2217
    %v2224 = vsel %vm182, %v2205, 0
    %2226 = vmatprep.subr.bf16.mxu0 0
    %2227 = vmatpush1.bf16.msra.mxu0 %v2219
    %2228 = vmatprep.subr.bf16.mxu0 0
    %2229 = vmatpush1.bf16.msra.mxu0 %v2220
    %2230 = vmatprep.subr.bf16.mxu0 0
    %2231 = vmatpush1.bf16.msra.mxu0 0
    %2232 = vmatprep.subr.bf16.mxu0 0
    %2233 = vmatpush1.bf16.msra.mxu0 0
    %2234 = vmatprep.subr.bf16.mxu0 0
    %2235 = vmatpush1.bf16.msra.mxu0 0
    %2236 = vmatprep.subr.bf16.mxu0 0
    %2237 = vmatpush1.bf16.msra.mxu0 0
    %2238 = vmatprep.subr.bf16.mxu0 0
    %2239 = vmatpush1.bf16.msra.mxu0 0
    %2240 = vmatprep.subr.bf16.mxu0 0
    %2241 = vmatpush1.bf16.msra.mxu0 0
    %2242 = vmatprep.subr.bf16.mxu0 0
    %2243 = vmatpush1.bf16.msra.mxu0 0
    %2244 = vmatprep.subr.bf16.mxu0 0
    %2245 = vmatpush1.bf16.msra.mxu0 0
    %2246 = vmatprep.subr.bf16.mxu0 0
    %2247 = vmatpush1.bf16.msra.mxu0 0
    %2248 = vmatprep.subr.bf16.mxu0 0
    %2249 = vmatpush1.bf16.msra.mxu0 0
    %2250 = vmatprep.subr.bf16.mxu0 0
    %2251 = vmatpush1.bf16.msra.mxu0 0
    %2252 = vmatprep.subr.bf16.mxu0 0
    %2253 = vmatpush1.bf16.msra.mxu0 0
    %2254 = vmatprep.subr.bf16.mxu0 0
    %2255 = vmatpush1.bf16.msra.mxu0 0
    %2256 = vmatprep.subr.bf16.mxu0 0
    %2257 = vmatpush1.bf16.msra.mxu0 0
    %2258 = vmatprep.mubr.bf16.mxu0 0
    %2259 = vmatmul.mubr.bf16.gmra.mrb[0].mxu0 %v2224
    %v2260 = vpop.f32.mrb[0].mxu0
    %v2261 = vadd.f32 %v2210, %v2260
    %v2262 = vpop.f32.mrb[0].mxu0
    %v2263 = vpop.f32.mrb[0].mxu0
    %v2264 = vadd.f32 %v2210, %v2263
    %v2265 = vpop.f32.mrb[0].mxu0
    %2266 = vdwg.mxu0
    %v2267 = vadd.f32 %v1615, %v2261
    %v2268 = vadd.f32 %v1616, %v2264
    %v2269 = vsel %vm182, %v2267, 0.0
    %2270 = vadd.xlane.f32.xlu0 %v2269
    %v2271 = vpop.xlane.xlu0 %2270
    %v2272 = vsel %vm182, %v2268, 0.0
    %2273 = vadd.xlane.f32.xlu0 %v2272
    %v2274 = vpop.xlane.xlu0 %2273
    %v2275 = vmul.f32 %v2271, %v760
    %v2276 = vmul.f32 %v2274, %v760
    %v2277 = vsub.f32 %v2267, %v2275
    %v2278 = vsub.f32 %v2268, %v2276
    %v2279 = vmul.f32 %v2277, %v2277
    %v2280 = vmul.f32 %v2278, %v2278
    %v2281 = vsel %vm182, %v2279, 0.0
    %2282 = vadd.xlane.f32.xlu0 %v2281
    %v2283 = vpop.xlane.xlu0 %2282
    %v2284 = vsel %vm182, %v2280, 0.0
    %2285 = vadd.xlane.f32.xlu0 %v2284
    %v2286 = vpop.xlane.xlu0 %2285
    %v2287 = vmul.f32 %v2283, %v760
    %v2288 = vmul.f32 %v2286, %v760
    %v2289 = vadd.f32 %v2287, 1e-05
    %v2290 = vadd.f32 %v2288, 1e-05
    %v2291 = vrsqrt.pop %v2289
    %v2292 = vrsqrt.pop %v2290
    %v2293 = vmul.f32 %v2277, %v2291
    %v2294 = vmul.f32 %v2278, %v2292
    %v2295 = vld [vmem:[#allocation4 + $0xf] sm:$0x1]
    %v2296 = vlaneseq
    %v2297 = vshrl.u32 %v2296, 7
    %v2298 = vsub.s32 0, %v2297
    %v2299 = vrot.slane %v2295, %v2298
    %v2300 = vmul.f32 %v2293, %v2299
    %v2301 = vmul.f32 %v2294, %v2299
    %v2302 = vld [vmem:[#allocation4 + $0x10] sm:$0x1]
    %v2303 = vlaneseq
    %v2304 = vshrl.u32 %v2303, 7
    %v2305 = vsub.s32 0, %v2304
    %v2306 = vrot.slane %v2302, %v2305
    %v2307 = vadd.f32 %v2300, %v2306
    %v2308 = vadd.f32 %v2301, %v2306
    %v2309 = vld [vmem:[#allocation2 + $0xc0] sm:$0xf]
    %v2310 = vld [vmem:[#allocation2 + $0xc4] sm:$0xf]
    %v2311 = vld [vmem:[#allocation2 + $0xc8] sm:$0xf]
    %v2312 = vld [vmem:[#allocation2 + $0xcc] sm:$0xf]
    %v2313 = vpack.c.bf16 %v2308, %v2307
    %v2314 = vld [vmem:[#allocation4 + $0x11] sm:$0x1]
    %v2315 = vlaneseq
    %v2316 = vshrl.u32 %v2315, 7
    %v2317 = vsub.s32 0, %v2316
    %v2318 = vrot.slane %v2314, %v2317
    %v2323 = vunpack.c.l.b16 %v2309
    %v2324 = vunpack.c.l.b16 %v2310
    %v2325 = vunpack.c.l.b16 %v2311
    %v2326 = vunpack.c.l.b16 %v2312
    %v2327 = vpack.c.b16 %v2324, %v2323
    %v2328 = vpack.c.b16 %v2326, %v2325
    %v2332 = vsel %vm182, %v2313, 0
    %2334 = vmatprep.subr.bf16.mxu0 0
    %2335 = vmatpush1.bf16.msra.mxu0 %v2327
    %2336 = vmatprep.subr.bf16.mxu0 0
    %2337 = vmatpush1.bf16.msra.mxu0 %v2328
    %2338 = vmatprep.subr.bf16.mxu0 0
    %2339 = vmatpush1.bf16.msra.mxu0 0
    %2340 = vmatprep.subr.bf16.mxu0 0
    %2341 = vmatpush1.bf16.msra.mxu0 0
    %2342 = vmatprep.subr.bf16.mxu0 0
    %2343 = vmatpush1.bf16.msra.mxu0 0
    %2344 = vmatprep.subr.bf16.mxu0 0
    %2345 = vmatpush1.bf16.msra.mxu0 0
    %2346 = vmatprep.subr.bf16.mxu0 0
    %2347 = vmatpush1.bf16.msra.mxu0 0
    %2348 = vmatprep.subr.bf16.mxu0 0
    %2349 = vmatpush1.bf16.msra.mxu0 0
    %2350 = vmatprep.subr.bf16.mxu0 0
    %2351 = vmatpush1.bf16.msra.mxu0 0
    %2352 = vmatprep.subr.bf16.mxu0 0
    %2353 = vmatpush1.bf16.msra.mxu0 0
    %2354 = vmatprep.subr.bf16.mxu0 0
    %2355 = vmatpush1.bf16.msra.mxu0 0
    %2356 = vmatprep.subr.bf16.mxu0 0
    %2357 = vmatpush1.bf16.msra.mxu0 0
    %2358 = vmatprep.subr.bf16.mxu0 0
    %2359 = vmatpush1.bf16.msra.mxu0 0
    %2360 = vmatprep.subr.bf16.mxu0 0
    %2361 = vmatpush1.bf16.msra.mxu0 0
    %2362 = vmatprep.subr.bf16.mxu0 0
    %2363 = vmatpush1.bf16.msra.mxu0 0
    %2364 = vmatprep.subr.bf16.mxu0 0
    %2365 = vmatpush1.bf16.msra.mxu0 0
    %2366 = vmatprep.mubr.bf16.mxu0 0
    %2367 = vmatmul.mubr.bf16.gmra.mrb[0].mxu0 %v2332
    %v2368 = vpop.f32.mrb[0].mxu0
    %v2369 = vadd.f32 %v2318, %v2368
    %v2370 = vpop.f32.mrb[0].mxu0
    %v2371 = vpop.f32.mrb[0].mxu0
    %v2372 = vadd.f32 %v2318, %v2371
    %v2373 = vpop.f32.mrb[0].mxu0
    %2374 = vdwg.mxu0
    %v2375 = vmax.f32 %v2369, 0.0
    %v2376 = vmax.f32 %v2372, 0.0
    %v2377 = vld [vmem:[#allocation2 + $0xd0] sm:$0xf]
    %v2378 = vld [vmem:[#allocation2 + $0xd4] sm:$0xf]
    %v2379 = vld [vmem:[#allocation2 + $0xd8] sm:$0xf]
    %v2380 = vld [vmem:[#allocation2 + $0xdc] sm:$0xf]
    %v2381 = vld [vmem:[#allocation2 + $0xe0] sm:$0xf]
    %v2382 = vld [vmem:[#allocation2 + $0xe4] sm:$0xf]
    %v2383 = vld [vmem:[#allocation2 + $0xe8] sm:$0xf]
    %v2384 = vld [vmem:[#allocation2 + $0xec] sm:$0xf]
    %v2385 = vpack.c.bf16 %v2376, %v2375
    %v2386 = vld [vmem:[#allocation4 + $0x12] sm:$0x1]
    %v2387 = vlaneseq
    %v2388 = vshrl.u32 %v2387, 7
    %v2389 = vsub.s32 0, %v2388
    %v2390 = vrot.slane %v2386, %v2389
    %v2399 = vunpack.c.l.b16 %v2377
    %v2400 = vunpack.c.l.b16 %v2378
    %v2401 = vunpack.c.l.b16 %v2379
    %v2402 = vunpack.c.l.b16 %v2380
    %v2403 = vunpack.c.l.b16 %v2381
    %v2404 = vunpack.c.l.b16 %v2382
    %v2405 = vunpack.c.l.b16 %v2383
    %v2406 = vunpack.c.l.b16 %v2384
    %v2407 = vpack.c.b16 %v2400, %v2399
    %v2408 = vpack.c.b16 %v2402, %v2401
    %v2409 = vpack.c.b16 %v2404, %v2403
    %v2410 = vpack.c.b16 %v2406, %v2405
    %v2416 = vsel %vm92, %v2385, 0
    %2418 = vmatprep.subr.bf16.mxu0 0
    %2419 = vmatpush1.bf16.msra.mxu0 %v2407
    %2420 = vmatprep.subr.bf16.mxu0 0
    %2421 = vmatpush1.bf16.msra.mxu0 %v2408
    %2422 = vmatprep.subr.bf16.mxu0 0
    %2423 = vmatpush1.bf16.msra.mxu0 %v2409
    %2424 = vmatprep.subr.bf16.mxu0 0
    %2425 = vmatpush1.bf16.msra.mxu0 %v2410
    %2426 = vmatprep.subr.bf16.mxu0 0
    %2427 = vmatpush1.bf16.msra.mxu0 0
    %2428 = vmatprep.subr.bf16.mxu0 0
    %2429 = vmatpush1.bf16.msra.mxu0 0
    %2430 = vmatprep.subr.bf16.mxu0 0
    %2431 = vmatpush1.bf16.msra.mxu0 0
    %2432 = vmatprep.subr.bf16.mxu0 0
    %2433 = vmatpush1.bf16.msra.mxu0 0
    %2434 = vmatprep.subr.bf16.mxu0 0
    %2435 = vmatpush1.bf16.msra.mxu0 0
    %2436 = vmatprep.subr.bf16.mxu0 0
    %2437 = vmatpush1.bf16.msra.mxu0 0
    %2438 = vmatprep.subr.bf16.mxu0 0
    %2439 = vmatpush1.bf16.msra.mxu0 0
    %2440 = vmatprep.subr.bf16.mxu0 0
    %2441 = vmatpush1.bf16.msra.mxu0 0
    %2442 = vmatprep.subr.bf16.mxu0 0
    %2443 = vmatpush1.bf16.msra.mxu0 0
    %2444 = vmatprep.subr.bf16.mxu0 0
    %2445 = vmatpush1.bf16.msra.mxu0 0
    %2446 = vmatprep.subr.bf16.mxu0 0
    %2447 = vmatpush1.bf16.msra.mxu0 0
    %2448 = vmatprep.subr.bf16.mxu0 0
    %2449 = vmatpush1.bf16.msra.mxu0 0
    %2450 = vmatprep.mubr.bf16.mxu0 0
    %2451 = vmatmul.mubr.bf16.gmra.mrb[0].mxu0 %v2416
    %v2452 = vpop.f32.mrb[0].mxu0
    %v2453 = vadd.f32 %v2390, %v2452
    %v2454 = vpop.f32.mrb[0].mxu0
    %v2455 = vpop.f32.mrb[0].mxu0
    %v2456 = vadd.f32 %v2390, %v2455
    %v2457 = vpop.f32.mrb[0].mxu0
    %2458 = vdwg.mxu0
    %v2459 = vadd.f32 %v2307, %v2453
    %v2460 = vadd.f32 %v2308, %v2456
    %v2461 = vsel %vm182, %v2459, 0.0
    %2462 = vadd.xlane.f32.xlu0 %v2461
    %v2463 = vpop.xlane.xlu0 %2462
    %v2464 = vsel %vm182, %v2460, 0.0
    %2465 = vadd.xlane.f32.xlu0 %v2464
    %v2466 = vpop.xlane.xlu0 %2465
    %v2467 = vmul.f32 %v2463, %v760
    %v2468 = vmul.f32 %v2466, %v760
    %v2469 = vsub.f32 %v2459, %v2467
    %v2470 = vsub.f32 %v2460, %v2468
    %v2471 = vmul.f32 %v2469, %v2469
    %v2472 = vmul.f32 %v2470, %v2470
    %v2473 = vsel %vm182, %v2471, 0.0
    %2474 = vadd.xlane.f32.xlu0 %v2473
    %v2475 = vpop.xlane.xlu0 %2474
    %v2476 = vsel %vm182, %v2472, 0.0
    %2477 = vadd.xlane.f32.xlu0 %v2476
    %v2478 = vpop.xlane.xlu0 %2477
    %v2479 = vmul.f32 %v2475, %v760
    %v2480 = vmul.f32 %v2478, %v760
    %v2481 = vadd.f32 %v2479, 1e-05
    %v2482 = vadd.f32 %v2480, 1e-05
    %v2483 = vrsqrt.pop %v2481
    %v2484 = vrsqrt.pop %v2482
    %v2485 = vmul.f32 %v2469, %v2483
    %v2486 = vmul.f32 %v2470, %v2484
    %v2487 = vld [vmem:[#allocation4 + $0x13] sm:$0x1]
    %v2488 = vlaneseq
    %v2489 = vshrl.u32 %v2488, 7
    %v2490 = vsub.s32 0, %v2489
    %v2491 = vrot.slane %v2487, %v2490
    %v2492 = vmul.f32 %v2485, %v2491
    %v2493 = vmul.f32 %v2486, %v2491
    %v2494 = vld [vmem:[#allocation4 + $0x14] sm:$0x1]
    %v2495 = vlaneseq
    %v2496 = vshrl.u32 %v2495, 7
    %v2497 = vsub.s32 0, %v2496
    %v2498 = vrot.slane %v2494, %v2497
    %v2499 = vadd.f32 %v2492, %v2498
    %v2500 = vadd.f32 %v2493, %v2498
    %v2501 = vld [vmem:[#allocation2 + $0xf0] sm:$0xf]
    %v2502 = vld [vmem:[#allocation2 + $0xf4] sm:$0xf]
    %v2503 = vld [vmem:[#allocation2 + $0xf8] sm:$0xf]
    %v2504 = vld [vmem:[#allocation2 + $0xfc] sm:$0xf]
    %v2505 = vpack.c.bf16 %v2500, %v2499
    %v2506 = vld [vmem:[#allocation4 + $0x15] sm:$0x1]
    %v2507 = vlaneseq
    %v2508 = vshrl.u32 %v2507, 7
    %v2509 = vsub.s32 0, %v2508
    %v2510 = vrot.slane %v2506, %v2509
    %v2515 = vunpack.c.l.b16 %v2501
    %v2516 = vunpack.c.l.b16 %v2502
    %v2517 = vunpack.c.l.b16 %v2503
    %v2518 = vunpack.c.l.b16 %v2504
    %v2519 = vpack.c.b16 %v2516, %v2515
    %v2520 = vpack.c.b16 %v2518, %v2517
    %v2524 = vsel %vm182, %v2505, 0
    %2526 = vmatprep.subr.bf16.mxu0 0
    %2527 = vmatpush1.bf16.msra.mxu0 %v2519
    %2528 = vmatprep.subr.bf16.mxu0 0
    %2529 = vmatpush1.bf16.msra.mxu0 %v2520
    %2530 = vmatprep.subr.bf16.mxu0 0
    %2531 = vmatpush1.bf16.msra.mxu0 0
    %2532 = vmatprep.subr.bf16.mxu0 0
    %2533 = vmatpush1.bf16.msra.mxu0 0
    %2534 = vmatprep.subr.bf16.mxu0 0
    %2535 = vmatpush1.bf16.msra.mxu0 0
    %2536 = vmatprep.subr.bf16.mxu0 0
    %2537 = vmatpush1.bf16.msra.mxu0 0
    %2538 = vmatprep.subr.bf16.mxu0 0
    %2539 = vmatpush1.bf16.msra.mxu0 0
    %2540 = vmatprep.subr.bf16.mxu0 0
    %2541 = vmatpush1.bf16.msra.mxu0 0
    %2542 = vmatprep.subr.bf16.mxu0 0
    %2543 = vmatpush1.bf16.msra.mxu0 0
    %2544 = vmatprep.subr.bf16.mxu0 0
    %2545 = vmatpush1.bf16.msra.mxu0 0
    %2546 = vmatprep.subr.bf16.mxu0 0
    %2547 = vmatpush1.bf16.msra.mxu0 0
    %2548 = vmatprep.subr.bf16.mxu0 0
    %2549 = vmatpush1.bf16.msra.mxu0 0
    %2550 = vmatprep.subr.bf16.mxu0 0
    %2551 = vmatpush1.bf16.msra.mxu0 0
    %2552 = vmatprep.subr.bf16.mxu0 0
    %2553 = vmatpush1.bf16.msra.mxu0 0
    %2554 = vmatprep.subr.bf16.mxu0 0
    %2555 = vmatpush1.bf16.msra.mxu0 0
    %2556 = vmatprep.subr.bf16.mxu0 0
    %2557 = vmatpush1.bf16.msra.mxu0 0
    %2558 = vmatprep.mubr.bf16.mxu0 0
    %2559 = vmatmul.mubr.bf16.gmra.mrb[0].mxu0 %v2524
    %v2560 = vpop.f32.mrb[0].mxu0
    %v2561 = vadd.f32 %v2510, %v2560
    %v2562 = vpop.f32.mrb[0].mxu0
    %v2563 = vpop.f32.mrb[0].mxu0
    %v2564 = vadd.f32 %v2510, %v2563
    %v2565 = vpop.f32.mrb[0].mxu0
    %2566 = vdwg.mxu0
    %v2567 = vtanh.pop %v2561
    %v2568 = vtanh.pop %v2564
    %v2569 = vld [vmem:[#allocation2 + $0x100] sm:$0xf]
    %v2570 = vld [vmem:[#allocation2 + $0x104] sm:$0xf]
    %v2571 = vld [vmem:[#allocation2 + $0x108] sm:$0xf]
    %v2572 = vld [vmem:[#allocation2 + $0x10c] sm:$0xf]
    %v2573 = vld [vmem:[#allocation2 + $0x110] sm:$0xf]
    %v2574 = vld [vmem:[#allocation2 + $0x114] sm:$0xf]
    %v2575 = vld [vmem:[#allocation2 + $0x118] sm:$0xf]
    %v2576 = vld [vmem:[#allocation2 + $0x11c] sm:$0xf]
    %v2577 = vpack.c.bf16 %v2568, %v2567
    %v2578 = vld [vmem:[#allocation4 + $0x16] sm:$0x1]
    %v2579 = vlaneseq
    %v2580 = vshrl.u32 %v2579, 7
    %v2581 = vsub.s32 0, %v2580
    %v2582 = vrot.slane %v2578, %v2581
    %v2591 = vunpack.c.l.b16 %v2569
    %v2592 = vunpack.c.l.b16 %v2570
    %v2593 = vunpack.c.l.b16 %v2571
    %v2594 = vunpack.c.l.b16 %v2572
    %v2595 = vunpack.c.l.b16 %v2573
    %v2596 = vunpack.c.l.b16 %v2574
    %v2597 = vunpack.c.l.b16 %v2575
    %v2598 = vunpack.c.l.b16 %v2576
    %v2599 = vpack.c.b16 %v2592, %v2591
    %v2600 = vpack.c.b16 %v2594, %v2593
    %v2601 = vpack.c.b16 %v2596, %v2595
    %v2602 = vpack.c.b16 %v2598, %v2597
    %v2608 = vsel %vm92, %v2577, 0
    %2610 = vmatprep.subr.bf16.mxu0 0
    %2611 = vmatpush1.bf16.msra.mxu0 %v2599
    %2612 = vmatprep.subr.bf16.mxu0 0
    %2613 = vmatpush1.bf16.msra.mxu0 %v2600
    %2614 = vmatprep.subr.bf16.mxu0 0
    %2615 = vmatpush1.bf16.msra.mxu0 %v2601
    %2616 = vmatprep.subr.bf16.mxu0 0
    %2617 = vmatpush1.bf16.msra.mxu0 %v2602
    %2618 = vmatprep.subr.bf16.mxu0 0
    %2619 = vmatpush1.bf16.msra.mxu0 0
    %2620 = vmatprep.subr.bf16.mxu0 0
    %2621 = vmatpush1.bf16.msra.mxu0 0
    %2622 = vmatprep.subr.bf16.mxu0 0
    %2623 = vmatpush1.bf16.msra.mxu0 0
    %2624 = vmatprep.subr.bf16.mxu0 0
    %2625 = vmatpush1.bf16.msra.mxu0 0
    %2626 = vmatprep.subr.bf16.mxu0 0
    %2627 = vmatpush1.bf16.msra.mxu0 0
    %2628 = vmatprep.subr.bf16.mxu0 0
    %2629 = vmatpush1.bf16.msra.mxu0 0
    %2630 = vmatprep.subr.bf16.mxu0 0
    %2631 = vmatpush1.bf16.msra.mxu0 0
    %2632 = vmatprep.subr.bf16.mxu0 0
    %2633 = vmatpush1.bf16.msra.mxu0 0
    %2634 = vmatprep.subr.bf16.mxu0 0
    %2635 = vmatpush1.bf16.msra.mxu0 0
    %2636 = vmatprep.subr.bf16.mxu0 0
    %2637 = vmatpush1.bf16.msra.mxu0 0
    %2638 = vmatprep.subr.bf16.mxu0 0
    %2639 = vmatpush1.bf16.msra.mxu0 0
    %2640 = vmatprep.subr.bf16.mxu0 0
    %2641 = vmatpush1.bf16.msra.mxu0 0
    %2642 = vmatprep.mubr.bf16.mxu0 0
    %2643 = vmatmul.mubr.bf16.gmra.mrb[0].mxu0 %v2608
    %v2644 = vpop.f32.mrb[0].mxu0
    %v2645 = vadd.f32 %v2582, %v2644
    %v2646 = vpop.f32.mrb[0].mxu0
    %v2647 = vpop.f32.mrb[0].mxu0
    %v2648 = vadd.f32 %v2582, %v2647
    %v2649 = vpop.f32.mrb[0].mxu0
    %2650 = vdwg.mxu0
    %2651 = vst [vmem:[%s4] sm:$0xff] %v2645
    %2652 = vst [vmem:[%s4 + $0x8] sm:$0xff] %v2648
    // Predicated region
    $region26: #{qe_detector_forward.1} parent=1 // pred_check
      _
    $region27: #{qe_detector_forward.1} parent=1 // pred_check_branch
      %2654 = sbr.rel (0) target = $region29
    $region28: #{qe_detector_forward.1} parent=1 // pred_region
      _
    $region29: #{qe_detector_forward.1} parent=1 // pred_fallthru
      _
    // Predicated region
    $region30: #{qe_detector_forward.1} parent=1 // pred_check
      _
    $region31: #{qe_detector_forward.1} parent=1 // pred_check_branch
      %2656 = sbr.rel (0) target = $region33
    $region32: #{qe_detector_forward.1} parent=1 // pred_region
      _
    $region33: #{qe_detector_forward.1} parent=1 // pred_fallthru
      _
    %2657 = vsyncpa [#allocation3], 1
    %2658 = vsyncpa [#allocation5], 1

</llo_original>
